<compile_context>
chip_gen: v7x
topology: tpu7x:2x2x1
jax: 0.10.0
libtpu: 0.0.40
codegen_flags: <defaults>
</compile_context>

<pallas_src>
import functools

import jax
import jax.numpy as jnp
from jax.experimental import pallas as pl
from jax.experimental.pallas import tpu as pltpu

LN_EPS = 1e-5
BN_EPS = 1e-5
_HALO = 128  # halo block width along T (lane axis); must be a multiple of 128


def _conv_module_kernel(x_l_ref, x_m_ref, x_r_ref,
                        ln_g_ref, ln_b_ref,
                        w1_ref, b1_ref,
                        dw_w_ref, dw_b_ref,
                        w2_ref, b2_ref,
                        o_ref,
                        *, kernel_size, pad_left, t_tile, halo, seq_len):
    """One (batch, time-tile) grid step. All tiles are channels-first (C, T_tile)."""
    i = pl.program_id(1)
    c = x_m_ref.shape[0]
    ext = t_tile + 2 * halo

    # Extended window [left halo | main tile | right halo] along the lane (time) axis.
    x_ext = jnp.concatenate(
        [x_l_ref[...], x_m_ref[...], x_r_ref[...]], axis=1).astype(jnp.float32)  # (C, ext)

    # Global time index of every extended column. Columns outside [0, seq_len) are either
    # conv 'same' zero padding or clamped edge reads -> their GLU output is masked to 0.
    t_idx = i * t_tile - halo + jax.lax.broadcasted_iota(jnp.int32, (1, ext), 1)
    valid = jnp.logical_and(t_idx >= 0, t_idx < seq_len)                          # (1, ext)

    # ---- LayerNorm over channels (sublane axis), biased variance, eps = 1e-5 ----
    mean = jnp.mean(x_ext, axis=0, keepdims=True)
    var = jnp.mean((x_ext - mean) ** 2, axis=0, keepdims=True)
    y = (x_ext - mean) * jax.lax.rsqrt(var + LN_EPS)
    y = y * ln_g_ref[...] + ln_b_ref[...]                                         # (C, ext)
    y_bf = y.astype(jnp.bfloat16)                                                 # bf16 MXU operands

    # ---- pointwise conv 1 (single (2C, C) matmul) + GLU ----
    h = jnp.dot(w1_ref[...], y_bf, preferred_element_type=jnp.float32) + b1_ref[...]
    a = h[:c]                                                                     # GLU "value" half
    gate = h[c:]                                                                  # GLU "gate" half
    g = a * jax.nn.sigmoid(gate)                                                  # (C, ext)
    g = jnp.where(valid, g, 0.0)                                                  # zero outside sequence

    # ---- Conv1d(C->C, K, padding='same') with BatchNorm pre-folded into the weights ----
    # K lane rotations (XLU slot, overlaps MXU) + K accumulating MXU matmuls.
    acc = jnp.zeros((c, t_tile), jnp.float32)
    for k in range(kernel_size):                                                  # small static unroll
        shift = (ext - (halo - pad_left + k)) % ext
        g_k = pltpu.roll(g, shift=shift, axis=1)          # col j -> g[:, j + halo - pad_left + k]
        acc = acc + jnp.dot(dw_w_ref[k], g_k[:, :t_tile].astype(jnp.bfloat16),
                            preferred_element_type=jnp.float32)

    # ---- folded-BN bias, SiLU, pointwise conv 2, residual ----
    # TODO(synk): training-mode BatchNorm (batch statistics) and Dropout RNG are not
    # implemented; inference semantics (running stats, dropout == identity) are used.
    z = acc + dw_b_ref[...]
    z = z * jax.nn.sigmoid(z)                                                     # SiLU
    out = jnp.dot(w2_ref[...], z.astype(jnp.bfloat16),
                  preferred_element_type=jnp.float32) + b2_ref[...]
    o_ref[...] = (out + x_m_ref[...].astype(jnp.float32)).astype(o_ref.dtype)


def conv_module_forward(x, params, kernel_size, *, t_tile=256):
    """x: (B, C, T), exactly like the PyTorch module. Returns (B, C, T)."""
    B, C, T = x.shape
    pad_left = (kernel_size - 1) // 2
    pad_right = (kernel_size - 1) - pad_left
    if max(pad_left, pad_right) > _HALO:
        raise ValueError("kernel_size too large for the fixed 128-wide halo")

    # Lane-align T; fall back to 128-wide time tiles if t_tile does not divide T_pad.
    T_pad = ((T + 127) // 128) * 128
    if t_tile % _HALO != 0 or T_pad % t_tile != 0:
        t_tile = _HALO
    x_p = x if T_pad == T else jnp.pad(x, ((0, 0), (0, 0), (0, T_pad - T)))
    n_t = T_pad // t_tile
    r = t_tile // _HALO            # halo blocks per time tile
    n_halo = T_pad // _HALO        # total halo blocks along T

    # ---- one-time parameter preprocessing (wrapper-side JAX glue) ----
    f32 = jnp.float32
    ln_g = params["ln_gamma"].astype(f32).reshape(C, 1)
    ln_b = params["ln_beta"].astype(f32).reshape(C, 1)
    w1 = params["pw1_w"][:, :, 0].astype(jnp.bfloat16)             # (2C, C)
    b1 = params["pw1_b"].astype(f32).reshape(2 * C, 1)
    # Fold inference BatchNorm into the conv weights / bias.
    bn_scale = params["bn_gamma"] / jnp.sqrt(params["bn_var"] + BN_EPS)
    bn_shift = params["bn_beta"] - params["bn_mean"] * bn_scale
    dw_w = jnp.transpose(params["dw_w"], (2, 0, 1))                # (K, C_out, C_in)
    dw_w = (dw_w * bn_scale[None, :, None]).astype(jnp.bfloat16)
    dw_b = (params["dw_b"] * bn_scale + bn_shift).astype(f32).reshape(C, 1)
    w2 = params["pw2_w"][:, :, 0].astype(jnp.bfloat16)             # (C, C)
    b2 = params["pw2_b"].astype(f32).reshape(C, 1)

    def const_spec(shape):
        return pl.BlockSpec(shape, lambda b, i: (0,) * len(shape))

    # Main tile + 128-wide neighbor halo blocks (clamped at the edges; the kernel's
    # global-index mask zeroes any clamped / out-of-sequence halo columns).
    x_main = pl.BlockSpec((None, C, t_tile), lambda b, i: (b, 0, i))
    x_left = pl.BlockSpec((None, C, _HALO),
                          lambda b, i: (b, 0, jnp.maximum(i * r - 1, 0)))
    x_right = pl.BlockSpec((None, C, _HALO),
                           lambda b, i: (b, 0, jnp.minimum((i + 1) * r, n_halo - 1)))

    kernel = functools.partial(
        _conv_module_kernel, kernel_size=kernel_size, pad_left=pad_left,
        t_tile=t_tile, halo=_HALO, seq_len=T)

    out = pl.pallas_call(
        kernel,
        out_shape=jax.ShapeDtypeStruct((B, C, T_pad), x.dtype),
        grid=(B, n_t),
        in_specs=[
            x_left, x_main, x_right,
            const_spec((C, 1)), const_spec((C, 1)),                 # LN gamma / beta
            const_spec((2 * C, C)), const_spec((2 * C, 1)),         # pw1 (both GLU halves)
            const_spec((kernel_size, C, C)), const_spec((C, 1)),    # conv weights/bias (BN folded)
            const_spec((C, C)), const_spec((C, 1)),                 # pw2
        ],
        out_specs=pl.BlockSpec((None, C, t_tile), lambda b, i: (b, 0, i)),
        compiler_params=pltpu.CompilerParams(
            dimension_semantics=("parallel", "parallel"),
            vmem_limit_bytes=32 * 1024 * 1024),
    )(x_p, x_p, x_p, ln_g, ln_b, w1, b1, dw_w, dw_b, w2, b2)

    return out if T_pad == T else out[:, :, :T]


def conv_module_reference(x_bct, params, kernel_size):
    """Plain-JAX f32 reference (for correctness check)."""
    B, C, T = x_bct.shape
    xf = x_bct.astype(jnp.float32)
    xl = jnp.transpose(xf, (0, 2, 1))                               # (B, T, C)
    mean = xl.mean(-1, keepdims=True)
    var = ((xl - mean) ** 2).mean(-1, keepdims=True)
    y = (xl - mean) / jnp.sqrt(var + LN_EPS) * params["ln_gamma"] + params["ln_beta"]
    y = jnp.transpose(y, (0, 2, 1))                                 # (B, C, T)

    h = jnp.einsum("oc,bct->bot", params["pw1_w"][:, :, 0], y) + params["pw1_b"][None, :, None]
    a, gate = h[:, :C], h[:, C:]
    g = a * jax.nn.sigmoid(gate)

    pad_left = (kernel_size - 1) // 2
    pad_right = (kernel_size - 1) - pad_left
    z = jax.lax.conv_general_dilated(
        g, params["dw_w"], window_strides=(1,), padding=[(pad_left, pad_right)],
        dimension_numbers=("NCH", "OIH", "NCH"))
    z = z + params["dw_b"][None, :, None]

    scale = params["bn_gamma"] / jnp.sqrt(params["bn_var"] + BN_EPS)
    shift = params["bn_beta"] - params["bn_mean"] * scale
    z = z * scale[None, :, None] + shift[None, :, None]
    z = z * jax.nn.sigmoid(z)

    out = jnp.einsum("oc,bct->bot", params["pw2_w"][:, :, 0], z) + params["pw2_b"][None, :, None]
    return out + xf


def init_params(key, C, K):
    ks = jax.random.split(key, 10)
    return {
        "ln_gamma": 1.0 + 0.1 * jax.random.normal(ks[0], (C,), jnp.float32),
        "ln_beta": 0.1 * jax.random.normal(ks[1], (C,), jnp.float32),
        "pw1_w": 0.1 * jax.random.normal(ks[2], (2 * C, C, 1), jnp.float32),
        "pw1_b": 0.1 * jax.random.normal(ks[3], (2 * C,), jnp.float32),
        "dw_w": 0.1 * jax.random.normal(ks[4], (C, C, K), jnp.float32),
        "dw_b": 0.1 * jax.random.normal(ks[5], (C,), jnp.float32),
        "bn_gamma": 1.0 + 0.05 * jax.random.normal(ks[6], (C,), jnp.float32),
        "bn_beta": 0.05 * jax.random.normal(ks[7], (C,), jnp.float32),
        "bn_mean": 0.02 * jax.random.normal(ks[8], (C,), jnp.float32),
        "bn_var": 1.0 + jnp.abs(0.5 * jax.random.normal(ks[9], (C,), jnp.float32)),
        "pw2_w": 0.1 * jax.random.normal(jax.random.fold_in(key, 99), (C, C, 1), jnp.float32),
        "pw2_b": 0.1 * jax.random.normal(jax.random.fold_in(key, 100), (C,), jnp.float32),
    }


if __name__ == "__main__":
    configs = [
        # (B, C, T, K, t_tile)
        (2, 128, 1024, 7, 256),   # lane-dense config: grid (2, 4), interior halos exercised
        (2, 8, 160, 3, 256),      # small / unaligned T: exercises tail padding + edge masks
    ]
    for (B, C, T, K, tt) in configs:
        key = jax.random.PRNGKey(0)
        k_x, k_p = jax.random.split(key)
        x = jax.random.normal(k_x, (B, C, T), jnp.float32)
        params = init_params(k_p, C, K)

        fwd = jax.jit(functools.partial(conv_module_forward, kernel_size=K, t_tile=tt))
        out = jax.block_until_ready(fwd(x, params))
        ref = jax.block_until_ready(conv_module_reference(x, params, K))

        assert out.shape == (B, C, T), out.shape
        max_err = float(jnp.max(jnp.abs(out - ref)))
        ref_scale = float(jnp.max(jnp.abs(ref)))
        tol = 5e-2 * max(1.0, ref_scale)   # bf16 MXU operands, f32 accumulation
        assert max_err < tol, (B, C, T, K, max_err, tol)
    print("KERNEL_OK")
</pallas_src>

<mosaic_0001>
module attributes {stable_mosaic.version = 11 : i64} {
  func.func @_conv_module_kernel(%arg0: i32, %arg1: i32, %arg2: memref<1x128x128xf32, #tpu.memory_space<vmem>>, %arg3: memref<1x128x256xf32, #tpu.memory_space<vmem>>, %arg4: memref<1x128x128xf32, #tpu.memory_space<vmem>>, %arg5: memref<128x1xf32, #tpu.memory_space<vmem>>, %arg6: memref<128x1xf32, #tpu.memory_space<vmem>>, %arg7: memref<256x128xbf16, #tpu.memory_space<vmem>>, %arg8: memref<256x1xf32, #tpu.memory_space<vmem>>, %arg9: memref<7x128x128xbf16, #tpu.memory_space<vmem>>, %arg10: memref<128x1xf32, #tpu.memory_space<vmem>>, %arg11: memref<128x128xbf16, #tpu.memory_space<vmem>>, %arg12: memref<128x1xf32, #tpu.memory_space<vmem>>, %arg13: memref<1x128x256xf32, #tpu.memory_space<vmem>>) attributes {dimension_semantics = [#tpu.dimension_semantics<parallel>, #tpu.dimension_semantics<parallel>], iteration_bounds = array<i64: 2, 4>, scalar_prefetch = 0 : i64, scratch_operands = 0 : i64, tpu.core_type = #tpu.core_type<tc>, window_params = [{transform_indices = @transform_0, window_bounds = array<i64: 1, 128, 128>}, {transform_indices = @transform_1, window_bounds = array<i64: 1, 128, 256>}, {transform_indices = @transform_2, window_bounds = array<i64: 1, 128, 128>}, {pipeline_mode = #tpu.pipeline_mode<synchronous>, transform_indices = @transform_3, window_bounds = array<i64: 128, 1>}, {pipeline_mode = #tpu.pipeline_mode<synchronous>, transform_indices = @transform_4, window_bounds = array<i64: 128, 1>}, {pipeline_mode = #tpu.pipeline_mode<synchronous>, transform_indices = @transform_5, window_bounds = array<i64: 256, 128>}, {pipeline_mode = #tpu.pipeline_mode<synchronous>, transform_indices = @transform_6, window_bounds = array<i64: 256, 1>}, {pipeline_mode = #tpu.pipeline_mode<synchronous>, transform_indices = @transform_7, window_bounds = array<i64: 7, 128, 128>}, {pipeline_mode = #tpu.pipeline_mode<synchronous>, transform_indices = @transform_8, window_bounds = array<i64: 128, 1>}, {pipeline_mode = #tpu.pipeline_mode<synchronous>, transform_indices = @transform_9, window_bounds = array<i64: 128, 128>}, {pipeline_mode = #tpu.pipeline_mode<synchronous>, transform_indices = @transform_10, window_bounds = array<i64: 128, 1>}, {transform_indices = @transform_11, window_bounds = array<i64: 1, 128, 256>}]} {
    %c0 = arith.constant 0 : index
    %c0_0 = arith.constant 0 : index
    %c0_1 = arith.constant 0 : index
    %0 = vector.load %arg2[%c0, %c0_0, %c0_1] : memref<1x128x128xf32, #tpu.memory_space<vmem>>, vector<1x128x128xf32>
    %1 = vector.shape_cast %0 : vector<1x128x128xf32> to vector<128x128xf32>
    %c0_2 = arith.constant 0 : index
    %c0_3 = arith.constant 0 : index
    %c0_4 = arith.constant 0 : index
    %2 = vector.load %arg3[%c0_2, %c0_3, %c0_4] : memref<1x128x256xf32, #tpu.memory_space<vmem>>, vector<1x128x256xf32>
    %3 = vector.shape_cast %2 : vector<1x128x256xf32> to vector<128x256xf32>
    %c0_5 = arith.constant 0 : index
    %c0_6 = arith.constant 0 : index
    %c0_7 = arith.constant 0 : index
    %4 = vector.load %arg4[%c0_5, %c0_6, %c0_7] : memref<1x128x128xf32, #tpu.memory_space<vmem>>, vector<1x128x128xf32>
    %5 = vector.shape_cast %4 : vector<1x128x128xf32> to vector<128x128xf32>
    %6 = tpu.concatenate %1, %3, %5 in 1 : vector<128x128xf32>, vector<128x256xf32>, vector<128x128xf32> -> vector<128x512xf32>
    %c256_i32 = arith.constant 256 : i32
    %7 = arith.muli %arg1, %c256_i32 : i32
    %c128_i32 = arith.constant 128 : i32
    %8 = arith.subi %7, %c128_i32 : i32
    %9 = tpu.iota {dimensions = array<i32: 1>} : vector<1x512xi32>
    %10 = vector.broadcast %8 : i32 to vector<1x512xi32>
    %11 = arith.addi %10, %9 : vector<1x512xi32>
    %c0_i32 = arith.constant 0 : i32
    %12 = vector.broadcast %c0_i32 : i32 to vector<1x512xi32>
    %13 = arith.cmpi sge, %11, %12 : vector<1x512xi32>
    %c1024_i32 = arith.constant 1024 : i32
    %14 = vector.broadcast %c1024_i32 : i32 to vector<1x512xi32>
    %15 = arith.cmpi slt, %11, %14 : vector<1x512xi32>
    %16 = arith.andi %13, %15 : vector<1x512xi1>
    %cst = arith.constant dense<0.000000e+00> : vector<512xf32>
    %17 = vector.multi_reduction <add>, %6, %cst [0] : vector<128x512xf32> to vector<512xf32>
    %18 = vector.shape_cast %17 : vector<512xf32> to vector<1x512xf32>
    %cst_8 = arith.constant 1.280000e+02 : f32
    %19 = vector.broadcast %cst_8 : f32 to vector<1x512xf32>
    %20 = arith.divf %18, %19 : vector<1x512xf32>
    %21 = vector.broadcast %20 : vector<1x512xf32> to vector<128x512xf32>
    %22 = arith.subf %6, %21 : vector<128x512xf32>
    %23 = arith.mulf %22, %22 : vector<128x512xf32>
    %cst_9 = arith.constant dense<0.000000e+00> : vector<512xf32>
    %24 = vector.multi_reduction <add>, %23, %cst_9 [0] : vector<128x512xf32> to vector<512xf32>
    %25 = vector.shape_cast %24 : vector<512xf32> to vector<1x512xf32>
    %cst_10 = arith.constant 1.280000e+02 : f32
    %26 = vector.broadcast %cst_10 : f32 to vector<1x512xf32>
    %27 = arith.divf %25, %26 : vector<1x512xf32>
    %28 = vector.broadcast %20 : vector<1x512xf32> to vector<128x512xf32>
    %29 = arith.subf %6, %28 : vector<128x512xf32>
    %cst_11 = arith.constant 9.99999974E-6 : f32
    %30 = vector.broadcast %cst_11 : f32 to vector<1x512xf32>
    %31 = arith.addf %27, %30 : vector<1x512xf32>
    %32 = math.rsqrt %31 : vector<1x512xf32>
    %33 = vector.broadcast %32 : vector<1x512xf32> to vector<128x512xf32>
    %34 = arith.mulf %29, %33 : vector<128x512xf32>
    %c0_12 = arith.constant 0 : index
    %c0_13 = arith.constant 0 : index
    %35 = vector.load %arg5[%c0_12, %c0_13] : memref<128x1xf32, #tpu.memory_space<vmem>>, vector<128x1xf32>
    %36 = vector.broadcast %35 : vector<128x1xf32> to vector<128x512xf32>
    %37 = arith.mulf %34, %36 : vector<128x512xf32>
    %c0_14 = arith.constant 0 : index
    %c0_15 = arith.constant 0 : index
    %38 = vector.load %arg6[%c0_14, %c0_15] : memref<128x1xf32, #tpu.memory_space<vmem>>, vector<128x1xf32>
    %39 = vector.broadcast %38 : vector<128x1xf32> to vector<128x512xf32>
    %40 = arith.addf %37, %39 : vector<128x512xf32>
    %41 = arith.truncf %40 : vector<128x512xf32> to vector<128x512xbf16>
    %c0_16 = arith.constant 0 : index
    %c0_17 = arith.constant 0 : index
    %42 = vector.load %arg7[%c0_16, %c0_17] : memref<256x128xbf16, #tpu.memory_space<vmem>>, vector<256x128xbf16>
    %cst_18 = arith.constant dense<0.000000e+00> : vector<256x512xf32>
    %43 = tpu.matmul %42, %41, %cst_18 {dimension_numbers = #tpu.dot_dimension_numbers<[1], [0], [0], [1], [0, 0, 1, 1], [], []>} : vector<256x128xbf16>, vector<128x512xbf16>, vector<256x512xf32> -> vector<256x512xf32>
    %c0_19 = arith.constant 0 : index
    %c0_20 = arith.constant 0 : index
    %44 = vector.load %arg8[%c0_19, %c0_20] : memref<256x1xf32, #tpu.memory_space<vmem>>, vector<256x1xf32>
    %45 = vector.broadcast %44 : vector<256x1xf32> to vector<256x512xf32>
    %46 = arith.addf %43, %45 : vector<256x512xf32>
    %47 = vector.extract_strided_slice %46 {offsets = [0, 0], sizes = [128, 512], strides = [1, 1]} : vector<256x512xf32> to vector<128x512xf32>
    %48 = vector.extract_strided_slice %46 {offsets = [128, 0], sizes = [128, 512], strides = [1, 1]} : vector<256x512xf32> to vector<128x512xf32>
    %49 = arith.negf %48 : vector<128x512xf32>
    %50 = math.exp %49 : vector<128x512xf32>
    %cst_21 = arith.constant 1.000000e+00 : f32
    %51 = vector.broadcast %cst_21 : f32 to vector<128x512xf32>
    %52 = arith.addf %51, %50 : vector<128x512xf32>
    %53 = arith.divf %51, %52 : vector<128x512xf32>
    %54 = arith.mulf %47, %53 : vector<128x512xf32>
    %cst_22 = arith.constant 0.000000e+00 : f32
    %55 = vector.shape_cast %16 : vector<1x512xi1> to vector<1x512xi1>
    %56 = vector.broadcast %55 : vector<1x512xi1> to vector<128x512xi1>
    %57 = vector.broadcast %cst_22 : f32 to vector<128x512xf32>
    %58 = arith.select %56, %54, %57 : vector<128x512xi1>, vector<128x512xf32>
    %cst_23 = arith.constant 0.000000e+00 : f32
    %59 = vector.broadcast %cst_23 : f32 to vector<128x256xf32>
    %c387_i32 = arith.constant 387 : i32
    %60 = tpu.dynamic_rotate %58 by %c387_i32 dim 1 : vector<128x512xf32>, i32 -> vector<128x512xf32>
    %c0_24 = arith.constant 0 : index
    %c0_25 = arith.constant 0 : index
    %c0_26 = arith.constant 0 : index
    %61 = vector.load %arg9[%c0_24, %c0_25, %c0_26] : memref<7x128x128xbf16, #tpu.memory_space<vmem>>, vector<1x128x128xbf16>
    %62 = vector.shape_cast %61 : vector<1x128x128xbf16> to vector<128x128xbf16>
    %63 = vector.extract_strided_slice %60 {offsets = [0, 0], sizes = [128, 256], strides = [1, 1]} : vector<128x512xf32> to vector<128x256xf32>
    %64 = arith.truncf %63 : vector<128x256xf32> to vector<128x256xbf16>
    %cst_27 = arith.constant dense<0.000000e+00> : vector<128x256xf32>
    %65 = tpu.matmul %62, %64, %cst_27 {dimension_numbers = #tpu.dot_dimension_numbers<[1], [0], [0], [1], [0, 0, 1, 1], [], []>} : vector<128x128xbf16>, vector<128x256xbf16>, vector<128x256xf32> -> vector<128x256xf32>
    %66 = arith.addf %59, %65 : vector<128x256xf32>
    %c386_i32 = arith.constant 386 : i32
    %67 = tpu.dynamic_rotate %58 by %c386_i32 dim 1 : vector<128x512xf32>, i32 -> vector<128x512xf32>
    %c1 = arith.constant 1 : index
    %c0_28 = arith.constant 0 : index
    %c0_29 = arith.constant 0 : index
    %68 = vector.load %arg9[%c1, %c0_28, %c0_29] : memref<7x128x128xbf16, #tpu.memory_space<vmem>>, vector<1x128x128xbf16>
    %69 = vector.shape_cast %68 : vector<1x128x128xbf16> to vector<128x128xbf16>
    %70 = vector.extract_strided_slice %67 {offsets = [0, 0], sizes = [128, 256], strides = [1, 1]} : vector<128x512xf32> to vector<128x256xf32>
    %71 = arith.truncf %70 : vector<128x256xf32> to vector<128x256xbf16>
    %cst_30 = arith.constant dense<0.000000e+00> : vector<128x256xf32>
    %72 = tpu.matmul %69, %71, %cst_30 {dimension_numbers = #tpu.dot_dimension_numbers<[1], [0], [0], [1], [0, 0, 1, 1], [], []>} : vector<128x128xbf16>, vector<128x256xbf16>, vector<128x256xf32> -> vector<128x256xf32>
    %73 = arith.addf %66, %72 : vector<128x256xf32>
    %c385_i32 = arith.constant 385 : i32
    %74 = tpu.dynamic_rotate %58 by %c385_i32 dim 1 : vector<128x512xf32>, i32 -> vector<128x512xf32>
    %c2 = arith.constant 2 : index
    %c0_31 = arith.constant 0 : index
    %c0_32 = arith.constant 0 : index
    %75 = vector.load %arg9[%c2, %c0_31, %c0_32] : memref<7x128x128xbf16, #tpu.memory_space<vmem>>, vector<1x128x128xbf16>
    %76 = vector.shape_cast %75 : vector<1x128x128xbf16> to vector<128x128xbf16>
    %77 = vector.extract_strided_slice %74 {offsets = [0, 0], sizes = [128, 256], strides = [1, 1]} : vector<128x512xf32> to vector<128x256xf32>
    %78 = arith.truncf %77 : vector<128x256xf32> to vector<128x256xbf16>
    %cst_33 = arith.constant dense<0.000000e+00> : vector<128x256xf32>
    %79 = tpu.matmul %76, %78, %cst_33 {dimension_numbers = #tpu.dot_dimension_numbers<[1], [0], [0], [1], [0, 0, 1, 1], [], []>} : vector<128x128xbf16>, vector<128x256xbf16>, vector<128x256xf32> -> vector<128x256xf32>
    %80 = arith.addf %73, %79 : vector<128x256xf32>
    %c384_i32 = arith.constant 384 : i32
    %81 = tpu.dynamic_rotate %58 by %c384_i32 dim 1 : vector<128x512xf32>, i32 -> vector<128x512xf32>
    %c3 = arith.constant 3 : index
    %c0_34 = arith.constant 0 : index
    %c0_35 = arith.constant 0 : index
    %82 = vector.load %arg9[%c3, %c0_34, %c0_35] : memref<7x128x128xbf16, #tpu.memory_space<vmem>>, vector<1x128x128xbf16>
    %83 = vector.shape_cast %82 : vector<1x128x128xbf16> to vector<128x128xbf16>
    %84 = vector.extract_strided_slice %81 {offsets = [0, 0], sizes = [128, 256], strides = [1, 1]} : vector<128x512xf32> to vector<128x256xf32>
    %85 = arith.truncf %84 : vector<128x256xf32> to vector<128x256xbf16>
    %cst_36 = arith.constant dense<0.000000e+00> : vector<128x256xf32>
    %86 = tpu.matmul %83, %85, %cst_36 {dimension_numbers = #tpu.dot_dimension_numbers<[1], [0], [0], [1], [0, 0, 1, 1], [], []>} : vector<128x128xbf16>, vector<128x256xbf16>, vector<128x256xf32> -> vector<128x256xf32>
    %87 = arith.addf %80, %86 : vector<128x256xf32>
    %c383_i32 = arith.constant 383 : i32
    %88 = tpu.dynamic_rotate %58 by %c383_i32 dim 1 : vector<128x512xf32>, i32 -> vector<128x512xf32>
    %c4 = arith.constant 4 : index
    %c0_37 = arith.constant 0 : index
    %c0_38 = arith.constant 0 : index
    %89 = vector.load %arg9[%c4, %c0_37, %c0_38] : memref<7x128x128xbf16, #tpu.memory_space<vmem>>, vector<1x128x128xbf16>
    %90 = vector.shape_cast %89 : vector<1x128x128xbf16> to vector<128x128xbf16>
    %91 = vector.extract_strided_slice %88 {offsets = [0, 0], sizes = [128, 256], strides = [1, 1]} : vector<128x512xf32> to vector<128x256xf32>
    %92 = arith.truncf %91 : vector<128x256xf32> to vector<128x256xbf16>
    %cst_39 = arith.constant dense<0.000000e+00> : vector<128x256xf32>
    %93 = tpu.matmul %90, %92, %cst_39 {dimension_numbers = #tpu.dot_dimension_numbers<[1], [0], [0], [1], [0, 0, 1, 1], [], []>} : vector<128x128xbf16>, vector<128x256xbf16>, vector<128x256xf32> -> vector<128x256xf32>
    %94 = arith.addf %87, %93 : vector<128x256xf32>
    %c382_i32 = arith.constant 382 : i32
    %95 = tpu.dynamic_rotate %58 by %c382_i32 dim 1 : vector<128x512xf32>, i32 -> vector<128x512xf32>
    %c5 = arith.constant 5 : index
    %c0_40 = arith.constant 0 : index
    %c0_41 = arith.constant 0 : index
    %96 = vector.load %arg9[%c5, %c0_40, %c0_41] : memref<7x128x128xbf16, #tpu.memory_space<vmem>>, vector<1x128x128xbf16>
    %97 = vector.shape_cast %96 : vector<1x128x128xbf16> to vector<128x128xbf16>
    %98 = vector.extract_strided_slice %95 {offsets = [0, 0], sizes = [128, 256], strides = [1, 1]} : vector<128x512xf32> to vector<128x256xf32>
    %99 = arith.truncf %98 : vector<128x256xf32> to vector<128x256xbf16>
    %cst_42 = arith.constant dense<0.000000e+00> : vector<128x256xf32>
    %100 = tpu.matmul %97, %99, %cst_42 {dimension_numbers = #tpu.dot_dimension_numbers<[1], [0], [0], [1], [0, 0, 1, 1], [], []>} : vector<128x128xbf16>, vector<128x256xbf16>, vector<128x256xf32> -> vector<128x256xf32>
    %101 = arith.addf %94, %100 : vector<128x256xf32>
    %c381_i32 = arith.constant 381 : i32
    %102 = tpu.dynamic_rotate %58 by %c381_i32 dim 1 : vector<128x512xf32>, i32 -> vector<128x512xf32>
    %c6 = arith.constant 6 : index
    %c0_43 = arith.constant 0 : index
    %c0_44 = arith.constant 0 : index
    %103 = vector.load %arg9[%c6, %c0_43, %c0_44] : memref<7x128x128xbf16, #tpu.memory_space<vmem>>, vector<1x128x128xbf16>
    %104 = vector.shape_cast %103 : vector<1x128x128xbf16> to vector<128x128xbf16>
    %105 = vector.extract_strided_slice %102 {offsets = [0, 0], sizes = [128, 256], strides = [1, 1]} : vector<128x512xf32> to vector<128x256xf32>
    %106 = arith.truncf %105 : vector<128x256xf32> to vector<128x256xbf16>
    %cst_45 = arith.constant dense<0.000000e+00> : vector<128x256xf32>
    %107 = tpu.matmul %104, %106, %cst_45 {dimension_numbers = #tpu.dot_dimension_numbers<[1], [0], [0], [1], [0, 0, 1, 1], [], []>} : vector<128x128xbf16>, vector<128x256xbf16>, vector<128x256xf32> -> vector<128x256xf32>
    %108 = arith.addf %101, %107 : vector<128x256xf32>
    %c0_46 = arith.constant 0 : index
    %c0_47 = arith.constant 0 : index
    %109 = vector.load %arg10[%c0_46, %c0_47] : memref<128x1xf32, #tpu.memory_space<vmem>>, vector<128x1xf32>
    %110 = vector.broadcast %109 : vector<128x1xf32> to vector<128x256xf32>
    %111 = arith.addf %108, %110 : vector<128x256xf32>
    %112 = arith.negf %111 : vector<128x256xf32>
    %113 = math.exp %112 : vector<128x256xf32>
    %cst_48 = arith.constant 1.000000e+00 : f32
    %114 = vector.broadcast %cst_48 : f32 to vector<128x256xf32>
    %115 = arith.addf %114, %113 : vector<128x256xf32>
    %116 = arith.divf %114, %115 : vector<128x256xf32>
    %117 = arith.mulf %111, %116 : vector<128x256xf32>
    %c0_49 = arith.constant 0 : index
    %c0_50 = arith.constant 0 : index
    %118 = vector.load %arg11[%c0_49, %c0_50] : memref<128x128xbf16, #tpu.memory_space<vmem>>, vector<128x128xbf16>
    %119 = arith.truncf %117 : vector<128x256xf32> to vector<128x256xbf16>
    %cst_51 = arith.constant dense<0.000000e+00> : vector<128x256xf32>
    %120 = tpu.matmul %118, %119, %cst_51 {dimension_numbers = #tpu.dot_dimension_numbers<[1], [0], [0], [1], [0, 0, 1, 1], [], []>} : vector<128x128xbf16>, vector<128x256xbf16>, vector<128x256xf32> -> vector<128x256xf32>
    %c0_52 = arith.constant 0 : index
    %c0_53 = arith.constant 0 : index
    %121 = vector.load %arg12[%c0_52, %c0_53] : memref<128x1xf32, #tpu.memory_space<vmem>>, vector<128x1xf32>
    %122 = vector.broadcast %121 : vector<128x1xf32> to vector<128x256xf32>
    %123 = arith.addf %120, %122 : vector<128x256xf32>
    %c0_54 = arith.constant 0 : index
    %c0_55 = arith.constant 0 : index
    %c0_56 = arith.constant 0 : index
    %124 = vector.load %arg3[%c0_54, %c0_55, %c0_56] : memref<1x128x256xf32, #tpu.memory_space<vmem>>, vector<1x128x256xf32>
    %125 = vector.shape_cast %124 : vector<1x128x256xf32> to vector<128x256xf32>
    %126 = arith.addf %123, %125 : vector<128x256xf32>
    %c0_57 = arith.constant 0 : index
    %c0_58 = arith.constant 0 : index
    %c0_59 = arith.constant 0 : index
    %127 = vector.load %arg13[%c0_57, %c0_58, %c0_59] : memref<1x128x256xf32, #tpu.memory_space<vmem>>, vector<1x128x256xf32>
    %128 = vector.shape_cast %127 : vector<1x128x256xf32> to vector<128x256xf32>
    %129 = vector.shape_cast %126 : vector<128x256xf32> to vector<1x128x256xf32>
    tpu.vector_store %arg13[%c0_57, %c0_58, %c0_59], %129 {strides = array<i32>} : memref<1x128x256xf32, #tpu.memory_space<vmem>>, vector<1x128x256xf32>,
    return
  }
  func.func @transform_0(%arg0: i32, %arg1: i32) -> (i32, i32, i32) {
    %c2_i32 = arith.constant 2 : i32
    %0 = arith.muli %arg1, %c2_i32 : i32
    %c1_i32 = arith.constant 1 : i32
    %1 = arith.subi %0, %c1_i32 : i32
    %c0_i32 = arith.constant 0 : i32
    %2 = arith.maxsi %1, %c0_i32 : i32
    %c0_i32_0 = arith.constant 0 : i32
    %c0_i32_1 = arith.constant 0 : i32
    return %arg0, %c0_i32_0, %2 : i32, i32, i32
  }
  func.func @transform_1(%arg0: i32, %arg1: i32) -> (i32, i32, i32) {
    %c0_i32 = arith.constant 0 : i32
    %c0_i32_0 = arith.constant 0 : i32
    return %arg0, %c0_i32, %arg1 : i32, i32, i32
  }
  func.func @transform_2(%arg0: i32, %arg1: i32) -> (i32, i32, i32) {
    %c1_i32 = arith.constant 1 : i32
    %0 = arith.addi %arg1, %c1_i32 : i32
    %c2_i32 = arith.constant 2 : i32
    %1 = arith.muli %0, %c2_i32 : i32
    %c7_i32 = arith.constant 7 : i32
    %2 = arith.minsi %1, %c7_i32 : i32
    %c0_i32 = arith.constant 0 : i32
    %c0_i32_0 = arith.constant 0 : i32
    return %arg0, %c0_i32, %2 : i32, i32, i32
  }
  func.func @transform_3(%arg0: i32, %arg1: i32) -> (i32, i32) {
    %c0_i32 = arith.constant 0 : i32
    %c0_i32_0 = arith.constant 0 : i32
    %c0_i32_1 = arith.constant 0 : i32
    return %c0_i32, %c0_i32_0 : i32, i32
  }
  func.func @transform_4(%arg0: i32, %arg1: i32) -> (i32, i32) {
    %c0_i32 = arith.constant 0 : i32
    %c0_i32_0 = arith.constant 0 : i32
    %c0_i32_1 = arith.constant 0 : i32
    return %c0_i32, %c0_i32_0 : i32, i32
  }
  func.func @transform_5(%arg0: i32, %arg1: i32) -> (i32, i32) {
    %c0_i32 = arith.constant 0 : i32
    %c0_i32_0 = arith.constant 0 : i32
    %c0_i32_1 = arith.constant 0 : i32
    return %c0_i32, %c0_i32_0 : i32, i32
  }
  func.func @transform_6(%arg0: i32, %arg1: i32) -> (i32, i32) {
    %c0_i32 = arith.constant 0 : i32
    %c0_i32_0 = arith.constant 0 : i32
    %c0_i32_1 = arith.constant 0 : i32
    return %c0_i32, %c0_i32_0 : i32, i32
  }
  func.func @transform_7(%arg0: i32, %arg1: i32) -> (i32, i32, i32) {
    %c0_i32 = arith.constant 0 : i32
    %c0_i32_0 = arith.constant 0 : i32
    %c0_i32_1 = arith.constant 0 : i32
    %c0_i32_2 = arith.constant 0 : i32
    return %c0_i32, %c0_i32_0, %c0_i32_1 : i32, i32, i32
  }
  func.func @transform_8(%arg0: i32, %arg1: i32) -> (i32, i32) {
    %c0_i32 = arith.constant 0 : i32
    %c0_i32_0 = arith.constant 0 : i32
    %c0_i32_1 = arith.constant 0 : i32
    return %c0_i32, %c0_i32_0 : i32, i32
  }
  func.func @transform_9(%arg0: i32, %arg1: i32) -> (i32, i32) {
    %c0_i32 = arith.constant 0 : i32
    %c0_i32_0 = arith.constant 0 : i32
    %c0_i32_1 = arith.constant 0 : i32
    return %c0_i32, %c0_i32_0 : i32, i32
  }
  func.func @transform_10(%arg0: i32, %arg1: i32) -> (i32, i32) {
    %c0_i32 = arith.constant 0 : i32
    %c0_i32_0 = arith.constant 0 : i32
    %c0_i32_1 = arith.constant 0 : i32
    return %c0_i32, %c0_i32_0 : i32, i32
  }
  func.func @transform_11(%arg0: i32, %arg1: i32) -> (i32, i32, i32) {
    %c0_i32 = arith.constant 0 : i32
    %c0_i32_0 = arith.constant 0 : i32
    return %arg0, %c0_i32, %arg1 : i32, i32, i32
  }
}

</mosaic_0001>

<llo_original>
// kernel: conv_module_forward.1
$region0: #{conv_module_forward.1}
  #allocation0 [shape = 'u32[]', space=smem, size = 0x4, offset = 0x4, fixed_abs, tag = 'smem constant byte address 0x4 - core index']
  #allocation1 [shape = 'u32[144,128]{1,0:T(1,128)}', space=vmem, size = 0x12000, scoped, tag = 'internal scratch']
  %s0 = inlined_call_operand.vmem [shape: f32[2,128,1024], index: 0, kind: input, shape index: {}, may-alias: {0,1,2}]
  %s1 = inlined_call_operand.vmem [shape: f32[2,128,1024], index: 1, kind: input, shape index: {}, may-alias: {0,1,2}]
  %s2 = inlined_call_operand.vmem [shape: f32[2,128,1024], index: 2, kind: input, shape index: {}, may-alias: {0,1,2}]
  %s3 = inlined_call_operand.vmem [shape: f32[128,1], index: 3, kind: input, shape index: {}]
  %s4 = inlined_call_operand.vmem [shape: f32[128,1], index: 4, kind: input, shape index: {}]
  %s5 = inlined_call_operand.vmem [shape: bf16[256,128], index: 5, kind: input, shape index: {}]
  %s6 = inlined_call_operand.vmem [shape: f32[256,1], index: 6, kind: input, shape index: {}]
  %s7 = inlined_call_operand.vmem [shape: bf16[7,128,128], index: 7, kind: input, shape index: {}]
  %s8 = inlined_call_operand.vmem [shape: f32[128,1], index: 8, kind: input, shape index: {}]
  %s9 = inlined_call_operand.vmem [shape: bf16[128,128], index: 9, kind: input, shape index: {}]
  %s10 = inlined_call_operand.vmem [shape: f32[128,1], index: 10, kind: input, shape index: {}]
  %s11 = inlined_call_operand.hbm [shape: f32[2,128,1024], index: 11, kind: output, shape index: {}]
  %s12 = sld [smem:[#allocation0]]
  $region176: #{conv_module_forward.1} parent=0
    _
  %s14 = ssub.s32 1, %s12
  %s15 = scalar_select 0, %s14, %s12
  $region1: #{conv_module_forward.1} parent=0
    #allocation2 [shape = 'u8[131072]{0}', space=vmem, size = 0x20000, scoped, tag = 'input window, operand 0']
    #allocation3 [shape = 'u8[262144]{0}', space=vmem, size = 0x40000, scoped, tag = 'input window, operand 1']
    #allocation4 [shape = 'u8[131072]{0}', space=vmem, size = 0x20000, scoped, tag = 'input window, operand 2']
    #allocation5 [shape = 'u8[262144]{0}', space=vmem, size = 0x40000, scoped, tag = 'output window, operand 0']
    #allocation6 [shape = 's32[2]{0}', space=sflag, size = 0x8, scoped, tag = 'scoped memory for conv_module_forward.1']
    %16 = vsyncpa [#allocation6], 0
    %s17 = scalar_lea.sflag [#allocation6], 1
    %18 = vsyncpa %s17, 0
    loop: start=0, step=1, limit=10
    $region2: #{conv_module_forward.1} parent=1 // loop_pre_header
      _
    $region3: #{conv_module_forward.1} parent=1 // loop_header
      %s20 = sphi 0, %s24
      %p21 = scmp.ge.s32.totalorder %s20, 10
      %s27 = sphi 0, %s39
      %s28 = sphi 0, %s35
      %s29 = sphi 0, %s27
      %s30 = sphi 0, %s28
      %s31 = sphi 0, %s29
      %s32 = sphi 0, %s30
      %s52 = sphi 0, %s54
      %s55 = sphi 0, %s52
      %s56 = sphi 0, %s55
      %s72 = sphi 0, %s56
      %s80 = sphi 0, %s82
      %s83 = sphi 0, %s80
      %s84 = sphi 0, %s83
      %s100 = sphi 0, %s84
      %s116 = sphi 0, %s118
      %s119 = sphi 0, %s116
      %s120 = sphi 0, %s119
      %s136 = sphi 0, %s120
      %s140 = sphi 0, %s140
      %s142 = sphi 0, %s140
      %s143 = sphi 0, %s142
      %s157 = sphi 0, %s143
      %s161 = sphi 0, %s161
      %s163 = sphi 0, %s161
      %s164 = sphi 0, %s163
      %s178 = sphi 0, %s164
      %s182 = sphi 0, %s182
      %s184 = sphi 0, %s182
      %s185 = sphi 0, %s184
      %s199 = sphi 0, %s185
      %s203 = sphi 0, %s203
      %s205 = sphi 0, %s203
      %s206 = sphi 0, %s205
      %s220 = sphi 0, %s206
      %s224 = sphi 0, %s224
      %s226 = sphi 0, %s224
      %s227 = sphi 0, %s226
      %s241 = sphi 0, %s227
      %s245 = sphi 0, %s245
      %s247 = sphi 0, %s245
      %s248 = sphi 0, %s247
      %s262 = sphi 0, %s248
      %s266 = sphi 0, %s266
      %s268 = sphi 0, %s266
      %s269 = sphi 0, %s268
      %s283 = sphi 0, %s269
      %s287 = sphi 0, %s287
      %s289 = sphi 0, %s287
      %s290 = sphi 0, %s289
      %s304 = sphi 0, %s290
      %s312 = sphi 0, %s314
      %s315 = sphi 0, %s312
      %s316 = sphi 0, %s315
      %s332 = sphi 0, %s316
    $region4: #{conv_module_forward.1} parent=1 // loop_header_branch
      %23 = sbr.rel (%p21) target = $region8
    $region5: #{conv_module_forward.1} parent=1 // loop_body
      %s25 = ssub.s32 %s20, 1
      %s26 = ssub.s32 %s20, 2
      %s33 = sadd.s32 1, %s28
      %p34 = scmp.ge.s32.totalorder %s33, 4
      %s35 = scalar_select %p34, 0, %s33
      %s36 = sadd.s32 1, %s27
      %s37 = scalar_select %p34, %s36, %s27
      %p38 = scmp.ge.s32.totalorder %s37, 2
      %s39 = scalar_select %p38, 0, %s37
      %s40 = smul.u32 %s28, 2
      %s41 = ssub.s32 %s40, 1
      %p42 = scmp.gt.s32.totalorder %s41, 0
      %s43 = scalar_select %p42, %s41, 0
      %s44 = smul.u32 %s35, 2
      %s45 = ssub.s32 %s44, 1
      %p46 = scmp.gt.s32.totalorder %s45, 0
      %s47 = scalar_select %p46, %s45, 0
      %s48 = ssub.s32 %s27, %s39
      %s49 = ssub.s32 %s43, %s47
      %s50 = sor.u32 %s48, %s49
      %p51 = scmp.eq.s32.totalorder %s50, 0
      %s53 = sadd.s32 %s52, 1
      %s54 = scalar_select %p51, %s52, %s53
      %p57 = pneg %p51
      %p58 = scmp.eq.s32.totalorder %s20, 7
      %p59 = por %p57, %p58
      %p60 = scmp.ne.s32.totalorder %s52, %s55
      %p61 = scmp.eq.s32.totalorder %s20, 0
      %p62 = por %p60, %p61
      %p63 = scmp.ne.s32.totalorder %s52, %s55
      %p64 = scmp.eq.s32.totalorder %s25, 7
      %p65 = por %p63, %p64
      %p66 = scmp.ne.s32.totalorder %s55, %s56
      %p67 = scmp.eq.s32.totalorder %s25, 0
      %p68 = por %p66, %p67
      %p69 = scmp.ne.s32.totalorder %s55, %s56
      %p70 = scmp.eq.s32.totalorder %s26, 7
      %p71 = por %p69, %p70
      %p73 = scmp.ne.s32.totalorder %s56, %s72
      %p74 = scmp.eq.s32.totalorder %s26, 0
      %p75 = por %p73, %p74
      %s76 = ssub.s32 %s27, %s39
      %s77 = ssub.s32 %s28, %s35
      %s78 = sor.u32 %s76, %s77
      %p79 = scmp.eq.s32.totalorder %s78, 0
      %s81 = sadd.s32 %s80, 1
      %s82 = scalar_select %p79, %s80, %s81
      %p85 = pneg %p79
      %p86 = scmp.eq.s32.totalorder %s20, 7
      %p87 = por %p85, %p86
      %p88 = scmp.ne.s32.totalorder %s80, %s83
      %p89 = scmp.eq.s32.totalorder %s20, 0
      %p90 = por %p88, %p89
      %p91 = scmp.ne.s32.totalorder %s80, %s83
      %p92 = scmp.eq.s32.totalorder %s25, 7
      %p93 = por %p91, %p92
      %p94 = scmp.ne.s32.totalorder %s83, %s84
      %p95 = scmp.eq.s32.totalorder %s25, 0
      %p96 = por %p94, %p95
      %p97 = scmp.ne.s32.totalorder %s83, %s84
      %p98 = scmp.eq.s32.totalorder %s26, 7
      %p99 = por %p97, %p98
      %p101 = scmp.ne.s32.totalorder %s84, %s100
      %p102 = scmp.eq.s32.totalorder %s26, 0
      %p103 = por %p101, %p102
      %s104 = sadd.s32 %s28, 1
      %s105 = smul.u32 %s104, 2
      %p106 = scmp.lt.s32.totalorder %s105, 7
      %s107 = scalar_select %p106, %s105, 7
      %s108 = sadd.s32 %s35, 1
      %s109 = smul.u32 %s108, 2
      %p110 = scmp.lt.s32.totalorder %s109, 7
      %s111 = scalar_select %p110, %s109, 7
      %s112 = ssub.s32 %s27, %s39
      %s113 = ssub.s32 %s107, %s111
      %s114 = sor.u32 %s112, %s113
      %p115 = scmp.eq.s32.totalorder %s114, 0
      %s117 = sadd.s32 %s116, 1
      %s118 = scalar_select %p115, %s116, %s117
      %p121 = pneg %p115
      %p122 = scmp.eq.s32.totalorder %s20, 7
      %p123 = por %p121, %p122
      %p124 = scmp.ne.s32.totalorder %s116, %s119
      %p125 = scmp.eq.s32.totalorder %s20, 0
      %p126 = por %p124, %p125
      %p127 = scmp.ne.s32.totalorder %s116, %s119
      %p128 = scmp.eq.s32.totalorder %s25, 7
      %p129 = por %p127, %p128
      %p130 = scmp.ne.s32.totalorder %s119, %s120
      %p131 = scmp.eq.s32.totalorder %s25, 0
      %p132 = por %p130, %p131
      %p133 = scmp.ne.s32.totalorder %s119, %s120
      %p134 = scmp.eq.s32.totalorder %s26, 7
      %p135 = por %p133, %p134
      %p137 = scmp.ne.s32.totalorder %s120, %s136
      %p138 = scmp.eq.s32.totalorder %s26, 0
      %p139 = por %p137, %p138
      %s141 = sadd.s32 %s140, 1
      %p144 = scmp.eq.s32.totalorder %s20, 7
      %p145 = scmp.ne.s32.totalorder %s140, %s142
      %p146 = scmp.eq.s32.totalorder %s20, 0
      %p147 = por %p145, %p146
      %p148 = scmp.ne.s32.totalorder %s140, %s142
      %p149 = scmp.eq.s32.totalorder %s25, 7
      %p150 = por %p148, %p149
      %p151 = scmp.ne.s32.totalorder %s142, %s143
      %p152 = scmp.eq.s32.totalorder %s25, 0
      %p153 = por %p151, %p152
      %p154 = scmp.ne.s32.totalorder %s142, %s143
      %p155 = scmp.eq.s32.totalorder %s26, 7
      %p156 = por %p154, %p155
      %p158 = scmp.ne.s32.totalorder %s143, %s157
      %p159 = scmp.eq.s32.totalorder %s26, 0
      %p160 = por %p158, %p159
      %s162 = sadd.s32 %s161, 1
      %p165 = scmp.eq.s32.totalorder %s20, 7
      %p166 = scmp.ne.s32.totalorder %s161, %s163
      %p167 = scmp.eq.s32.totalorder %s20, 0
      %p168 = por %p166, %p167
      %p169 = scmp.ne.s32.totalorder %s161, %s163
      %p170 = scmp.eq.s32.totalorder %s25, 7
      %p171 = por %p169, %p170
      %p172 = scmp.ne.s32.totalorder %s163, %s164
      %p173 = scmp.eq.s32.totalorder %s25, 0
      %p174 = por %p172, %p173
      %p175 = scmp.ne.s32.totalorder %s163, %s164
      %p176 = scmp.eq.s32.totalorder %s26, 7
      %p177 = por %p175, %p176
      %p179 = scmp.ne.s32.totalorder %s164, %s178
      %p180 = scmp.eq.s32.totalorder %s26, 0
      %p181 = por %p179, %p180
      %s183 = sadd.s32 %s182, 1
      %p186 = scmp.eq.s32.totalorder %s20, 7
      %p187 = scmp.ne.s32.totalorder %s182, %s184
      %p188 = scmp.eq.s32.totalorder %s20, 0
      %p189 = por %p187, %p188
      %p190 = scmp.ne.s32.totalorder %s182, %s184
      %p191 = scmp.eq.s32.totalorder %s25, 7
      %p192 = por %p190, %p191
      %p193 = scmp.ne.s32.totalorder %s184, %s185
      %p194 = scmp.eq.s32.totalorder %s25, 0
      %p195 = por %p193, %p194
      %p196 = scmp.ne.s32.totalorder %s184, %s185
      %p197 = scmp.eq.s32.totalorder %s26, 7
      %p198 = por %p196, %p197
      %p200 = scmp.ne.s32.totalorder %s185, %s199
      %p201 = scmp.eq.s32.totalorder %s26, 0
      %p202 = por %p200, %p201
      %s204 = sadd.s32 %s203, 1
      %p207 = scmp.eq.s32.totalorder %s20, 7
      %p208 = scmp.ne.s32.totalorder %s203, %s205
      %p209 = scmp.eq.s32.totalorder %s20, 0
      %p210 = por %p208, %p209
      %p211 = scmp.ne.s32.totalorder %s203, %s205
      %p212 = scmp.eq.s32.totalorder %s25, 7
      %p213 = por %p211, %p212
      %p214 = scmp.ne.s32.totalorder %s205, %s206
      %p215 = scmp.eq.s32.totalorder %s25, 0
      %p216 = por %p214, %p215
      %p217 = scmp.ne.s32.totalorder %s205, %s206
      %p218 = scmp.eq.s32.totalorder %s26, 7
      %p219 = por %p217, %p218
      %p221 = scmp.ne.s32.totalorder %s206, %s220
      %p222 = scmp.eq.s32.totalorder %s26, 0
      %p223 = por %p221, %p222
      %s225 = sadd.s32 %s224, 1
      %p228 = scmp.eq.s32.totalorder %s20, 7
      %p229 = scmp.ne.s32.totalorder %s224, %s226
      %p230 = scmp.eq.s32.totalorder %s20, 0
      %p231 = por %p229, %p230
      %p232 = scmp.ne.s32.totalorder %s224, %s226
      %p233 = scmp.eq.s32.totalorder %s25, 7
      %p234 = por %p232, %p233
      %p235 = scmp.ne.s32.totalorder %s226, %s227
      %p236 = scmp.eq.s32.totalorder %s25, 0
      %p237 = por %p235, %p236
      %p238 = scmp.ne.s32.totalorder %s226, %s227
      %p239 = scmp.eq.s32.totalorder %s26, 7
      %p240 = por %p238, %p239
      %p242 = scmp.ne.s32.totalorder %s227, %s241
      %p243 = scmp.eq.s32.totalorder %s26, 0
      %p244 = por %p242, %p243
      %s246 = sadd.s32 %s245, 1
      %p249 = scmp.eq.s32.totalorder %s20, 7
      %p250 = scmp.ne.s32.totalorder %s245, %s247
      %p251 = scmp.eq.s32.totalorder %s20, 0
      %p252 = por %p250, %p251
      %p253 = scmp.ne.s32.totalorder %s245, %s247
      %p254 = scmp.eq.s32.totalorder %s25, 7
      %p255 = por %p253, %p254
      %p256 = scmp.ne.s32.totalorder %s247, %s248
      %p257 = scmp.eq.s32.totalorder %s25, 0
      %p258 = por %p256, %p257
      %p259 = scmp.ne.s32.totalorder %s247, %s248
      %p260 = scmp.eq.s32.totalorder %s26, 7
      %p261 = por %p259, %p260
      %p263 = scmp.ne.s32.totalorder %s248, %s262
      %p264 = scmp.eq.s32.totalorder %s26, 0
      %p265 = por %p263, %p264
      %s267 = sadd.s32 %s266, 1
      %p270 = scmp.eq.s32.totalorder %s20, 7
      %p271 = scmp.ne.s32.totalorder %s266, %s268
      %p272 = scmp.eq.s32.totalorder %s20, 0
      %p273 = por %p271, %p272
      %p274 = scmp.ne.s32.totalorder %s266, %s268
      %p275 = scmp.eq.s32.totalorder %s25, 7
      %p276 = por %p274, %p275
      %p277 = scmp.ne.s32.totalorder %s268, %s269
      %p278 = scmp.eq.s32.totalorder %s25, 0
      %p279 = por %p277, %p278
      %p280 = scmp.ne.s32.totalorder %s268, %s269
      %p281 = scmp.eq.s32.totalorder %s26, 7
      %p282 = por %p280, %p281
      %p284 = scmp.ne.s32.totalorder %s269, %s283
      %p285 = scmp.eq.s32.totalorder %s26, 0
      %p286 = por %p284, %p285
      %s288 = sadd.s32 %s287, 1
      %p291 = scmp.eq.s32.totalorder %s20, 7
      %p292 = scmp.ne.s32.totalorder %s287, %s289
      %p293 = scmp.eq.s32.totalorder %s20, 0
      %p294 = por %p292, %p293
      %p295 = scmp.ne.s32.totalorder %s287, %s289
      %p296 = scmp.eq.s32.totalorder %s25, 7
      %p297 = por %p295, %p296
      %p298 = scmp.ne.s32.totalorder %s289, %s290
      %p299 = scmp.eq.s32.totalorder %s25, 0
      %p300 = por %p298, %p299
      %p301 = scmp.ne.s32.totalorder %s289, %s290
      %p302 = scmp.eq.s32.totalorder %s26, 7
      %p303 = por %p301, %p302
      %p305 = scmp.ne.s32.totalorder %s290, %s304
      %p306 = scmp.eq.s32.totalorder %s26, 0
      %p307 = por %p305, %p306
      %s308 = ssub.s32 %s27, %s39
      %s309 = ssub.s32 %s28, %s35
      %s310 = sor.u32 %s308, %s309
      %p311 = scmp.eq.s32.totalorder %s310, 0
      %s313 = sadd.s32 %s312, 1
      %s314 = scalar_select %p311, %s312, %s313
      %p317 = pneg %p311
      %p318 = scmp.eq.s32.totalorder %s20, 7
      %p319 = por %p317, %p318
      %p320 = scmp.ne.s32.totalorder %s312, %s315
      %p321 = scmp.eq.s32.totalorder %s20, 0
      %p322 = por %p320, %p321
      %p323 = scmp.ne.s32.totalorder %s312, %s315
      %p324 = scmp.eq.s32.totalorder %s25, 7
      %p325 = por %p323, %p324
      %p326 = scmp.ne.s32.totalorder %s315, %s316
      %p327 = scmp.eq.s32.totalorder %s25, 0
      %p328 = por %p326, %p327
      %p329 = scmp.ne.s32.totalorder %s315, %s316
      %p330 = scmp.eq.s32.totalorder %s26, 7
      %p331 = por %p329, %p330
      %p333 = scmp.ne.s32.totalorder %s316, %s332
      %p334 = scmp.eq.s32.totalorder %s26, 0
      %p335 = por %p333, %p334
      %p336 = scmp.le.s32.totalorder 1, %s20
      %p337 = scmp.lt.s32.totalorder %s20, 9
      %p338 = pnand %p336, %p337
      %p339 = pneg %p338
      // Predicated region
      $region9: #{conv_module_forward.1} parent=5 // pred_check
        _
      $region10: #{conv_module_forward.1} parent=5 // pred_check_branch
        %341 = sbr.rel (%p338) target = $region12
      $region11: #{conv_module_forward.1} parent=5 // pred_region
        %s342 = ssub.s32 %s20, 1
        // Predicated region
        $region13: #{conv_module_forward.1} parent=11 // pred_check
          %p343 = pneg %p153
        $region14: #{conv_module_forward.1} parent=11 // pred_check_branch
          %345 = sbr.rel (%p343) target = $region16
        $region15: #{conv_module_forward.1} parent=11 // pred_region
          _
        $region16: #{conv_module_forward.1} parent=11 // pred_fallthru
          _
        // Predicated region
        $region17: #{conv_module_forward.1} parent=11 // pred_check
          %p346 = pneg %p174
        $region18: #{conv_module_forward.1} parent=11 // pred_check_branch
          %348 = sbr.rel (%p346) target = $region20
        $region19: #{conv_module_forward.1} parent=11 // pred_region
          _
        $region20: #{conv_module_forward.1} parent=11 // pred_fallthru
          _
        // Predicated region
        $region21: #{conv_module_forward.1} parent=11 // pred_check
          %p349 = pneg %p195
        $region22: #{conv_module_forward.1} parent=11 // pred_check_branch
          %351 = sbr.rel (%p349) target = $region24
        $region23: #{conv_module_forward.1} parent=11 // pred_region
          _
        $region24: #{conv_module_forward.1} parent=11 // pred_fallthru
          _
        // Predicated region
        $region25: #{conv_module_forward.1} parent=11 // pred_check
          %p352 = pneg %p216
        $region26: #{conv_module_forward.1} parent=11 // pred_check_branch
          %354 = sbr.rel (%p352) target = $region28
        $region27: #{conv_module_forward.1} parent=11 // pred_region
          _
        $region28: #{conv_module_forward.1} parent=11 // pred_fallthru
          _
        // Predicated region
        $region29: #{conv_module_forward.1} parent=11 // pred_check
          %p355 = pneg %p237
        $region30: #{conv_module_forward.1} parent=11 // pred_check_branch
          %357 = sbr.rel (%p355) target = $region32
        $region31: #{conv_module_forward.1} parent=11 // pred_region
          _
        $region32: #{conv_module_forward.1} parent=11 // pred_fallthru
          _
        // Predicated region
        $region33: #{conv_module_forward.1} parent=11 // pred_check
          %p358 = pneg %p258
        $region34: #{conv_module_forward.1} parent=11 // pred_check_branch
          %360 = sbr.rel (%p358) target = $region36
        $region35: #{conv_module_forward.1} parent=11 // pred_region
          _
        $region36: #{conv_module_forward.1} parent=11 // pred_fallthru
          _
        // Predicated region
        $region37: #{conv_module_forward.1} parent=11 // pred_check
          %p361 = pneg %p279
        $region38: #{conv_module_forward.1} parent=11 // pred_check_branch
          %363 = sbr.rel (%p361) target = $region40
        $region39: #{conv_module_forward.1} parent=11 // pred_region
          _
        $region40: #{conv_module_forward.1} parent=11 // pred_fallthru
          _
        // Predicated region
        $region41: #{conv_module_forward.1} parent=11 // pred_check
          %p364 = pneg %p300
        $region42: #{conv_module_forward.1} parent=11 // pred_check_branch
          %366 = sbr.rel (%p364) target = $region44
        $region43: #{conv_module_forward.1} parent=11 // pred_region
          _
        $region44: #{conv_module_forward.1} parent=11 // pred_fallthru
          _
      $region12: #{conv_module_forward.1} parent=5 // pred_fallthru
        _
      %p367 = scmp.lt.s32.totalorder %s20, 8
      // Predicated region
      $region45: #{conv_module_forward.1} parent=5 // pred_check
        %p368 = pneg %p367
      $region46: #{conv_module_forward.1} parent=5 // pred_check_branch
        %370 = sbr.rel (%p368) target = $region48
      $region47: #{conv_module_forward.1} parent=5 // pred_region
        // Predicated region
        $region49: #{conv_module_forward.1} parent=47 // pred_check
          %p371 = pneg %p62
        $region50: #{conv_module_forward.1} parent=47 // pred_check_branch
          %373 = sbr.rel (%p371) target = $region52
        $region51: #{conv_module_forward.1} parent=47 // pred_region
          %s374 = sand.u32 %s52, 1
          %s375 = sand.u32 %s52, 1
          %s376 = smul.addr %s375, 128
          %s377 = scalar_lea.vmem [#allocation2], %s376
          %s378 = smul.u32 %s28, 2
          %s379 = ssub.s32 %s378, 1
          %p380 = scmp.gt.s32.totalorder %s379, 0
          %s381 = scalar_select %p380, %s379, 0
          %s382 = smul.addr %s27, 128
          %s383 = sadd.s32 %s381, %s382
          %s384 = smul.addr %s383, 8
          %s385 = scalar_lea.vmem %s0, %s384
          // Predicated region
          $region53: #{conv_module_forward.1} parent=51 // pred_check
            _
          $region54: #{conv_module_forward.1} parent=51 // pred_check_branch
            %387 = sbr.rel (0) target = $region56
          $region55: #{conv_module_forward.1} parent=51 // pred_region
            // Predicated region
            $region57: #{conv_module_forward.1} parent=55 // pred_check
              _
            $region58: #{conv_module_forward.1} parent=55 // pred_check_branch
              %389 = sbr.rel (0) target = $region60
            $region59: #{conv_module_forward.1} parent=55 // pred_region
              // Predicated region
              $region72: #{conv_module_forward.1} parent=59 // pred_check
                _
              $region73: #{conv_module_forward.1} parent=59 // pred_check_branch
                %434 = sbr.rel (0) target = $region75
              $region74: #{conv_module_forward.1} parent=59 // pred_region
                loop: start=0, step=1, limit=1
                $region76: #{conv_module_forward.1} parent=74 // loop_pre_header
                  _
                $region77: #{conv_module_forward.1} parent=74 // loop_header
                  %s436 = sphi 0, %s440
                  %p437 = scmp.ge.s32.totalorder %s436, 1
                  %s441 = sphi %s385, %s385
                  %s442 = sphi %s377, %s377
                $region78: #{conv_module_forward.1} parent=74 // loop_header_branch
                  %439 = sbr.rel (%p437) target = $region82
                $region79: #{conv_module_forward.1} parent=74 // loop_body
                  %v443 = vld [vmem:[%s441] sm:$0xff]
                  %444 = vst [vmem:[%s442] sm:$0xff] %v443
                  %v445 = vld [vmem:[%s441 + $0x40] sm:$0xff]
                  %446 = vst [vmem:[%s442 + $0x8] sm:$0xff] %v445
                  %v447 = vld [vmem:[%s441 + $0x80] sm:$0xff]
                  %448 = vst [vmem:[%s442 + $0x10] sm:$0xff] %v447
                  %v449 = vld [vmem:[%s441 + $0xc0] sm:$0xff]
                  %450 = vst [vmem:[%s442 + $0x18] sm:$0xff] %v449
                  %v451 = vld [vmem:[%s441 + $0x100] sm:$0xff]
                  %452 = vst [vmem:[%s442 + $0x20] sm:$0xff] %v451
                  %v453 = vld [vmem:[%s441 + $0x140] sm:$0xff]
                  %454 = vst [vmem:[%s442 + $0x28] sm:$0xff] %v453
                  %v455 = vld [vmem:[%s441 + $0x180] sm:$0xff]
                  %456 = vst [vmem:[%s442 + $0x30] sm:$0xff] %v455
                  %v457 = vld [vmem:[%s441 + $0x1c0] sm:$0xff]
                  %458 = vst [vmem:[%s442 + $0x38] sm:$0xff] %v457
                  %v459 = vld [vmem:[%s441 + $0x200] sm:$0xff]
                  %460 = vst [vmem:[%s442 + $0x40] sm:$0xff] %v459
                  %v461 = vld [vmem:[%s441 + $0x240] sm:$0xff]
                  %462 = vst [vmem:[%s442 + $0x48] sm:$0xff] %v461
                  %v463 = vld [vmem:[%s441 + $0x280] sm:$0xff]
                  %464 = vst [vmem:[%s442 + $0x50] sm:$0xff] %v463
                  %v465 = vld [vmem:[%s441 + $0x2c0] sm:$0xff]
                  %466 = vst [vmem:[%s442 + $0x58] sm:$0xff] %v465
                  %v467 = vld [vmem:[%s441 + $0x300] sm:$0xff]
                  %468 = vst [vmem:[%s442 + $0x60] sm:$0xff] %v467
                  %v469 = vld [vmem:[%s441 + $0x340] sm:$0xff]
                  %470 = vst [vmem:[%s442 + $0x68] sm:$0xff] %v469
                  %v471 = vld [vmem:[%s441 + $0x380] sm:$0xff]
                  %472 = vst [vmem:[%s442 + $0x70] sm:$0xff] %v471
                  %v473 = vld [vmem:[%s441 + $0x3c0] sm:$0xff]
                  %474 = vst [vmem:[%s442 + $0x78] sm:$0xff] %v473
                $region80: #{conv_module_forward.1} parent=74 // loop_footer
                  %s440 = sadd.s32 1, %s436
                $region81: #{conv_module_forward.1} parent=74 // loop_footer_branch
                  %435 = sbr.rel target = $region77
                $region82: #{conv_module_forward.1} parent=74 // loop_exit
                  _
              $region75: #{conv_module_forward.1} parent=59 // pred_fallthru
                _
              // Predicated region
              $region83: #{conv_module_forward.1} parent=59 // pred_check
                _
              $region84: #{conv_module_forward.1} parent=59 // pred_check_branch
                %476 = sbr.rel target = $region86
              $region85: #{conv_module_forward.1} parent=59 // pred_region
                _
              $region86: #{conv_module_forward.1} parent=59 // pred_fallthru
                _
            $region60: #{conv_module_forward.1} parent=55 // pred_fallthru
              _
            // Predicated region
            $region61: #{conv_module_forward.1} parent=55 // pred_check
              _
            $region62: #{conv_module_forward.1} parent=55 // pred_check_branch
              %391 = sbr.rel target = $region64
            $region63: #{conv_module_forward.1} parent=55 // pred_region
              loop: start=0, step=1, limit=1
              $region65: #{conv_module_forward.1} parent=63 // loop_pre_header
                _
              $region66: #{conv_module_forward.1} parent=63 // loop_header
                %s394 = sphi 0, %s398
                %p395 = scmp.ge.s32.totalorder %s394, 1
                %s399 = sphi %s385, %s385
                %s400 = sphi %s377, %s377
              $region67: #{conv_module_forward.1} parent=63 // loop_header_branch
                %397 = sbr.rel (%p395) target = $region71
              $region68: #{conv_module_forward.1} parent=63 // loop_body
                %v401 = vld [vmem:[%s399] sm:$0xff]
                %402 = vst [vmem:[%s400] sm:$0xff] %v401
                %v403 = vld [vmem:[%s399 + $0x40] sm:$0xff]
                %404 = vst [vmem:[%s400 + $0x8] sm:$0xff] %v403
                %v405 = vld [vmem:[%s399 + $0x80] sm:$0xff]
                %406 = vst [vmem:[%s400 + $0x10] sm:$0xff] %v405
                %v407 = vld [vmem:[%s399 + $0xc0] sm:$0xff]
                %408 = vst [vmem:[%s400 + $0x18] sm:$0xff] %v407
                %v409 = vld [vmem:[%s399 + $0x100] sm:$0xff]
                %410 = vst [vmem:[%s400 + $0x20] sm:$0xff] %v409
                %v411 = vld [vmem:[%s399 + $0x140] sm:$0xff]
                %412 = vst [vmem:[%s400 + $0x28] sm:$0xff] %v411
                %v413 = vld [vmem:[%s399 + $0x180] sm:$0xff]
                %414 = vst [vmem:[%s400 + $0x30] sm:$0xff] %v413
                %v415 = vld [vmem:[%s399 + $0x1c0] sm:$0xff]
                %416 = vst [vmem:[%s400 + $0x38] sm:$0xff] %v415
                %v417 = vld [vmem:[%s399 + $0x200] sm:$0xff]
                %418 = vst [vmem:[%s400 + $0x40] sm:$0xff] %v417
                %v419 = vld [vmem:[%s399 + $0x240] sm:$0xff]
                %420 = vst [vmem:[%s400 + $0x48] sm:$0xff] %v419
                %v421 = vld [vmem:[%s399 + $0x280] sm:$0xff]
                %422 = vst [vmem:[%s400 + $0x50] sm:$0xff] %v421
                %v423 = vld [vmem:[%s399 + $0x2c0] sm:$0xff]
                %424 = vst [vmem:[%s400 + $0x58] sm:$0xff] %v423
                %v425 = vld [vmem:[%s399 + $0x300] sm:$0xff]
                %426 = vst [vmem:[%s400 + $0x60] sm:$0xff] %v425
                %v427 = vld [vmem:[%s399 + $0x340] sm:$0xff]
                %428 = vst [vmem:[%s400 + $0x68] sm:$0xff] %v427
                %v429 = vld [vmem:[%s399 + $0x380] sm:$0xff]
                %430 = vst [vmem:[%s400 + $0x70] sm:$0xff] %v429
                %v431 = vld [vmem:[%s399 + $0x3c0] sm:$0xff]
                %432 = vst [vmem:[%s400 + $0x78] sm:$0xff] %v431
              $region69: #{conv_module_forward.1} parent=63 // loop_footer
                %s398 = sadd.s32 1, %s394
              $region70: #{conv_module_forward.1} parent=63 // loop_footer_branch
                %393 = sbr.rel target = $region66
              $region71: #{conv_module_forward.1} parent=63 // loop_exit
                _
            $region64: #{conv_module_forward.1} parent=55 // pred_fallthru
              _
          $region56: #{conv_module_forward.1} parent=51 // pred_fallthru
            _
          %477 = vnop
        $region52: #{conv_module_forward.1} parent=47 // pred_fallthru
          _
        // Predicated region
        $region87: #{conv_module_forward.1} parent=47 // pred_check
          %p478 = pneg %p90
        $region88: #{conv_module_forward.1} parent=47 // pred_check_branch
          %480 = sbr.rel (%p478) target = $region90
        $region89: #{conv_module_forward.1} parent=47 // pred_region
          %s481 = sand.u32 %s80, 1
          %s482 = sand.u32 %s80, 1
          %s483 = smul.addr %s482, 256
          %s484 = scalar_lea.vmem [#allocation3], %s483
          %s485 = smul.u32 2, %s28
          %s486 = smul.addr %s27, 128
          %s487 = sadd.s32 %s485, %s486
          %s488 = smul.addr %s487, 8
          %s489 = scalar_lea.vmem %s1, %s488
          // Predicated region
          $region91: #{conv_module_forward.1} parent=89 // pred_check
            _
          $region92: #{conv_module_forward.1} parent=89 // pred_check_branch
            %491 = sbr.rel (0) target = $region94
          $region93: #{conv_module_forward.1} parent=89 // pred_region
            // Predicated region
            $region95: #{conv_module_forward.1} parent=93 // pred_check
              _
            $region96: #{conv_module_forward.1} parent=93 // pred_check_branch
              %493 = sbr.rel (0) target = $region98
            $region97: #{conv_module_forward.1} parent=93 // pred_region
              loop: start=0, step=1, limit=1
              $region99: #{conv_module_forward.1} parent=97 // loop_pre_header
                _
              $region100: #{conv_module_forward.1} parent=97 // loop_header
                %s495 = sphi 0, %s499
                %p496 = scmp.ge.s32.totalorder %s495, 1
                %s500 = sphi %s489, %s489
                %s501 = sphi %s484, %s484
              $region101: #{conv_module_forward.1} parent=97 // loop_header_branch
                %498 = sbr.rel (%p496) target = $region105
              $region102: #{conv_module_forward.1} parent=97 // loop_body
                %v502 = vld [vmem:[%s500] sm:$0xff]
                %503 = vst [vmem:[%s501] sm:$0xff] %v502
                %v504 = vld [vmem:[%s500 + $0x8] sm:$0xff]
                %505 = vst [vmem:[%s501 + $0x8] sm:$0xff] %v504
                %v506 = vld [vmem:[%s500 + $0x40] sm:$0xff]
                %507 = vst [vmem:[%s501 + $0x10] sm:$0xff] %v506
                %v508 = vld [vmem:[%s500 + $0x48] sm:$0xff]
                %509 = vst [vmem:[%s501 + $0x18] sm:$0xff] %v508
                %v510 = vld [vmem:[%s500 + $0x80] sm:$0xff]
                %511 = vst [vmem:[%s501 + $0x20] sm:$0xff] %v510
                %v512 = vld [vmem:[%s500 + $0x88] sm:$0xff]
                %513 = vst [vmem:[%s501 + $0x28] sm:$0xff] %v512
                %v514 = vld [vmem:[%s500 + $0xc0] sm:$0xff]
                %515 = vst [vmem:[%s501 + $0x30] sm:$0xff] %v514
                %v516 = vld [vmem:[%s500 + $0xc8] sm:$0xff]
                %517 = vst [vmem:[%s501 + $0x38] sm:$0xff] %v516
                %v518 = vld [vmem:[%s500 + $0x100] sm:$0xff]
                %519 = vst [vmem:[%s501 + $0x40] sm:$0xff] %v518
                %v520 = vld [vmem:[%s500 + $0x108] sm:$0xff]
                %521 = vst [vmem:[%s501 + $0x48] sm:$0xff] %v520
                %v522 = vld [vmem:[%s500 + $0x140] sm:$0xff]
                %523 = vst [vmem:[%s501 + $0x50] sm:$0xff] %v522
                %v524 = vld [vmem:[%s500 + $0x148] sm:$0xff]
                %525 = vst [vmem:[%s501 + $0x58] sm:$0xff] %v524
                %v526 = vld [vmem:[%s500 + $0x180] sm:$0xff]
                %527 = vst [vmem:[%s501 + $0x60] sm:$0xff] %v526
                %v528 = vld [vmem:[%s500 + $0x188] sm:$0xff]
                %529 = vst [vmem:[%s501 + $0x68] sm:$0xff] %v528
                %v530 = vld [vmem:[%s500 + $0x1c0] sm:$0xff]
                %531 = vst [vmem:[%s501 + $0x70] sm:$0xff] %v530
                %v532 = vld [vmem:[%s500 + $0x1c8] sm:$0xff]
                %533 = vst [vmem:[%s501 + $0x78] sm:$0xff] %v532
                %v534 = vld [vmem:[%s500 + $0x200] sm:$0xff]
                %535 = vst [vmem:[%s501 + $0x80] sm:$0xff] %v534
                %v536 = vld [vmem:[%s500 + $0x208] sm:$0xff]
                %537 = vst [vmem:[%s501 + $0x88] sm:$0xff] %v536
                %v538 = vld [vmem:[%s500 + $0x240] sm:$0xff]
                %539 = vst [vmem:[%s501 + $0x90] sm:$0xff] %v538
                %v540 = vld [vmem:[%s500 + $0x248] sm:$0xff]
                %541 = vst [vmem:[%s501 + $0x98] sm:$0xff] %v540
                %v542 = vld [vmem:[%s500 + $0x280] sm:$0xff]
                %543 = vst [vmem:[%s501 + $0xa0] sm:$0xff] %v542
                %v544 = vld [vmem:[%s500 + $0x288] sm:$0xff]
                %545 = vst [vmem:[%s501 + $0xa8] sm:$0xff] %v544
                %v546 = vld [vmem:[%s500 + $0x2c0] sm:$0xff]
                %547 = vst [vmem:[%s501 + $0xb0] sm:$0xff] %v546
                %v548 = vld [vmem:[%s500 + $0x2c8] sm:$0xff]
                %549 = vst [vmem:[%s501 + $0xb8] sm:$0xff] %v548
                %v550 = vld [vmem:[%s500 + $0x300] sm:$0xff]
                %551 = vst [vmem:[%s501 + $0xc0] sm:$0xff] %v550
                %v552 = vld [vmem:[%s500 + $0x308] sm:$0xff]
                %553 = vst [vmem:[%s501 + $0xc8] sm:$0xff] %v552
                %v554 = vld [vmem:[%s500 + $0x340] sm:$0xff]
                %555 = vst [vmem:[%s501 + $0xd0] sm:$0xff] %v554
                %v556 = vld [vmem:[%s500 + $0x348] sm:$0xff]
                %557 = vst [vmem:[%s501 + $0xd8] sm:$0xff] %v556
                %v558 = vld [vmem:[%s500 + $0x380] sm:$0xff]
                %559 = vst [vmem:[%s501 + $0xe0] sm:$0xff] %v558
                %v560 = vld [vmem:[%s500 + $0x388] sm:$0xff]
                %561 = vst [vmem:[%s501 + $0xe8] sm:$0xff] %v560
                %v562 = vld [vmem:[%s500 + $0x3c0] sm:$0xff]
                %563 = vst [vmem:[%s501 + $0xf0] sm:$0xff] %v562
                %v564 = vld [vmem:[%s500 + $0x3c8] sm:$0xff]
                %565 = vst [vmem:[%s501 + $0xf8] sm:$0xff] %v564
              $region103: #{conv_module_forward.1} parent=97 // loop_footer
                %s499 = sadd.s32 1, %s495
              $region104: #{conv_module_forward.1} parent=97 // loop_footer_branch
                %494 = sbr.rel target = $region100
              $region105: #{conv_module_forward.1} parent=97 // loop_exit
                _
            $region98: #{conv_module_forward.1} parent=93 // pred_fallthru
              _
            // Predicated region
            $region106: #{conv_module_forward.1} parent=93 // pred_check
              _
            $region107: #{conv_module_forward.1} parent=93 // pred_check_branch
              %567 = sbr.rel target = $region109
            $region108: #{conv_module_forward.1} parent=93 // pred_region
              _
            $region109: #{conv_module_forward.1} parent=93 // pred_fallthru
              _
          $region94: #{conv_module_forward.1} parent=89 // pred_fallthru
            _
          %568 = vnop
        $region90: #{conv_module_forward.1} parent=47 // pred_fallthru
          _
        // Predicated region
        $region110: #{conv_module_forward.1} parent=47 // pred_check
          %p569 = pneg %p126
        $region111: #{conv_module_forward.1} parent=47 // pred_check_branch
          %571 = sbr.rel (%p569) target = $region113
        $region112: #{conv_module_forward.1} parent=47 // pred_region
          %s572 = sand.u32 %s116, 1
          %s573 = sand.u32 %s116, 1
          %s574 = smul.addr %s573, 128
          %s575 = scalar_lea.vmem [#allocation4], %s574
          %s576 = sadd.s32 %s28, 1
          %s577 = smul.u32 %s576, 2
          %p578 = scmp.lt.s32.totalorder %s577, 7
          %s579 = scalar_select %p578, %s577, 7
          %s580 = smul.addr %s27, 128
          %s581 = sadd.s32 %s579, %s580
          %s582 = smul.addr %s581, 8
          %s583 = scalar_lea.vmem %s2, %s582
          // Predicated region
          $region114: #{conv_module_forward.1} parent=112 // pred_check
            _
          $region115: #{conv_module_forward.1} parent=112 // pred_check_branch
            %585 = sbr.rel (0) target = $region117
          $region116: #{conv_module_forward.1} parent=112 // pred_region
            // Predicated region
            $region118: #{conv_module_forward.1} parent=116 // pred_check
              _
            $region119: #{conv_module_forward.1} parent=116 // pred_check_branch
              %587 = sbr.rel (0) target = $region121
            $region120: #{conv_module_forward.1} parent=116 // pred_region
              // Predicated region
              $region133: #{conv_module_forward.1} parent=120 // pred_check
                _
              $region134: #{conv_module_forward.1} parent=120 // pred_check_branch
                %632 = sbr.rel (0) target = $region136
              $region135: #{conv_module_forward.1} parent=120 // pred_region
                loop: start=0, step=1, limit=1
                $region137: #{conv_module_forward.1} parent=135 // loop_pre_header
                  _
                $region138: #{conv_module_forward.1} parent=135 // loop_header
                  %s634 = sphi 0, %s638
                  %p635 = scmp.ge.s32.totalorder %s634, 1
                  %s639 = sphi %s583, %s583
                  %s640 = sphi %s575, %s575
                $region139: #{conv_module_forward.1} parent=135 // loop_header_branch
                  %637 = sbr.rel (%p635) target = $region143
                $region140: #{conv_module_forward.1} parent=135 // loop_body
                  %v641 = vld [vmem:[%s639] sm:$0xff]
                  %642 = vst [vmem:[%s640] sm:$0xff] %v641
                  %v643 = vld [vmem:[%s639 + $0x40] sm:$0xff]
                  %644 = vst [vmem:[%s640 + $0x8] sm:$0xff] %v643
                  %v645 = vld [vmem:[%s639 + $0x80] sm:$0xff]
                  %646 = vst [vmem:[%s640 + $0x10] sm:$0xff] %v645
                  %v647 = vld [vmem:[%s639 + $0xc0] sm:$0xff]
                  %648 = vst [vmem:[%s640 + $0x18] sm:$0xff] %v647
                  %v649 = vld [vmem:[%s639 + $0x100] sm:$0xff]
                  %650 = vst [vmem:[%s640 + $0x20] sm:$0xff] %v649
                  %v651 = vld [vmem:[%s639 + $0x140] sm:$0xff]
                  %652 = vst [vmem:[%s640 + $0x28] sm:$0xff] %v651
                  %v653 = vld [vmem:[%s639 + $0x180] sm:$0xff]
                  %654 = vst [vmem:[%s640 + $0x30] sm:$0xff] %v653
                  %v655 = vld [vmem:[%s639 + $0x1c0] sm:$0xff]
                  %656 = vst [vmem:[%s640 + $0x38] sm:$0xff] %v655
                  %v657 = vld [vmem:[%s639 + $0x200] sm:$0xff]
                  %658 = vst [vmem:[%s640 + $0x40] sm:$0xff] %v657
                  %v659 = vld [vmem:[%s639 + $0x240] sm:$0xff]
                  %660 = vst [vmem:[%s640 + $0x48] sm:$0xff] %v659
                  %v661 = vld [vmem:[%s639 + $0x280] sm:$0xff]
                  %662 = vst [vmem:[%s640 + $0x50] sm:$0xff] %v661
                  %v663 = vld [vmem:[%s639 + $0x2c0] sm:$0xff]
                  %664 = vst [vmem:[%s640 + $0x58] sm:$0xff] %v663
                  %v665 = vld [vmem:[%s639 + $0x300] sm:$0xff]
                  %666 = vst [vmem:[%s640 + $0x60] sm:$0xff] %v665
                  %v667 = vld [vmem:[%s639 + $0x340] sm:$0xff]
                  %668 = vst [vmem:[%s640 + $0x68] sm:$0xff] %v667
                  %v669 = vld [vmem:[%s639 + $0x380] sm:$0xff]
                  %670 = vst [vmem:[%s640 + $0x70] sm:$0xff] %v669
                  %v671 = vld [vmem:[%s639 + $0x3c0] sm:$0xff]
                  %672 = vst [vmem:[%s640 + $0x78] sm:$0xff] %v671
                $region141: #{conv_module_forward.1} parent=135 // loop_footer
                  %s638 = sadd.s32 1, %s634
                $region142: #{conv_module_forward.1} parent=135 // loop_footer_branch
                  %633 = sbr.rel target = $region138
                $region143: #{conv_module_forward.1} parent=135 // loop_exit
                  _
              $region136: #{conv_module_forward.1} parent=120 // pred_fallthru
                _
              // Predicated region
              $region144: #{conv_module_forward.1} parent=120 // pred_check
                _
              $region145: #{conv_module_forward.1} parent=120 // pred_check_branch
                %674 = sbr.rel target = $region147
              $region146: #{conv_module_forward.1} parent=120 // pred_region
                _
              $region147: #{conv_module_forward.1} parent=120 // pred_fallthru
                _
            $region121: #{conv_module_forward.1} parent=116 // pred_fallthru
              _
            // Predicated region
            $region122: #{conv_module_forward.1} parent=116 // pred_check
              _
            $region123: #{conv_module_forward.1} parent=116 // pred_check_branch
              %589 = sbr.rel target = $region125
            $region124: #{conv_module_forward.1} parent=116 // pred_region
              loop: start=0, step=1, limit=1
              $region126: #{conv_module_forward.1} parent=124 // loop_pre_header
                _
              $region127: #{conv_module_forward.1} parent=124 // loop_header
                %s592 = sphi 0, %s596
                %p593 = scmp.ge.s32.totalorder %s592, 1
                %s597 = sphi %s583, %s583
                %s598 = sphi %s575, %s575
              $region128: #{conv_module_forward.1} parent=124 // loop_header_branch
                %595 = sbr.rel (%p593) target = $region132
              $region129: #{conv_module_forward.1} parent=124 // loop_body
                %v599 = vld [vmem:[%s597] sm:$0xff]
                %600 = vst [vmem:[%s598] sm:$0xff] %v599
                %v601 = vld [vmem:[%s597 + $0x40] sm:$0xff]
                %602 = vst [vmem:[%s598 + $0x8] sm:$0xff] %v601
                %v603 = vld [vmem:[%s597 + $0x80] sm:$0xff]
                %604 = vst [vmem:[%s598 + $0x10] sm:$0xff] %v603
                %v605 = vld [vmem:[%s597 + $0xc0] sm:$0xff]
                %606 = vst [vmem:[%s598 + $0x18] sm:$0xff] %v605
                %v607 = vld [vmem:[%s597 + $0x100] sm:$0xff]
                %608 = vst [vmem:[%s598 + $0x20] sm:$0xff] %v607
                %v609 = vld [vmem:[%s597 + $0x140] sm:$0xff]
                %610 = vst [vmem:[%s598 + $0x28] sm:$0xff] %v609
                %v611 = vld [vmem:[%s597 + $0x180] sm:$0xff]
                %612 = vst [vmem:[%s598 + $0x30] sm:$0xff] %v611
                %v613 = vld [vmem:[%s597 + $0x1c0] sm:$0xff]
                %614 = vst [vmem:[%s598 + $0x38] sm:$0xff] %v613
                %v615 = vld [vmem:[%s597 + $0x200] sm:$0xff]
                %616 = vst [vmem:[%s598 + $0x40] sm:$0xff] %v615
                %v617 = vld [vmem:[%s597 + $0x240] sm:$0xff]
                %618 = vst [vmem:[%s598 + $0x48] sm:$0xff] %v617
                %v619 = vld [vmem:[%s597 + $0x280] sm:$0xff]
                %620 = vst [vmem:[%s598 + $0x50] sm:$0xff] %v619
                %v621 = vld [vmem:[%s597 + $0x2c0] sm:$0xff]
                %622 = vst [vmem:[%s598 + $0x58] sm:$0xff] %v621
                %v623 = vld [vmem:[%s597 + $0x300] sm:$0xff]
                %624 = vst [vmem:[%s598 + $0x60] sm:$0xff] %v623
                %v625 = vld [vmem:[%s597 + $0x340] sm:$0xff]
                %626 = vst [vmem:[%s598 + $0x68] sm:$0xff] %v625
                %v627 = vld [vmem:[%s597 + $0x380] sm:$0xff]
                %628 = vst [vmem:[%s598 + $0x70] sm:$0xff] %v627
                %v629 = vld [vmem:[%s597 + $0x3c0] sm:$0xff]
                %630 = vst [vmem:[%s598 + $0x78] sm:$0xff] %v629
              $region130: #{conv_module_forward.1} parent=124 // loop_footer
                %s596 = sadd.s32 1, %s592
              $region131: #{conv_module_forward.1} parent=124 // loop_footer_branch
                %591 = sbr.rel target = $region127
              $region132: #{conv_module_forward.1} parent=124 // loop_exit
                _
            $region125: #{conv_module_forward.1} parent=116 // pred_fallthru
              _
          $region117: #{conv_module_forward.1} parent=112 // pred_fallthru
            _
          %675 = vnop
        $region113: #{conv_module_forward.1} parent=47 // pred_fallthru
          _
      $region48: #{conv_module_forward.1} parent=5 // pred_fallthru
        _
      %p676 = scmp.le.s32.totalorder 1, %s20
      %p677 = scmp.lt.s32.totalorder %s20, 9
      %p678 = pnand %p676, %p677
      %p679 = pneg %p678
      // Predicated region
      $region148: #{conv_module_forward.1} parent=5 // pred_check
        _
      $region149: #{conv_module_forward.1} parent=5 // pred_check_branch
        %681 = sbr.rel (%p678) target = $region151
      $region150: #{conv_module_forward.1} parent=5 // pred_region
        %s682 = ssub.s32 %s20, 1
        %s683 = sand.u32 %s55, 1
        %s684 = sand.u32 %s55, 1
        %s685 = smul.addr %s684, 128
        %s686 = scalar_lea.vmem [#allocation2], %s685
        // Predicated region
        $region152: #{conv_module_forward.1} parent=150 // pred_check
          %p687 = pneg %p68
        $region153: #{conv_module_forward.1} parent=150 // pred_check_branch
          %689 = sbr.rel (%p687) target = $region155
        $region154: #{conv_module_forward.1} parent=150 // pred_region
          _
        $region155: #{conv_module_forward.1} parent=150 // pred_fallthru
          _
        %s690 = sand.u32 %s83, 1
        %s691 = sand.u32 %s83, 1
        %s692 = smul.addr %s691, 256
        %s693 = scalar_lea.vmem [#allocation3], %s692
        // Predicated region
        $region156: #{conv_module_forward.1} parent=150 // pred_check
          %p694 = pneg %p96
        $region157: #{conv_module_forward.1} parent=150 // pred_check_branch
          %696 = sbr.rel (%p694) target = $region159
        $region158: #{conv_module_forward.1} parent=150 // pred_region
          _
        $region159: #{conv_module_forward.1} parent=150 // pred_fallthru
          _
        %s697 = sand.u32 %s119, 1
        %s698 = sand.u32 %s119, 1
        %s699 = smul.addr %s698, 128
        %s700 = scalar_lea.vmem [#allocation4], %s699
        // Predicated region
        $region160: #{conv_module_forward.1} parent=150 // pred_check
          %p701 = pneg %p132
        $region161: #{conv_module_forward.1} parent=150 // pred_check_branch
          %703 = sbr.rel (%p701) target = $region163
        $region162: #{conv_module_forward.1} parent=150 // pred_region
          _
        $region163: #{conv_module_forward.1} parent=150 // pred_fallthru
          _
        %s704 = sand.u32 %s55, 1
        %s705 = sand.u32 %s55, 1
        %s706 = smul.addr %s705, 128
        %s707 = scalar_lea.vmem [#allocation2], %s706
        %p708 = pneg %p68
        %p709 = pneg %p65
        %s710 = sand.u32 %s83, 1
        %s711 = sand.u32 %s83, 1
        %s712 = smul.addr %s711, 256
        %s713 = scalar_lea.vmem [#allocation3], %s712
        %p714 = pneg %p96
        %p715 = pneg %p93
        %s716 = sand.u32 %s119, 1
        %s717 = sand.u32 %s119, 1
        %s718 = smul.addr %s717, 128
        %s719 = scalar_lea.vmem [#allocation4], %s718
        %p720 = pneg %p132
        %p721 = pneg %p129
        %p722 = pneg %p153
        %p723 = pneg %p150
        %p724 = pneg %p174
        %p725 = pneg %p171
        %p726 = pneg %p195
        %p727 = pneg %p192
        %p728 = pneg %p216
        %p729 = pneg %p213
        %p730 = pneg %p237
        %p731 = pneg %p234
        %p732 = pneg %p258
        %p733 = pneg %p255
        %p734 = pneg %p279
        %p735 = pneg %p276
        %p736 = pneg %p300
        %p737 = pneg %p297
        %p738 = pneg %p328
        %p739 = pneg %p325
        %s740 = sand.u32 %s315, 1
        %s741 = scalar_lea.sflag [#allocation6], %s740
        %s742 = sand.u32 %s315, 1
        %s743 = smul.addr %s742, 256
        %s744 = scalar_lea.vmem [#allocation5], %s743
        %s745 = smul.u32 %s30, 2
        %s746 = ssub.s32 %s745, 1
        %p747 = scmp.gt.s32.totalorder %s746, 0
        %s748 = scalar_select %p747, %s746, 0
        %s749 = smul.u32 2, %s30
        %s750 = sadd.s32 %s30, 1
        %s751 = smul.u32 %s750, 2
        %p752 = scmp.lt.s32.totalorder %s751, 7
        %s753 = scalar_select %p752, %s751, 7
        %s754 = smul.u32 2, %s30
        %v756 = vld [vmem:[%s686] sm:$0xff]
        %v757 = vld [vmem:[%s686 + $0x8] sm:$0xff]
        %v758 = vld [vmem:[%s686 + $0x10] sm:$0xff]
        %v759 = vld [vmem:[%s686 + $0x18] sm:$0xff]
        %v760 = vld [vmem:[%s686 + $0x20] sm:$0xff]
        %v761 = vld [vmem:[%s686 + $0x28] sm:$0xff]
        %v762 = vld [vmem:[%s686 + $0x30] sm:$0xff]
        %v763 = vld [vmem:[%s686 + $0x38] sm:$0xff]
        %v764 = vld [vmem:[%s686 + $0x40] sm:$0xff]
        %v765 = vld [vmem:[%s686 + $0x48] sm:$0xff]
        %v766 = vld [vmem:[%s686 + $0x50] sm:$0xff]
        %v767 = vld [vmem:[%s686 + $0x58] sm:$0xff]
        %v768 = vld [vmem:[%s686 + $0x60] sm:$0xff]
        %v769 = vld [vmem:[%s686 + $0x68] sm:$0xff]
        %v770 = vld [vmem:[%s686 + $0x70] sm:$0xff]
        %v771 = vld [vmem:[%s686 + $0x78] sm:$0xff]
        %v772 = vld [vmem:[%s693] sm:$0xff]
        %v773 = vld [vmem:[%s693 + $0x8] sm:$0xff]
        %v774 = vld [vmem:[%s693 + $0x10] sm:$0xff]
        %v775 = vld [vmem:[%s693 + $0x18] sm:$0xff]
        %v776 = vld [vmem:[%s693 + $0x20] sm:$0xff]
        %v777 = vld [vmem:[%s693 + $0x28] sm:$0xff]
        %v778 = vld [vmem:[%s693 + $0x30] sm:$0xff]
        %v779 = vld [vmem:[%s693 + $0x38] sm:$0xff]
        %v780 = vld [vmem:[%s693 + $0x40] sm:$0xff]
        %v781 = vld [vmem:[%s693 + $0x48] sm:$0xff]
        %v782 = vld [vmem:[%s693 + $0x50] sm:$0xff]
        %v783 = vld [vmem:[%s693 + $0x58] sm:$0xff]
        %v784 = vld [vmem:[%s693 + $0x60] sm:$0xff]
        %v785 = vld [vmem:[%s693 + $0x68] sm:$0xff]
        %v786 = vld [vmem:[%s693 + $0x70] sm:$0xff]
        %v787 = vld [vmem:[%s693 + $0x78] sm:$0xff]
        %v788 = vld [vmem:[%s693 + $0x80] sm:$0xff]
        %v789 = vld [vmem:[%s693 + $0x88] sm:$0xff]
        %v790 = vld [vmem:[%s693 + $0x90] sm:$0xff]
        %v791 = vld [vmem:[%s693 + $0x98] sm:$0xff]
        %v792 = vld [vmem:[%s693 + $0xa0] sm:$0xff]
        %v793 = vld [vmem:[%s693 + $0xa8] sm:$0xff]
        %v794 = vld [vmem:[%s693 + $0xb0] sm:$0xff]
        %v795 = vld [vmem:[%s693 + $0xb8] sm:$0xff]
        %v796 = vld [vmem:[%s693 + $0xc0] sm:$0xff]
        %v797 = vld [vmem:[%s693 + $0xc8] sm:$0xff]
        %v798 = vld [vmem:[%s693 + $0xd0] sm:$0xff]
        %v799 = vld [vmem:[%s693 + $0xd8] sm:$0xff]
        %v800 = vld [vmem:[%s693 + $0xe0] sm:$0xff]
        %v801 = vld [vmem:[%s693 + $0xe8] sm:$0xff]
        %v802 = vld [vmem:[%s693 + $0xf0] sm:$0xff]
        %v803 = vld [vmem:[%s693 + $0xf8] sm:$0xff]
        %v804 = vld [vmem:[%s700] sm:$0xff]
        %v805 = vld [vmem:[%s700 + $0x8] sm:$0xff]
        %v806 = vld [vmem:[%s700 + $0x10] sm:$0xff]
        %v807 = vld [vmem:[%s700 + $0x18] sm:$0xff]
        %v808 = vld [vmem:[%s700 + $0x20] sm:$0xff]
        %v809 = vld [vmem:[%s700 + $0x28] sm:$0xff]
        %v810 = vld [vmem:[%s700 + $0x30] sm:$0xff]
        %v811 = vld [vmem:[%s700 + $0x38] sm:$0xff]
        %v812 = vld [vmem:[%s700 + $0x40] sm:$0xff]
        %v813 = vld [vmem:[%s700 + $0x48] sm:$0xff]
        %v814 = vld [vmem:[%s700 + $0x50] sm:$0xff]
        %v815 = vld [vmem:[%s700 + $0x58] sm:$0xff]
        %v816 = vld [vmem:[%s700 + $0x60] sm:$0xff]
        %v817 = vld [vmem:[%s700 + $0x68] sm:$0xff]
        %v818 = vld [vmem:[%s700 + $0x70] sm:$0xff]
        %v819 = vld [vmem:[%s700 + $0x78] sm:$0xff]
        %s820 = smul.u32 %s30, 256
        %s821 = ssub.s32 %s820, 128
        %v822 = vlaneseq
        %v823 = vand.u32 %v822, 127
        %v824 = vadd.s32 %v823, 128
        %v825 = vadd.s32 %v823, 256
        %v826 = vadd.s32 %v823, 384
        %v827 = vstv %s821
        %v828 = vadd.s32 %v827, %v823
        %v829 = vadd.s32 %v827, %v824
        %v830 = vadd.s32 %v827, %v825
        %v831 = vadd.s32 %v827, %v826
        %vm832 = vcmp.ge.s32.totalorder %v828, 0
        %vm833 = vcmp.ge.s32.totalorder %v829, 0
        %vm834 = vcmp.ge.s32.totalorder %v830, 0
        %vm835 = vcmp.ge.s32.totalorder %v831, 0
        %vm836 = vcmp.lt.s32.totalorder %v828, 1024
        %vm837 = vcmp.lt.s32.totalorder %v829, 1024
        %vm838 = vcmp.lt.s32.totalorder %v830, 1024
        %vm839 = vcmp.lt.s32.totalorder %v831, 1024
        %vm840 = vmand %vm832, %vm836
        %vm841 = vmand %vm833, %vm837
        %vm842 = vmand %vm834, %vm838
        %vm843 = vmand %vm835, %vm839
        %v844 = vadd.f32 %v756, %v757
        %v845 = vadd.f32 %v844, %v758
        %v846 = vadd.f32 %v845, %v759
        %v847 = vadd.f32 %v846, %v760
        %v848 = vadd.f32 %v847, %v761
        %v849 = vadd.f32 %v848, %v762
        %v850 = vadd.f32 %v849, %v763
        %v851 = vadd.f32 %v850, %v764
        %v852 = vadd.f32 %v851, %v765
        %v853 = vadd.f32 %v852, %v766
        %v854 = vadd.f32 %v853, %v767
        %v855 = vadd.f32 %v854, %v768
        %v856 = vadd.f32 %v855, %v769
        %v857 = vadd.f32 %v856, %v770
        %v858 = vadd.f32 %v857, %v771
        %v859 = vrot.slane %v858, 4
        %v860 = vadd.f32 %v858, %v859
        %v861 = vrot.slane %v860, 2
        %v862 = vadd.f32 %v860, %v861
        %v863 = vrot.slane %v862, 1
        %v864 = vadd.f32 %v862, %v863
        %v865 = vadd.f32 %v772, %v774
        %v866 = vadd.f32 %v865, %v776
        %v867 = vadd.f32 %v866, %v778
        %v868 = vadd.f32 %v867, %v780
        %v869 = vadd.f32 %v868, %v782
        %v870 = vadd.f32 %v869, %v784
        %v871 = vadd.f32 %v870, %v786
        %v872 = vadd.f32 %v871, %v788
        %v873 = vadd.f32 %v872, %v790
        %v874 = vadd.f32 %v873, %v792
        %v875 = vadd.f32 %v874, %v794
        %v876 = vadd.f32 %v875, %v796
        %v877 = vadd.f32 %v876, %v798
        %v878 = vadd.f32 %v877, %v800
        %v879 = vadd.f32 %v878, %v802
        %v880 = vrot.slane %v879, 4
        %v881 = vadd.f32 %v879, %v880
        %v882 = vrot.slane %v881, 2
        %v883 = vadd.f32 %v881, %v882
        %v884 = vrot.slane %v883, 1
        %v885 = vadd.f32 %v883, %v884
        %v886 = vadd.f32 %v773, %v775
        %v887 = vadd.f32 %v886, %v777
        %v888 = vadd.f32 %v887, %v779
        %v889 = vadd.f32 %v888, %v781
        %v890 = vadd.f32 %v889, %v783
        %v891 = vadd.f32 %v890, %v785
        %v892 = vadd.f32 %v891, %v787
        %v893 = vadd.f32 %v892, %v789
        %v894 = vadd.f32 %v893, %v791
        %v895 = vadd.f32 %v894, %v793
        %v896 = vadd.f32 %v895, %v795
        %v897 = vadd.f32 %v896, %v797
        %v898 = vadd.f32 %v897, %v799
        %v899 = vadd.f32 %v898, %v801
        %v900 = vadd.f32 %v899, %v803
        %v901 = vrot.slane %v900, 4
        %v902 = vadd.f32 %v900, %v901
        %v903 = vrot.slane %v902, 2
        %v904 = vadd.f32 %v902, %v903
        %v905 = vrot.slane %v904, 1
        %v906 = vadd.f32 %v904, %v905
        %v907 = vadd.f32 %v804, %v805
        %v908 = vadd.f32 %v907, %v806
        %v909 = vadd.f32 %v908, %v807
        %v910 = vadd.f32 %v909, %v808
        %v911 = vadd.f32 %v910, %v809
        %v912 = vadd.f32 %v911, %v810
        %v913 = vadd.f32 %v912, %v811
        %v914 = vadd.f32 %v913, %v812
        %v915 = vadd.f32 %v914, %v813
        %v916 = vadd.f32 %v915, %v814
        %v917 = vadd.f32 %v916, %v815
        %v918 = vadd.f32 %v917, %v816
        %v919 = vadd.f32 %v918, %v817
        %v920 = vadd.f32 %v919, %v818
        %v921 = vadd.f32 %v920, %v819
        %v922 = vrot.slane %v921, 4
        %v923 = vadd.f32 %v921, %v922
        %v924 = vrot.slane %v923, 2
        %v925 = vadd.f32 %v923, %v924
        %v926 = vrot.slane %v925, 1
        %v927 = vadd.f32 %v925, %v926
        %v928 = vrcp.pop 128.0
        %v929 = vmul.f32 %v864, %v928
        %v930 = vmul.f32 %v885, %v928
        %v931 = vmul.f32 %v906, %v928
        %v932 = vmul.f32 %v927, %v928
        %v933 = vsub.f32 %v756, %v929
        %v934 = vsub.f32 %v772, %v930
        %v935 = vsub.f32 %v773, %v931
        %v936 = vsub.f32 %v804, %v932
        %v937 = vsub.f32 %v757, %v929
        %v938 = vsub.f32 %v774, %v930
        %v939 = vsub.f32 %v775, %v931
        %v940 = vsub.f32 %v805, %v932
        %v941 = vsub.f32 %v758, %v929
        %v942 = vsub.f32 %v776, %v930
        %v943 = vsub.f32 %v777, %v931
        %v944 = vsub.f32 %v806, %v932
        %v945 = vsub.f32 %v759, %v929
        %v946 = vsub.f32 %v778, %v930
        %v947 = vsub.f32 %v779, %v931
        %v948 = vsub.f32 %v807, %v932
        %v949 = vsub.f32 %v760, %v929
        %v950 = vsub.f32 %v780, %v930
        %v951 = vsub.f32 %v781, %v931
        %v952 = vsub.f32 %v808, %v932
        %v953 = vsub.f32 %v761, %v929
        %v954 = vsub.f32 %v782, %v930
        %v955 = vsub.f32 %v783, %v931
        %v956 = vsub.f32 %v809, %v932
        %v957 = vsub.f32 %v762, %v929
        %v958 = vsub.f32 %v784, %v930
        %v959 = vsub.f32 %v785, %v931
        %v960 = vsub.f32 %v810, %v932
        %v961 = vsub.f32 %v763, %v929
        %v962 = vsub.f32 %v786, %v930
        %v963 = vsub.f32 %v787, %v931
        %v964 = vsub.f32 %v811, %v932
        %v965 = vsub.f32 %v764, %v929
        %v966 = vsub.f32 %v788, %v930
        %v967 = vsub.f32 %v789, %v931
        %v968 = vsub.f32 %v812, %v932
        %v969 = vsub.f32 %v765, %v929
        %v970 = vsub.f32 %v790, %v930
        %v971 = vsub.f32 %v791, %v931
        %v972 = vsub.f32 %v813, %v932
        %v973 = vsub.f32 %v766, %v929
        %v974 = vsub.f32 %v792, %v930
        %v975 = vsub.f32 %v793, %v931
        %v976 = vsub.f32 %v814, %v932
        %v977 = vsub.f32 %v767, %v929
        %v978 = vsub.f32 %v794, %v930
        %v979 = vsub.f32 %v795, %v931
        %v980 = vsub.f32 %v815, %v932
        %v981 = vsub.f32 %v768, %v929
        %v982 = vsub.f32 %v796, %v930
        %v983 = vsub.f32 %v797, %v931
        %v984 = vsub.f32 %v816, %v932
        %v985 = vsub.f32 %v769, %v929
        %v986 = vsub.f32 %v798, %v930
        %v987 = vsub.f32 %v799, %v931
        %v988 = vsub.f32 %v817, %v932
        %v989 = vsub.f32 %v770, %v929
        %v990 = vsub.f32 %v800, %v930
        %v991 = vsub.f32 %v801, %v931
        %v992 = vsub.f32 %v818, %v932
        %v993 = vsub.f32 %v771, %v929
        %v994 = vsub.f32 %v802, %v930
        %v995 = vsub.f32 %v803, %v931
        %v996 = vsub.f32 %v819, %v932
        %v997 = vmul.f32 %v933, %v933
        %v998 = vmul.f32 %v934, %v934
        %v999 = vmul.f32 %v935, %v935
        %v1000 = vmul.f32 %v936, %v936
        %v1001 = vmul.f32 %v937, %v937
        %v1002 = vmul.f32 %v938, %v938
        %v1003 = vmul.f32 %v939, %v939
        %v1004 = vmul.f32 %v940, %v940
        %v1005 = vmul.f32 %v941, %v941
        %v1006 = vmul.f32 %v942, %v942
        %v1007 = vmul.f32 %v943, %v943
        %v1008 = vmul.f32 %v944, %v944
        %v1009 = vmul.f32 %v945, %v945
        %v1010 = vmul.f32 %v946, %v946
        %v1011 = vmul.f32 %v947, %v947
        %v1012 = vmul.f32 %v948, %v948
        %v1013 = vmul.f32 %v949, %v949
        %v1014 = vmul.f32 %v950, %v950
        %v1015 = vmul.f32 %v951, %v951
        %v1016 = vmul.f32 %v952, %v952
        %v1017 = vmul.f32 %v953, %v953
        %v1018 = vmul.f32 %v954, %v954
        %v1019 = vmul.f32 %v955, %v955
        %v1020 = vmul.f32 %v956, %v956
        %v1021 = vmul.f32 %v957, %v957
        %v1022 = vmul.f32 %v958, %v958
        %v1023 = vmul.f32 %v959, %v959
        %v1024 = vmul.f32 %v960, %v960
        %v1025 = vmul.f32 %v961, %v961
        %v1026 = vmul.f32 %v962, %v962
        %v1027 = vmul.f32 %v963, %v963
        %v1028 = vmul.f32 %v964, %v964
        %v1029 = vmul.f32 %v965, %v965
        %v1030 = vmul.f32 %v966, %v966
        %v1031 = vmul.f32 %v967, %v967
        %v1032 = vmul.f32 %v968, %v968
        %v1033 = vmul.f32 %v969, %v969
        %v1034 = vmul.f32 %v970, %v970
        %v1035 = vmul.f32 %v971, %v971
        %v1036 = vmul.f32 %v972, %v972
        %v1037 = vmul.f32 %v973, %v973
        %v1038 = vmul.f32 %v974, %v974
        %v1039 = vmul.f32 %v975, %v975
        %v1040 = vmul.f32 %v976, %v976
        %v1041 = vmul.f32 %v977, %v977
        %v1042 = vmul.f32 %v978, %v978
        %v1043 = vmul.f32 %v979, %v979
        %v1044 = vmul.f32 %v980, %v980
        %v1045 = vmul.f32 %v981, %v981
        %v1046 = vmul.f32 %v982, %v982
        %v1047 = vmul.f32 %v983, %v983
        %v1048 = vmul.f32 %v984, %v984
        %v1049 = vmul.f32 %v985, %v985
        %v1050 = vmul.f32 %v986, %v986
        %v1051 = vmul.f32 %v987, %v987
        %v1052 = vmul.f32 %v988, %v988
        %v1053 = vmul.f32 %v989, %v989
        %v1054 = vmul.f32 %v990, %v990
        %v1055 = vmul.f32 %v991, %v991
        %v1056 = vmul.f32 %v992, %v992
        %v1057 = vmul.f32 %v993, %v993
        %v1058 = vmul.f32 %v994, %v994
        %v1059 = vmul.f32 %v995, %v995
        %v1060 = vmul.f32 %v996, %v996
        %v1061 = vadd.f32 %v997, %v1001
        %v1062 = vadd.f32 %v1061, %v1005
        %v1063 = vadd.f32 %v1062, %v1009
        %v1064 = vadd.f32 %v1063, %v1013
        %v1065 = vadd.f32 %v1064, %v1017
        %v1066 = vadd.f32 %v1065, %v1021
        %v1067 = vadd.f32 %v1066, %v1025
        %v1068 = vadd.f32 %v1067, %v1029
        %v1069 = vadd.f32 %v1068, %v1033
        %v1070 = vadd.f32 %v1069, %v1037
        %v1071 = vadd.f32 %v1070, %v1041
        %v1072 = vadd.f32 %v1071, %v1045
        %v1073 = vadd.f32 %v1072, %v1049
        %v1074 = vadd.f32 %v1073, %v1053
        %v1075 = vadd.f32 %v1074, %v1057
        %v1076 = vrot.slane %v1075, 4
        %v1077 = vadd.f32 %v1075, %v1076
        %v1078 = vrot.slane %v1077, 2
        %v1079 = vadd.f32 %v1077, %v1078
        %v1080 = vrot.slane %v1079, 1
        %v1081 = vadd.f32 %v1079, %v1080
        %v1082 = vadd.f32 %v998, %v1002
        %v1083 = vadd.f32 %v1082, %v1006
        %v1084 = vadd.f32 %v1083, %v1010
        %v1085 = vadd.f32 %v1084, %v1014
        %v1086 = vadd.f32 %v1085, %v1018
        %v1087 = vadd.f32 %v1086, %v1022
        %v1088 = vadd.f32 %v1087, %v1026
        %v1089 = vadd.f32 %v1088, %v1030
        %v1090 = vadd.f32 %v1089, %v1034
        %v1091 = vadd.f32 %v1090, %v1038
        %v1092 = vadd.f32 %v1091, %v1042
        %v1093 = vadd.f32 %v1092, %v1046
        %v1094 = vadd.f32 %v1093, %v1050
        %v1095 = vadd.f32 %v1094, %v1054
        %v1096 = vadd.f32 %v1095, %v1058
        %v1097 = vrot.slane %v1096, 4
        %v1098 = vadd.f32 %v1096, %v1097
        %v1099 = vrot.slane %v1098, 2
        %v1100 = vadd.f32 %v1098, %v1099
        %v1101 = vrot.slane %v1100, 1
        %v1102 = vadd.f32 %v1100, %v1101
        %v1103 = vadd.f32 %v999, %v1003
        %v1104 = vadd.f32 %v1103, %v1007
        %v1105 = vadd.f32 %v1104, %v1011
        %v1106 = vadd.f32 %v1105, %v1015
        %v1107 = vadd.f32 %v1106, %v1019
        %v1108 = vadd.f32 %v1107, %v1023
        %v1109 = vadd.f32 %v1108, %v1027
        %v1110 = vadd.f32 %v1109, %v1031
        %v1111 = vadd.f32 %v1110, %v1035
        %v1112 = vadd.f32 %v1111, %v1039
        %v1113 = vadd.f32 %v1112, %v1043
        %v1114 = vadd.f32 %v1113, %v1047
        %v1115 = vadd.f32 %v1114, %v1051
        %v1116 = vadd.f32 %v1115, %v1055
        %v1117 = vadd.f32 %v1116, %v1059
        %v1118 = vrot.slane %v1117, 4
        %v1119 = vadd.f32 %v1117, %v1118
        %v1120 = vrot.slane %v1119, 2
        %v1121 = vadd.f32 %v1119, %v1120
        %v1122 = vrot.slane %v1121, 1
        %v1123 = vadd.f32 %v1121, %v1122
        %v1124 = vadd.f32 %v1000, %v1004
        %v1125 = vadd.f32 %v1124, %v1008
        %v1126 = vadd.f32 %v1125, %v1012
        %v1127 = vadd.f32 %v1126, %v1016
        %v1128 = vadd.f32 %v1127, %v1020
        %v1129 = vadd.f32 %v1128, %v1024
        %v1130 = vadd.f32 %v1129, %v1028
        %v1131 = vadd.f32 %v1130, %v1032
        %v1132 = vadd.f32 %v1131, %v1036
        %v1133 = vadd.f32 %v1132, %v1040
        %v1134 = vadd.f32 %v1133, %v1044
        %v1135 = vadd.f32 %v1134, %v1048
        %v1136 = vadd.f32 %v1135, %v1052
        %v1137 = vadd.f32 %v1136, %v1056
        %v1138 = vadd.f32 %v1137, %v1060
        %v1139 = vrot.slane %v1138, 4
        %v1140 = vadd.f32 %v1138, %v1139
        %v1141 = vrot.slane %v1140, 2
        %v1142 = vadd.f32 %v1140, %v1141
        %v1143 = vrot.slane %v1142, 1
        %v1144 = vadd.f32 %v1142, %v1143
        %v1145 = vmul.f32 %v1081, %v928
        %v1146 = vmul.f32 %v1102, %v928
        %v1147 = vmul.f32 %v1123, %v928
        %v1148 = vmul.f32 %v1144, %v928
        %v1149 = vadd.f32 %v1145, 1e-05
        %v1150 = vadd.f32 %v1146, 1e-05
        %v1151 = vadd.f32 %v1147, 1e-05
        %v1152 = vadd.f32 %v1148, 1e-05
        %v1153 = vrsqrt.pop %v1149
        %v1154 = vrsqrt.pop %v1150
        %v1155 = vrsqrt.pop %v1151
        %v1156 = vrsqrt.pop %v1152
        %v1157 = vmul.f32 %v933, %v1153
        %v1158 = vmul.f32 %v934, %v1154
        %v1159 = vmul.f32 %v935, %v1155
        %v1160 = vmul.f32 %v936, %v1156
        %v1161 = vmul.f32 %v937, %v1153
        %v1162 = vmul.f32 %v938, %v1154
        %v1163 = vmul.f32 %v939, %v1155
        %v1164 = vmul.f32 %v940, %v1156
        %v1165 = vmul.f32 %v941, %v1153
        %v1166 = vmul.f32 %v942, %v1154
        %v1167 = vmul.f32 %v943, %v1155
        %v1168 = vmul.f32 %v944, %v1156
        %v1169 = vmul.f32 %v945, %v1153
        %v1170 = vmul.f32 %v946, %v1154
        %v1171 = vmul.f32 %v947, %v1155
        %v1172 = vmul.f32 %v948, %v1156
        %v1173 = vmul.f32 %v949, %v1153
        %v1174 = vmul.f32 %v950, %v1154
        %v1175 = vmul.f32 %v951, %v1155
        %v1176 = vmul.f32 %v952, %v1156
        %v1177 = vmul.f32 %v953, %v1153
        %v1178 = vmul.f32 %v954, %v1154
        %v1179 = vmul.f32 %v955, %v1155
        %v1180 = vmul.f32 %v956, %v1156
        %v1181 = vmul.f32 %v957, %v1153
        %v1182 = vmul.f32 %v958, %v1154
        %v1183 = vmul.f32 %v959, %v1155
        %v1184 = vmul.f32 %v960, %v1156
        %v1185 = vmul.f32 %v961, %v1153
        %v1186 = vmul.f32 %v962, %v1154
        %v1187 = vmul.f32 %v963, %v1155
        %v1188 = vmul.f32 %v964, %v1156
        %v1189 = vmul.f32 %v965, %v1153
        %v1190 = vmul.f32 %v966, %v1154
        %v1191 = vmul.f32 %v967, %v1155
        %v1192 = vmul.f32 %v968, %v1156
        %v1193 = vmul.f32 %v969, %v1153
        %v1194 = vmul.f32 %v970, %v1154
        %v1195 = vmul.f32 %v971, %v1155
        %v1196 = vmul.f32 %v972, %v1156
        %v1197 = vmul.f32 %v973, %v1153
        %v1198 = vmul.f32 %v974, %v1154
        %v1199 = vmul.f32 %v975, %v1155
        %v1200 = vmul.f32 %v976, %v1156
        %v1201 = vmul.f32 %v977, %v1153
        %v1202 = vmul.f32 %v978, %v1154
        %v1203 = vmul.f32 %v979, %v1155
        %v1204 = vmul.f32 %v980, %v1156
        %v1205 = vmul.f32 %v981, %v1153
        %v1206 = vmul.f32 %v982, %v1154
        %v1207 = vmul.f32 %v983, %v1155
        %v1208 = vmul.f32 %v984, %v1156
        %v1209 = vmul.f32 %v985, %v1153
        %v1210 = vmul.f32 %v986, %v1154
        %v1211 = vmul.f32 %v987, %v1155
        %v1212 = vmul.f32 %v988, %v1156
        %v1213 = vmul.f32 %v989, %v1153
        %v1214 = vmul.f32 %v990, %v1154
        %v1215 = vmul.f32 %v991, %v1155
        %v1216 = vmul.f32 %v992, %v1156
        %v1217 = vmul.f32 %v993, %v1153
        %v1218 = vmul.f32 %v994, %v1154
        %v1219 = vmul.f32 %v995, %v1155
        %v1220 = vmul.f32 %v996, %v1156
        %v1221 = vld [vmem:[%s3] sm:$0xff]
        %v1222 = vld [vmem:[%s3 + $0x8] sm:$0xff]
        %v1223 = vld [vmem:[%s3 + $0x10] sm:$0xff]
        %v1224 = vld [vmem:[%s3 + $0x18] sm:$0xff]
        %v1225 = vld [vmem:[%s3 + $0x20] sm:$0xff]
        %v1226 = vld [vmem:[%s3 + $0x28] sm:$0xff]
        %v1227 = vld [vmem:[%s3 + $0x30] sm:$0xff]
        %v1228 = vld [vmem:[%s3 + $0x38] sm:$0xff]
        %v1229 = vld [vmem:[%s3 + $0x40] sm:$0xff]
        %v1230 = vld [vmem:[%s3 + $0x48] sm:$0xff]
        %v1231 = vld [vmem:[%s3 + $0x50] sm:$0xff]
        %v1232 = vld [vmem:[%s3 + $0x58] sm:$0xff]
        %v1233 = vld [vmem:[%s3 + $0x60] sm:$0xff]
        %v1234 = vld [vmem:[%s3 + $0x68] sm:$0xff]
        %v1235 = vld [vmem:[%s3 + $0x70] sm:$0xff]
        %v1236 = vld [vmem:[%s3 + $0x78] sm:$0xff]
        %1238 = vset.pattern.permute.xlu0 0
        %1239 = vperm.xlu0 %1238, %v1221
        %v1240 = vpop.permute.xlu0 %1239
        %1243 = vset.pattern.permute.xlu0 0
        %1244 = vperm.xlu0 %1243, %v1222
        %v1245 = vpop.permute.xlu0 %1244
        %1248 = vset.pattern.permute.xlu0 0
        %1249 = vperm.xlu0 %1248, %v1223
        %v1250 = vpop.permute.xlu0 %1249
        %1253 = vset.pattern.permute.xlu0 0
        %1254 = vperm.xlu0 %1253, %v1224
        %v1255 = vpop.permute.xlu0 %1254
        %1258 = vset.pattern.permute.xlu0 0
        %1259 = vperm.xlu0 %1258, %v1225
        %v1260 = vpop.permute.xlu0 %1259
        %1263 = vset.pattern.permute.xlu0 0
        %1264 = vperm.xlu0 %1263, %v1226
        %v1265 = vpop.permute.xlu0 %1264
        %1268 = vset.pattern.permute.xlu0 0
        %1269 = vperm.xlu0 %1268, %v1227
        %v1270 = vpop.permute.xlu0 %1269
        %1273 = vset.pattern.permute.xlu0 0
        %1274 = vperm.xlu0 %1273, %v1228
        %v1275 = vpop.permute.xlu0 %1274
        %1278 = vset.pattern.permute.xlu0 0
        %1279 = vperm.xlu0 %1278, %v1229
        %v1280 = vpop.permute.xlu0 %1279
        %1283 = vset.pattern.permute.xlu0 0
        %1284 = vperm.xlu0 %1283, %v1230
        %v1285 = vpop.permute.xlu0 %1284
        %1288 = vset.pattern.permute.xlu0 0
        %1289 = vperm.xlu0 %1288, %v1231
        %v1290 = vpop.permute.xlu0 %1289
        %1293 = vset.pattern.permute.xlu0 0
        %1294 = vperm.xlu0 %1293, %v1232
        %v1295 = vpop.permute.xlu0 %1294
        %1298 = vset.pattern.permute.xlu0 0
        %1299 = vperm.xlu0 %1298, %v1233
        %v1300 = vpop.permute.xlu0 %1299
        %1303 = vset.pattern.permute.xlu0 0
        %1304 = vperm.xlu0 %1303, %v1234
        %v1305 = vpop.permute.xlu0 %1304
        %1308 = vset.pattern.permute.xlu0 0
        %1309 = vperm.xlu0 %1308, %v1235
        %v1310 = vpop.permute.xlu0 %1309
        %1313 = vset.pattern.permute.xlu0 0
        %1314 = vperm.xlu0 %1313, %v1236
        %v1315 = vpop.permute.xlu0 %1314
        %v1317 = vmul.f32 %v1157, %v1240
        %v1318 = vmul.f32 %v1158, %v1240
        %v1319 = vmul.f32 %v1159, %v1240
        %v1320 = vmul.f32 %v1160, %v1240
        %v1321 = vmul.f32 %v1161, %v1245
        %v1322 = vmul.f32 %v1162, %v1245
        %v1323 = vmul.f32 %v1163, %v1245
        %v1324 = vmul.f32 %v1164, %v1245
        %v1325 = vmul.f32 %v1165, %v1250
        %v1326 = vmul.f32 %v1166, %v1250
        %v1327 = vmul.f32 %v1167, %v1250
        %v1328 = vmul.f32 %v1168, %v1250
        %v1329 = vmul.f32 %v1169, %v1255
        %v1330 = vmul.f32 %v1170, %v1255
        %v1331 = vmul.f32 %v1171, %v1255
        %v1332 = vmul.f32 %v1172, %v1255
        %v1333 = vmul.f32 %v1173, %v1260
        %v1334 = vmul.f32 %v1174, %v1260
        %v1335 = vmul.f32 %v1175, %v1260
        %v1336 = vmul.f32 %v1176, %v1260
        %v1337 = vmul.f32 %v1177, %v1265
        %v1338 = vmul.f32 %v1178, %v1265
        %v1339 = vmul.f32 %v1179, %v1265
        %v1340 = vmul.f32 %v1180, %v1265
        %v1341 = vmul.f32 %v1181, %v1270
        %v1342 = vmul.f32 %v1182, %v1270
        %v1343 = vmul.f32 %v1183, %v1270
        %v1344 = vmul.f32 %v1184, %v1270
        %v1345 = vmul.f32 %v1185, %v1275
        %v1346 = vmul.f32 %v1186, %v1275
        %v1347 = vmul.f32 %v1187, %v1275
        %v1348 = vmul.f32 %v1188, %v1275
        %v1349 = vmul.f32 %v1189, %v1280
        %v1350 = vmul.f32 %v1190, %v1280
        %v1351 = vmul.f32 %v1191, %v1280
        %v1352 = vmul.f32 %v1192, %v1280
        %v1353 = vmul.f32 %v1193, %v1285
        %v1354 = vmul.f32 %v1194, %v1285
        %v1355 = vmul.f32 %v1195, %v1285
        %v1356 = vmul.f32 %v1196, %v1285
        %v1357 = vmul.f32 %v1197, %v1290
        %v1358 = vmul.f32 %v1198, %v1290
        %v1359 = vmul.f32 %v1199, %v1290
        %v1360 = vmul.f32 %v1200, %v1290
        %v1361 = vmul.f32 %v1201, %v1295
        %v1362 = vmul.f32 %v1202, %v1295
        %v1363 = vmul.f32 %v1203, %v1295
        %v1364 = vmul.f32 %v1204, %v1295
        %v1365 = vmul.f32 %v1205, %v1300
        %v1366 = vmul.f32 %v1206, %v1300
        %v1367 = vmul.f32 %v1207, %v1300
        %v1368 = vmul.f32 %v1208, %v1300
        %v1369 = vmul.f32 %v1209, %v1305
        %v1370 = vmul.f32 %v1210, %v1305
        %v1371 = vmul.f32 %v1211, %v1305
        %v1372 = vmul.f32 %v1212, %v1305
        %v1373 = vmul.f32 %v1213, %v1310
        %v1374 = vmul.f32 %v1214, %v1310
        %v1375 = vmul.f32 %v1215, %v1310
        %v1376 = vmul.f32 %v1216, %v1310
        %v1377 = vmul.f32 %v1217, %v1315
        %v1378 = vmul.f32 %v1218, %v1315
        %v1379 = vmul.f32 %v1219, %v1315
        %v1380 = vmul.f32 %v1220, %v1315
        %v1381 = vld [vmem:[%s4] sm:$0xff]
        %v1382 = vld [vmem:[%s4 + $0x8] sm:$0xff]
        %v1383 = vld [vmem:[%s4 + $0x10] sm:$0xff]
        %v1384 = vld [vmem:[%s4 + $0x18] sm:$0xff]
        %v1385 = vld [vmem:[%s4 + $0x20] sm:$0xff]
        %v1386 = vld [vmem:[%s4 + $0x28] sm:$0xff]
        %v1387 = vld [vmem:[%s4 + $0x30] sm:$0xff]
        %v1388 = vld [vmem:[%s4 + $0x38] sm:$0xff]
        %v1389 = vld [vmem:[%s4 + $0x40] sm:$0xff]
        %v1390 = vld [vmem:[%s4 + $0x48] sm:$0xff]
        %v1391 = vld [vmem:[%s4 + $0x50] sm:$0xff]
        %v1392 = vld [vmem:[%s4 + $0x58] sm:$0xff]
        %v1393 = vld [vmem:[%s4 + $0x60] sm:$0xff]
        %v1394 = vld [vmem:[%s4 + $0x68] sm:$0xff]
        %v1395 = vld [vmem:[%s4 + $0x70] sm:$0xff]
        %v1396 = vld [vmem:[%s4 + $0x78] sm:$0xff]
        %1398 = vset.pattern.permute.xlu0 0
        %1399 = vperm.xlu0 %1398, %v1381
        %v1400 = vpop.permute.xlu0 %1399
        %1403 = vset.pattern.permute.xlu0 0
        %1404 = vperm.xlu0 %1403, %v1382
        %v1405 = vpop.permute.xlu0 %1404
        %1408 = vset.pattern.permute.xlu0 0
        %1409 = vperm.xlu0 %1408, %v1383
        %v1410 = vpop.permute.xlu0 %1409
        %1413 = vset.pattern.permute.xlu0 0
        %1414 = vperm.xlu0 %1413, %v1384
        %v1415 = vpop.permute.xlu0 %1414
        %1418 = vset.pattern.permute.xlu0 0
        %1419 = vperm.xlu0 %1418, %v1385
        %v1420 = vpop.permute.xlu0 %1419
        %1423 = vset.pattern.permute.xlu0 0
        %1424 = vperm.xlu0 %1423, %v1386
        %v1425 = vpop.permute.xlu0 %1424
        %1428 = vset.pattern.permute.xlu0 0
        %1429 = vperm.xlu0 %1428, %v1387
        %v1430 = vpop.permute.xlu0 %1429
        %1433 = vset.pattern.permute.xlu0 0
        %1434 = vperm.xlu0 %1433, %v1388
        %v1435 = vpop.permute.xlu0 %1434
        %1438 = vset.pattern.permute.xlu0 0
        %1439 = vperm.xlu0 %1438, %v1389
        %v1440 = vpop.permute.xlu0 %1439
        %1443 = vset.pattern.permute.xlu0 0
        %1444 = vperm.xlu0 %1443, %v1390
        %v1445 = vpop.permute.xlu0 %1444
        %1448 = vset.pattern.permute.xlu0 0
        %1449 = vperm.xlu0 %1448, %v1391
        %v1450 = vpop.permute.xlu0 %1449
        %1453 = vset.pattern.permute.xlu0 0
        %1454 = vperm.xlu0 %1453, %v1392
        %v1455 = vpop.permute.xlu0 %1454
        %1458 = vset.pattern.permute.xlu0 0
        %1459 = vperm.xlu0 %1458, %v1393
        %v1460 = vpop.permute.xlu0 %1459
        %1463 = vset.pattern.permute.xlu0 0
        %1464 = vperm.xlu0 %1463, %v1394
        %v1465 = vpop.permute.xlu0 %1464
        %1468 = vset.pattern.permute.xlu0 0
        %1469 = vperm.xlu0 %1468, %v1395
        %v1470 = vpop.permute.xlu0 %1469
        %1473 = vset.pattern.permute.xlu0 0
        %1474 = vperm.xlu0 %1473, %v1396
        %v1475 = vpop.permute.xlu0 %1474
        %v1477 = vadd.f32 %v1317, %v1400
        %v1478 = vadd.f32 %v1318, %v1400
        %v1479 = vadd.f32 %v1319, %v1400
        %v1480 = vadd.f32 %v1320, %v1400
        %v1481 = vadd.f32 %v1321, %v1405
        %v1482 = vadd.f32 %v1322, %v1405
        %v1483 = vadd.f32 %v1323, %v1405
        %v1484 = vadd.f32 %v1324, %v1405
        %v1485 = vadd.f32 %v1325, %v1410
        %v1486 = vadd.f32 %v1326, %v1410
        %v1487 = vadd.f32 %v1327, %v1410
        %v1488 = vadd.f32 %v1328, %v1410
        %v1489 = vadd.f32 %v1329, %v1415
        %v1490 = vadd.f32 %v1330, %v1415
        %v1491 = vadd.f32 %v1331, %v1415
        %v1492 = vadd.f32 %v1332, %v1415
        %v1493 = vadd.f32 %v1333, %v1420
        %v1494 = vadd.f32 %v1334, %v1420
        %v1495 = vadd.f32 %v1335, %v1420
        %v1496 = vadd.f32 %v1336, %v1420
        %v1497 = vadd.f32 %v1337, %v1425
        %v1498 = vadd.f32 %v1338, %v1425
        %v1499 = vadd.f32 %v1339, %v1425
        %v1500 = vadd.f32 %v1340, %v1425
        %v1501 = vadd.f32 %v1341, %v1430
        %v1502 = vadd.f32 %v1342, %v1430
        %v1503 = vadd.f32 %v1343, %v1430
        %v1504 = vadd.f32 %v1344, %v1430
        %v1505 = vadd.f32 %v1345, %v1435
        %v1506 = vadd.f32 %v1346, %v1435
        %v1507 = vadd.f32 %v1347, %v1435
        %v1508 = vadd.f32 %v1348, %v1435
        %v1509 = vadd.f32 %v1349, %v1440
        %v1510 = vadd.f32 %v1350, %v1440
        %v1511 = vadd.f32 %v1351, %v1440
        %v1512 = vadd.f32 %v1352, %v1440
        %v1513 = vadd.f32 %v1353, %v1445
        %v1514 = vadd.f32 %v1354, %v1445
        %v1515 = vadd.f32 %v1355, %v1445
        %v1516 = vadd.f32 %v1356, %v1445
        %v1517 = vadd.f32 %v1357, %v1450
        %v1518 = vadd.f32 %v1358, %v1450
        %v1519 = vadd.f32 %v1359, %v1450
        %v1520 = vadd.f32 %v1360, %v1450
        %v1521 = vadd.f32 %v1361, %v1455
        %v1522 = vadd.f32 %v1362, %v1455
        %v1523 = vadd.f32 %v1363, %v1455
        %v1524 = vadd.f32 %v1364, %v1455
        %v1525 = vadd.f32 %v1365, %v1460
        %v1526 = vadd.f32 %v1366, %v1460
        %v1527 = vadd.f32 %v1367, %v1460
        %v1528 = vadd.f32 %v1368, %v1460
        %v1529 = vadd.f32 %v1369, %v1465
        %v1530 = vadd.f32 %v1370, %v1465
        %v1531 = vadd.f32 %v1371, %v1465
        %v1532 = vadd.f32 %v1372, %v1465
        %v1533 = vadd.f32 %v1373, %v1470
        %v1534 = vadd.f32 %v1374, %v1470
        %v1535 = vadd.f32 %v1375, %v1470
        %v1536 = vadd.f32 %v1376, %v1470
        %v1537 = vadd.f32 %v1377, %v1475
        %v1538 = vadd.f32 %v1378, %v1475
        %v1539 = vadd.f32 %v1379, %v1475
        %v1540 = vadd.f32 %v1380, %v1475
        %v1541 = vpack.c.bf16 %v1481, %v1477
        %v1542 = vpack.c.bf16 %v1482, %v1478
        %v1543 = vpack.c.bf16 %v1483, %v1479
        %v1544 = vpack.c.bf16 %v1484, %v1480
        %v1545 = vpack.c.bf16 %v1489, %v1485
        %v1546 = vpack.c.bf16 %v1490, %v1486
        %v1547 = vpack.c.bf16 %v1491, %v1487
        %v1548 = vpack.c.bf16 %v1492, %v1488
        %v1549 = vpack.c.bf16 %v1497, %v1493
        %v1550 = vpack.c.bf16 %v1498, %v1494
        %v1551 = vpack.c.bf16 %v1499, %v1495
        %v1552 = vpack.c.bf16 %v1500, %v1496
        %v1553 = vpack.c.bf16 %v1505, %v1501
        %v1554 = vpack.c.bf16 %v1506, %v1502
        %v1555 = vpack.c.bf16 %v1507, %v1503
        %v1556 = vpack.c.bf16 %v1508, %v1504
        %v1557 = vpack.c.bf16 %v1513, %v1509
        %v1558 = vpack.c.bf16 %v1514, %v1510
        %v1559 = vpack.c.bf16 %v1515, %v1511
        %v1560 = vpack.c.bf16 %v1516, %v1512
        %v1561 = vpack.c.bf16 %v1521, %v1517
        %v1562 = vpack.c.bf16 %v1522, %v1518
        %v1563 = vpack.c.bf16 %v1523, %v1519
        %v1564 = vpack.c.bf16 %v1524, %v1520
        %v1565 = vpack.c.bf16 %v1529, %v1525
        %v1566 = vpack.c.bf16 %v1530, %v1526
        %v1567 = vpack.c.bf16 %v1531, %v1527
        %v1568 = vpack.c.bf16 %v1532, %v1528
        %v1569 = vpack.c.bf16 %v1537, %v1533
        %v1570 = vpack.c.bf16 %v1538, %v1534
        %v1571 = vpack.c.bf16 %v1539, %v1535
        %v1572 = vpack.c.bf16 %v1540, %v1536
        %v1573 = vld [vmem:[%s5] sm:$0xf]
        %v1574 = vld [vmem:[%s5 + $0x4] sm:$0xf]
        %v1575 = vld [vmem:[%s5 + $0x8] sm:$0xf]
        %v1576 = vld [vmem:[%s5 + $0xc] sm:$0xf]
        %v1577 = vld [vmem:[%s5 + $0x10] sm:$0xf]
        %v1578 = vld [vmem:[%s5 + $0x14] sm:$0xf]
        %v1579 = vld [vmem:[%s5 + $0x18] sm:$0xf]
        %v1580 = vld [vmem:[%s5 + $0x1c] sm:$0xf]
        %v1581 = vld [vmem:[%s5 + $0x20] sm:$0xf]
        %v1582 = vld [vmem:[%s5 + $0x24] sm:$0xf]
        %v1583 = vld [vmem:[%s5 + $0x28] sm:$0xf]
        %v1584 = vld [vmem:[%s5 + $0x2c] sm:$0xf]
        %v1585 = vld [vmem:[%s5 + $0x30] sm:$0xf]
        %v1586 = vld [vmem:[%s5 + $0x34] sm:$0xf]
        %v1587 = vld [vmem:[%s5 + $0x38] sm:$0xf]
        %v1588 = vld [vmem:[%s5 + $0x3c] sm:$0xf]
        %v1589 = vld [vmem:[%s5 + $0x40] sm:$0xf]
        %v1590 = vld [vmem:[%s5 + $0x44] sm:$0xf]
        %v1591 = vld [vmem:[%s5 + $0x48] sm:$0xf]
        %v1592 = vld [vmem:[%s5 + $0x4c] sm:$0xf]
        %v1593 = vld [vmem:[%s5 + $0x50] sm:$0xf]
        %v1594 = vld [vmem:[%s5 + $0x54] sm:$0xf]
        %v1595 = vld [vmem:[%s5 + $0x58] sm:$0xf]
        %v1596 = vld [vmem:[%s5 + $0x5c] sm:$0xf]
        %v1597 = vld [vmem:[%s5 + $0x60] sm:$0xf]
        %v1598 = vld [vmem:[%s5 + $0x64] sm:$0xf]
        %v1599 = vld [vmem:[%s5 + $0x68] sm:$0xf]
        %v1600 = vld [vmem:[%s5 + $0x6c] sm:$0xf]
        %v1601 = vld [vmem:[%s5 + $0x70] sm:$0xf]
        %v1602 = vld [vmem:[%s5 + $0x74] sm:$0xf]
        %v1603 = vld [vmem:[%s5 + $0x78] sm:$0xf]
        %v1604 = vld [vmem:[%s5 + $0x7c] sm:$0xf]
        %v1605 = vld [vmem:[%s6] sm:$0xff]
        %v1606 = vld [vmem:[%s6 + $0x8] sm:$0xff]
        %v1607 = vld [vmem:[%s6 + $0x10] sm:$0xff]
        %v1608 = vld [vmem:[%s6 + $0x18] sm:$0xff]
        %v1609 = vld [vmem:[%s6 + $0x20] sm:$0xff]
        %v1610 = vld [vmem:[%s6 + $0x28] sm:$0xff]
        %v1611 = vld [vmem:[%s6 + $0x30] sm:$0xff]
        %v1612 = vld [vmem:[%s6 + $0x38] sm:$0xff]
        %v1613 = vld [vmem:[%s6 + $0x40] sm:$0xff]
        %v1614 = vld [vmem:[%s6 + $0x48] sm:$0xff]
        %v1615 = vld [vmem:[%s6 + $0x50] sm:$0xff]
        %v1616 = vld [vmem:[%s6 + $0x58] sm:$0xff]
        %v1617 = vld [vmem:[%s6 + $0x60] sm:$0xff]
        %v1618 = vld [vmem:[%s6 + $0x68] sm:$0xff]
        %v1619 = vld [vmem:[%s6 + $0x70] sm:$0xff]
        %v1620 = vld [vmem:[%s6 + $0x78] sm:$0xff]
        %v1621 = vld [vmem:[%s6 + $0x80] sm:$0xff]
        %v1622 = vld [vmem:[%s6 + $0x88] sm:$0xff]
        %v1623 = vld [vmem:[%s6 + $0x90] sm:$0xff]
        %v1624 = vld [vmem:[%s6 + $0x98] sm:$0xff]
        %v1625 = vld [vmem:[%s6 + $0xa0] sm:$0xff]
        %v1626 = vld [vmem:[%s6 + $0xa8] sm:$0xff]
        %v1627 = vld [vmem:[%s6 + $0xb0] sm:$0xff]
        %v1628 = vld [vmem:[%s6 + $0xb8] sm:$0xff]
        %v1629 = vld [vmem:[%s6 + $0xc0] sm:$0xff]
        %v1630 = vld [vmem:[%s6 + $0xc8] sm:$0xff]
        %v1631 = vld [vmem:[%s6 + $0xd0] sm:$0xff]
        %v1632 = vld [vmem:[%s6 + $0xd8] sm:$0xff]
        %v1633 = vld [vmem:[%s6 + $0xe0] sm:$0xff]
        %v1634 = vld [vmem:[%s6 + $0xe8] sm:$0xff]
        %v1635 = vld [vmem:[%s6 + $0xf0] sm:$0xff]
        %v1636 = vld [vmem:[%s6 + $0xf8] sm:$0xff]
        %1638 = vset.pattern.permute.xlu0 0
        %1639 = vperm.xlu0 %1638, %v1605
        %v1640 = vpop.permute.xlu0 %1639
        %1643 = vset.pattern.permute.xlu0 0
        %1644 = vperm.xlu0 %1643, %v1606
        %v1645 = vpop.permute.xlu0 %1644
        %1648 = vset.pattern.permute.xlu0 0
        %1649 = vperm.xlu0 %1648, %v1607
        %v1650 = vpop.permute.xlu0 %1649
        %1653 = vset.pattern.permute.xlu0 0
        %1654 = vperm.xlu0 %1653, %v1608
        %v1655 = vpop.permute.xlu0 %1654
        %1658 = vset.pattern.permute.xlu0 0
        %1659 = vperm.xlu0 %1658, %v1609
        %v1660 = vpop.permute.xlu0 %1659
        %1663 = vset.pattern.permute.xlu0 0
        %1664 = vperm.xlu0 %1663, %v1610
        %v1665 = vpop.permute.xlu0 %1664
        %1668 = vset.pattern.permute.xlu0 0
        %1669 = vperm.xlu0 %1668, %v1611
        %v1670 = vpop.permute.xlu0 %1669
        %1673 = vset.pattern.permute.xlu0 0
        %1674 = vperm.xlu0 %1673, %v1612
        %v1675 = vpop.permute.xlu0 %1674
        %1678 = vset.pattern.permute.xlu0 0
        %1679 = vperm.xlu0 %1678, %v1613
        %v1680 = vpop.permute.xlu0 %1679
        %1683 = vset.pattern.permute.xlu0 0
        %1684 = vperm.xlu0 %1683, %v1614
        %v1685 = vpop.permute.xlu0 %1684
        %1688 = vset.pattern.permute.xlu0 0
        %1689 = vperm.xlu0 %1688, %v1615
        %v1690 = vpop.permute.xlu0 %1689
        %1693 = vset.pattern.permute.xlu0 0
        %1694 = vperm.xlu0 %1693, %v1616
        %v1695 = vpop.permute.xlu0 %1694
        %1698 = vset.pattern.permute.xlu0 0
        %1699 = vperm.xlu0 %1698, %v1617
        %v1700 = vpop.permute.xlu0 %1699
        %1703 = vset.pattern.permute.xlu0 0
        %1704 = vperm.xlu0 %1703, %v1618
        %v1705 = vpop.permute.xlu0 %1704
        %1708 = vset.pattern.permute.xlu0 0
        %1709 = vperm.xlu0 %1708, %v1619
        %v1710 = vpop.permute.xlu0 %1709
        %1713 = vset.pattern.permute.xlu0 0
        %1714 = vperm.xlu0 %1713, %v1620
        %v1715 = vpop.permute.xlu0 %1714
        %1718 = vset.pattern.permute.xlu0 0
        %1719 = vperm.xlu0 %1718, %v1621
        %v1720 = vpop.permute.xlu0 %1719
        %1723 = vset.pattern.permute.xlu0 0
        %1724 = vperm.xlu0 %1723, %v1622
        %v1725 = vpop.permute.xlu0 %1724
        %1728 = vset.pattern.permute.xlu0 0
        %1729 = vperm.xlu0 %1728, %v1623
        %v1730 = vpop.permute.xlu0 %1729
        %1733 = vset.pattern.permute.xlu0 0
        %1734 = vperm.xlu0 %1733, %v1624
        %v1735 = vpop.permute.xlu0 %1734
        %1738 = vset.pattern.permute.xlu0 0
        %1739 = vperm.xlu0 %1738, %v1625
        %v1740 = vpop.permute.xlu0 %1739
        %1743 = vset.pattern.permute.xlu0 0
        %1744 = vperm.xlu0 %1743, %v1626
        %v1745 = vpop.permute.xlu0 %1744
        %1748 = vset.pattern.permute.xlu0 0
        %1749 = vperm.xlu0 %1748, %v1627
        %v1750 = vpop.permute.xlu0 %1749
        %1753 = vset.pattern.permute.xlu0 0
        %1754 = vperm.xlu0 %1753, %v1628
        %v1755 = vpop.permute.xlu0 %1754
        %1758 = vset.pattern.permute.xlu0 0
        %1759 = vperm.xlu0 %1758, %v1629
        %v1760 = vpop.permute.xlu0 %1759
        %1763 = vset.pattern.permute.xlu0 0
        %1764 = vperm.xlu0 %1763, %v1630
        %v1765 = vpop.permute.xlu0 %1764
        %1768 = vset.pattern.permute.xlu0 0
        %1769 = vperm.xlu0 %1768, %v1631
        %v1770 = vpop.permute.xlu0 %1769
        %1773 = vset.pattern.permute.xlu0 0
        %1774 = vperm.xlu0 %1773, %v1632
        %v1775 = vpop.permute.xlu0 %1774
        %1778 = vset.pattern.permute.xlu0 0
        %1779 = vperm.xlu0 %1778, %v1633
        %v1780 = vpop.permute.xlu0 %1779
        %1783 = vset.pattern.permute.xlu0 0
        %1784 = vperm.xlu0 %1783, %v1634
        %v1785 = vpop.permute.xlu0 %1784
        %1788 = vset.pattern.permute.xlu0 0
        %1789 = vperm.xlu0 %1788, %v1635
        %v1790 = vpop.permute.xlu0 %1789
        %1793 = vset.pattern.permute.xlu0 0
        %1794 = vperm.xlu0 %1793, %v1636
        %v1795 = vpop.permute.xlu0 %1794
        %v1829 = vunpack.c.l.b16 %v1573
        %v1830 = vunpack.c.l.b16 %v1574
        %v1831 = vunpack.c.l.b16 %v1575
        %v1832 = vunpack.c.l.b16 %v1576
        %v1833 = vunpack.c.l.b16 %v1577
        %v1834 = vunpack.c.l.b16 %v1578
        %v1835 = vunpack.c.l.b16 %v1579
        %v1836 = vunpack.c.l.b16 %v1580
        %v1837 = vunpack.c.l.b16 %v1581
        %v1838 = vunpack.c.l.b16 %v1582
        %v1839 = vunpack.c.l.b16 %v1583
        %v1840 = vunpack.c.l.b16 %v1584
        %v1841 = vunpack.c.l.b16 %v1585
        %v1842 = vunpack.c.l.b16 %v1586
        %v1843 = vunpack.c.l.b16 %v1587
        %v1844 = vunpack.c.l.b16 %v1588
        %v1845 = vunpack.c.l.b16 %v1589
        %v1846 = vunpack.c.l.b16 %v1590
        %v1847 = vunpack.c.l.b16 %v1591
        %v1848 = vunpack.c.l.b16 %v1592
        %v1849 = vunpack.c.l.b16 %v1593
        %v1850 = vunpack.c.l.b16 %v1594
        %v1851 = vunpack.c.l.b16 %v1595
        %v1852 = vunpack.c.l.b16 %v1596
        %v1853 = vunpack.c.l.b16 %v1597
        %v1854 = vunpack.c.l.b16 %v1598
        %v1855 = vunpack.c.l.b16 %v1599
        %v1856 = vunpack.c.l.b16 %v1600
        %v1857 = vunpack.c.l.b16 %v1601
        %v1858 = vunpack.c.l.b16 %v1602
        %v1859 = vunpack.c.l.b16 %v1603
        %v1860 = vunpack.c.l.b16 %v1604
        %v1861 = vpack.c.b16 %v1830, %v1829
        %v1862 = vpack.c.b16 %v1832, %v1831
        %v1863 = vpack.c.b16 %v1834, %v1833
        %v1864 = vpack.c.b16 %v1836, %v1835
        %v1865 = vpack.c.b16 %v1838, %v1837
        %v1866 = vpack.c.b16 %v1840, %v1839
        %v1867 = vpack.c.b16 %v1842, %v1841
        %v1868 = vpack.c.b16 %v1844, %v1843
        %v1869 = vpack.c.b16 %v1846, %v1845
        %v1870 = vpack.c.b16 %v1848, %v1847
        %v1871 = vpack.c.b16 %v1850, %v1849
        %v1872 = vpack.c.b16 %v1852, %v1851
        %v1873 = vpack.c.b16 %v1854, %v1853
        %v1874 = vpack.c.b16 %v1856, %v1855
        %v1875 = vpack.c.b16 %v1858, %v1857
        %v1876 = vpack.c.b16 %v1860, %v1859
        %1893 = vmatprep.subr.bf16.mxu0 %v1542
        %1894 = vmatpush1.bf16.msra.mxu0 %v1541
        %1895 = vmatprep.subr.bf16.mxu0 %v1546
        %1896 = vmatpush1.bf16.msra.mxu0 %v1545
        %1897 = vmatprep.subr.bf16.mxu0 %v1550
        %1898 = vmatpush1.bf16.msra.mxu0 %v1549
        %1899 = vmatprep.subr.bf16.mxu0 %v1554
        %1900 = vmatpush1.bf16.msra.mxu0 %v1553
        %1901 = vmatprep.subr.bf16.mxu0 %v1558
        %1902 = vmatpush1.bf16.msra.mxu0 %v1557
        %1903 = vmatprep.subr.bf16.mxu0 %v1562
        %1904 = vmatpush1.bf16.msra.mxu0 %v1561
        %1905 = vmatprep.subr.bf16.mxu0 %v1566
        %1906 = vmatpush1.bf16.msra.mxu0 %v1565
        %1907 = vmatprep.subr.bf16.mxu0 %v1570
        %1908 = vmatpush1.bf16.msra.mxu0 %v1569
        %1909 = vmatprep.subr.bf16.mxu0 0
        %1910 = vmatpush1.bf16.msra.mxu0 0
        %1911 = vmatprep.subr.bf16.mxu0 0
        %1912 = vmatpush1.bf16.msra.mxu0 0
        %1913 = vmatprep.subr.bf16.mxu0 0
        %1914 = vmatpush1.bf16.msra.mxu0 0
        %1915 = vmatprep.subr.bf16.mxu0 0
        %1916 = vmatpush1.bf16.msra.mxu0 0
        %1917 = vmatprep.subr.bf16.mxu0 0
        %1918 = vmatpush1.bf16.msra.mxu0 0
        %1919 = vmatprep.subr.bf16.mxu0 0
        %1920 = vmatpush1.bf16.msra.mxu0 0
        %1921 = vmatprep.subr.bf16.mxu0 0
        %1922 = vmatpush1.bf16.msra.mxu0 0
        %1923 = vmatprep.subr.bf16.mxu0 0
        %1924 = vmatpush1.bf16.msra.mxu0 0
        %1925 = vmatprep.mubr.bf16.mxu0 0
        %1926 = vmatmul.mubr.bf16.gmra.mrb[0].mxu0 %v1861
        %v1927 = vpop.f32.mrb[0].mxu0
        %v1928 = vadd.f32 %v1640, %v1927
        %v1929 = vpop.f32.mrb[0].mxu0
        %v1930 = vadd.f32 %v1640, %v1929
        %v1931 = vpop.f32.mrb[0].mxu0
        %v1932 = vadd.f32 %v1645, %v1931
        %v1933 = vpop.f32.mrb[0].mxu0
        %v1934 = vadd.f32 %v1645, %v1933
        %1935 = vmatprep.mubr.bf16.mxu0 0
        %1936 = vmatmul.mubr.bf16.gmra.mrb[0].mxu0 %v1862
        %v1937 = vpop.f32.mrb[0].mxu0
        %v1938 = vadd.f32 %v1650, %v1937
        %v1939 = vpop.f32.mrb[0].mxu0
        %v1940 = vadd.f32 %v1650, %v1939
        %v1941 = vpop.f32.mrb[0].mxu0
        %v1942 = vadd.f32 %v1655, %v1941
        %v1943 = vpop.f32.mrb[0].mxu0
        %v1944 = vadd.f32 %v1655, %v1943
        %1945 = vmatprep.mubr.bf16.mxu0 0
        %1946 = vmatmul.mubr.bf16.gmra.mrb[0].mxu0 %v1863
        %v1947 = vpop.f32.mrb[0].mxu0
        %v1948 = vadd.f32 %v1660, %v1947
        %v1949 = vpop.f32.mrb[0].mxu0
        %v1950 = vadd.f32 %v1660, %v1949
        %v1951 = vpop.f32.mrb[0].mxu0
        %v1952 = vadd.f32 %v1665, %v1951
        %v1953 = vpop.f32.mrb[0].mxu0
        %v1954 = vadd.f32 %v1665, %v1953
        %1955 = vmatprep.mubr.bf16.mxu0 0
        %1956 = vmatmul.mubr.bf16.gmra.mrb[0].mxu0 %v1864
        %v1957 = vpop.f32.mrb[0].mxu0
        %v1958 = vadd.f32 %v1670, %v1957
        %v1959 = vpop.f32.mrb[0].mxu0
        %v1960 = vadd.f32 %v1670, %v1959
        %v1961 = vpop.f32.mrb[0].mxu0
        %v1962 = vadd.f32 %v1675, %v1961
        %v1963 = vpop.f32.mrb[0].mxu0
        %v1964 = vadd.f32 %v1675, %v1963
        %1965 = vmatprep.mubr.bf16.mxu0 0
        %1966 = vmatmul.mubr.bf16.gmra.mrb[0].mxu0 %v1865
        %v1967 = vpop.f32.mrb[0].mxu0
        %v1968 = vadd.f32 %v1680, %v1967
        %v1969 = vpop.f32.mrb[0].mxu0
        %v1970 = vadd.f32 %v1680, %v1969
        %v1971 = vpop.f32.mrb[0].mxu0
        %v1972 = vadd.f32 %v1685, %v1971
        %v1973 = vpop.f32.mrb[0].mxu0
        %v1974 = vadd.f32 %v1685, %v1973
        %1975 = vmatprep.mubr.bf16.mxu0 0
        %1976 = vmatmul.mubr.bf16.gmra.mrb[0].mxu0 %v1866
        %v1977 = vpop.f32.mrb[0].mxu0
        %v1978 = vadd.f32 %v1690, %v1977
        %v1979 = vpop.f32.mrb[0].mxu0
        %v1980 = vadd.f32 %v1690, %v1979
        %v1981 = vpop.f32.mrb[0].mxu0
        %v1982 = vadd.f32 %v1695, %v1981
        %v1983 = vpop.f32.mrb[0].mxu0
        %v1984 = vadd.f32 %v1695, %v1983
        %1985 = vmatprep.mubr.bf16.mxu0 0
        %1986 = vmatmul.mubr.bf16.gmra.mrb[0].mxu0 %v1867
        %v1987 = vpop.f32.mrb[0].mxu0
        %v1988 = vadd.f32 %v1700, %v1987
        %v1989 = vpop.f32.mrb[0].mxu0
        %v1990 = vadd.f32 %v1700, %v1989
        %v1991 = vpop.f32.mrb[0].mxu0
        %v1992 = vadd.f32 %v1705, %v1991
        %v1993 = vpop.f32.mrb[0].mxu0
        %v1994 = vadd.f32 %v1705, %v1993
        %1995 = vmatprep.mubr.bf16.mxu0 0
        %1996 = vmatmul.mubr.bf16.gmra.mrb[0].mxu0 %v1868
        %v1997 = vpop.f32.mrb[0].mxu0
        %v1998 = vadd.f32 %v1710, %v1997
        %v1999 = vpop.f32.mrb[0].mxu0
        %v2000 = vadd.f32 %v1710, %v1999
        %v2001 = vpop.f32.mrb[0].mxu0
        %v2002 = vadd.f32 %v1715, %v2001
        %v2003 = vpop.f32.mrb[0].mxu0
        %v2004 = vadd.f32 %v1715, %v2003
        %2005 = vmatprep.mubr.bf16.mxu0 0
        %2006 = vmatmul.mubr.bf16.gmra.mrb[0].mxu0 %v1869
        %v2007 = vpop.f32.mrb[0].mxu0
        %v2008 = vadd.f32 %v1720, %v2007
        %v2009 = vpop.f32.mrb[0].mxu0
        %v2010 = vadd.f32 %v1720, %v2009
        %v2011 = vpop.f32.mrb[0].mxu0
        %v2012 = vadd.f32 %v1725, %v2011
        %v2013 = vpop.f32.mrb[0].mxu0
        %v2014 = vadd.f32 %v1725, %v2013
        %2015 = vmatprep.mubr.bf16.mxu0 0
        %2016 = vmatmul.mubr.bf16.gmra.mrb[0].mxu0 %v1870
        %v2017 = vpop.f32.mrb[0].mxu0
        %v2018 = vadd.f32 %v1730, %v2017
        %v2019 = vpop.f32.mrb[0].mxu0
        %v2020 = vadd.f32 %v1730, %v2019
        %v2021 = vpop.f32.mrb[0].mxu0
        %v2022 = vadd.f32 %v1735, %v2021
        %v2023 = vpop.f32.mrb[0].mxu0
        %v2024 = vadd.f32 %v1735, %v2023
        %2025 = vmatprep.mubr.bf16.mxu0 0
        %2026 = vmatmul.mubr.bf16.gmra.mrb[0].mxu0 %v1871
        %v2027 = vpop.f32.mrb[0].mxu0
        %v2028 = vadd.f32 %v1740, %v2027
        %v2029 = vpop.f32.mrb[0].mxu0
        %v2030 = vadd.f32 %v1740, %v2029
        %v2031 = vpop.f32.mrb[0].mxu0
        %v2032 = vadd.f32 %v1745, %v2031
        %v2033 = vpop.f32.mrb[0].mxu0
        %v2034 = vadd.f32 %v1745, %v2033
        %2035 = vmatprep.mubr.bf16.mxu0 0
        %2036 = vmatmul.mubr.bf16.gmra.mrb[0].mxu0 %v1872
        %v2037 = vpop.f32.mrb[0].mxu0
        %v2038 = vadd.f32 %v1750, %v2037
        %v2039 = vpop.f32.mrb[0].mxu0
        %v2040 = vadd.f32 %v1750, %v2039
        %v2041 = vpop.f32.mrb[0].mxu0
        %v2042 = vadd.f32 %v1755, %v2041
        %v2043 = vpop.f32.mrb[0].mxu0
        %v2044 = vadd.f32 %v1755, %v2043
        %2045 = vmatprep.mubr.bf16.mxu0 0
        %2046 = vmatmul.mubr.bf16.gmra.mrb[0].mxu0 %v1873
        %v2047 = vpop.f32.mrb[0].mxu0
        %v2048 = vadd.f32 %v1760, %v2047
        %v2049 = vpop.f32.mrb[0].mxu0
        %v2050 = vadd.f32 %v1760, %v2049
        %v2051 = vpop.f32.mrb[0].mxu0
        %v2052 = vadd.f32 %v1765, %v2051
        %v2053 = vpop.f32.mrb[0].mxu0
        %v2054 = vadd.f32 %v1765, %v2053
        %2055 = vmatprep.mubr.bf16.mxu0 0
        %2056 = vmatmul.mubr.bf16.gmra.mrb[0].mxu0 %v1874
        %v2057 = vpop.f32.mrb[0].mxu0
        %v2058 = vadd.f32 %v1770, %v2057
        %v2059 = vpop.f32.mrb[0].mxu0
        %v2060 = vadd.f32 %v1770, %v2059
        %v2061 = vpop.f32.mrb[0].mxu0
        %v2062 = vadd.f32 %v1775, %v2061
        %v2063 = vpop.f32.mrb[0].mxu0
        %v2064 = vadd.f32 %v1775, %v2063
        %2065 = vmatprep.mubr.bf16.mxu0 0
        %2066 = vmatmul.mubr.bf16.gmra.mrb[0].mxu0 %v1875
        %v2067 = vpop.f32.mrb[0].mxu0
        %v2068 = vadd.f32 %v1780, %v2067
        %v2069 = vpop.f32.mrb[0].mxu0
        %v2070 = vadd.f32 %v1780, %v2069
        %v2071 = vpop.f32.mrb[0].mxu0
        %v2072 = vadd.f32 %v1785, %v2071
        %v2073 = vpop.f32.mrb[0].mxu0
        %v2074 = vadd.f32 %v1785, %v2073
        %2075 = vmatprep.mubr.bf16.mxu0 0
        %2076 = vmatmul.mubr.bf16.gmra.mrb[0].mxu0 %v1876
        %v2077 = vpop.f32.mrb[0].mxu0
        %v2078 = vadd.f32 %v1790, %v2077
        %v2079 = vpop.f32.mrb[0].mxu0
        %v2080 = vadd.f32 %v1790, %v2079
        %v2081 = vpop.f32.mrb[0].mxu0
        %v2082 = vadd.f32 %v1795, %v2081
        %v2083 = vpop.f32.mrb[0].mxu0
        %v2084 = vadd.f32 %v1795, %v2083
        %2085 = vdwg.mxu0
        %2086 = vmatprep.subr.bf16.mxu0 %v1544
        %2087 = vmatpush1.bf16.msra.mxu0 %v1543
        %2088 = vmatprep.subr.bf16.mxu0 %v1548
        %2089 = vmatpush1.bf16.msra.mxu0 %v1547
        %2090 = vmatprep.subr.bf16.mxu0 %v1552
        %2091 = vmatpush1.bf16.msra.mxu0 %v1551
        %2092 = vmatprep.subr.bf16.mxu0 %v1556
        %2093 = vmatpush1.bf16.msra.mxu0 %v1555
        %2094 = vmatprep.subr.bf16.mxu0 %v1560
        %2095 = vmatpush1.bf16.msra.mxu0 %v1559
        %2096 = vmatprep.subr.bf16.mxu0 %v1564
        %2097 = vmatpush1.bf16.msra.mxu0 %v1563
        %2098 = vmatprep.subr.bf16.mxu0 %v1568
        %2099 = vmatpush1.bf16.msra.mxu0 %v1567
        %2100 = vmatprep.subr.bf16.mxu0 %v1572
        %2101 = vmatpush1.bf16.msra.mxu0 %v1571
        %2102 = vmatprep.subr.bf16.mxu0 0
        %2103 = vmatpush1.bf16.msra.mxu0 0
        %2104 = vmatprep.subr.bf16.mxu0 0
        %2105 = vmatpush1.bf16.msra.mxu0 0
        %2106 = vmatprep.subr.bf16.mxu0 0
        %2107 = vmatpush1.bf16.msra.mxu0 0
        %2108 = vmatprep.subr.bf16.mxu0 0
        %2109 = vmatpush1.bf16.msra.mxu0 0
        %2110 = vmatprep.subr.bf16.mxu0 0
        %2111 = vmatpush1.bf16.msra.mxu0 0
        %2112 = vmatprep.subr.bf16.mxu0 0
        %2113 = vmatpush1.bf16.msra.mxu0 0
        %2114 = vmatprep.subr.bf16.mxu0 0
        %2115 = vmatpush1.bf16.msra.mxu0 0
        %2116 = vmatprep.subr.bf16.mxu0 0
        %2117 = vmatpush1.bf16.msra.mxu0 0
        %2118 = vmatprep.mubr.bf16.mxu0 0
        %2119 = vmatmul.mubr.bf16.gmra.mrb[0].mxu0 %v1861
        %v2120 = vpop.f32.mrb[0].mxu0
        %v2121 = vadd.f32 %v1640, %v2120
        %v2122 = vpop.f32.mrb[0].mxu0
        %v2123 = vadd.f32 %v1640, %v2122
        %v2124 = vpop.f32.mrb[0].mxu0
        %v2125 = vadd.f32 %v1645, %v2124
        %v2126 = vpop.f32.mrb[0].mxu0
        %v2127 = vadd.f32 %v1645, %v2126
        %2128 = vmatprep.mubr.bf16.mxu0 0
        %2129 = vmatmul.mubr.bf16.gmra.mrb[0].mxu0 %v1862
        %v2130 = vpop.f32.mrb[0].mxu0
        %v2131 = vadd.f32 %v1650, %v2130
        %v2132 = vpop.f32.mrb[0].mxu0
        %v2133 = vadd.f32 %v1650, %v2132
        %v2134 = vpop.f32.mrb[0].mxu0
        %v2135 = vadd.f32 %v1655, %v2134
        %v2136 = vpop.f32.mrb[0].mxu0
        %v2137 = vadd.f32 %v1655, %v2136
        %2138 = vmatprep.mubr.bf16.mxu0 0
        %2139 = vmatmul.mubr.bf16.gmra.mrb[0].mxu0 %v1863
        %v2140 = vpop.f32.mrb[0].mxu0
        %v2141 = vadd.f32 %v1660, %v2140
        %v2142 = vpop.f32.mrb[0].mxu0
        %v2143 = vadd.f32 %v1660, %v2142
        %v2144 = vpop.f32.mrb[0].mxu0
        %v2145 = vadd.f32 %v1665, %v2144
        %v2146 = vpop.f32.mrb[0].mxu0
        %v2147 = vadd.f32 %v1665, %v2146
        %2148 = vmatprep.mubr.bf16.mxu0 0
        %2149 = vmatmul.mubr.bf16.gmra.mrb[0].mxu0 %v1864
        %v2150 = vpop.f32.mrb[0].mxu0
        %v2151 = vadd.f32 %v1670, %v2150
        %v2152 = vpop.f32.mrb[0].mxu0
        %v2153 = vadd.f32 %v1670, %v2152
        %v2154 = vpop.f32.mrb[0].mxu0
        %v2155 = vadd.f32 %v1675, %v2154
        %v2156 = vpop.f32.mrb[0].mxu0
        %v2157 = vadd.f32 %v1675, %v2156
        %2158 = vmatprep.mubr.bf16.mxu0 0
        %2159 = vmatmul.mubr.bf16.gmra.mrb[0].mxu0 %v1865
        %v2160 = vpop.f32.mrb[0].mxu0
        %v2161 = vadd.f32 %v1680, %v2160
        %v2162 = vpop.f32.mrb[0].mxu0
        %v2163 = vadd.f32 %v1680, %v2162
        %v2164 = vpop.f32.mrb[0].mxu0
        %v2165 = vadd.f32 %v1685, %v2164
        %v2166 = vpop.f32.mrb[0].mxu0
        %v2167 = vadd.f32 %v1685, %v2166
        %2168 = vmatprep.mubr.bf16.mxu0 0
        %2169 = vmatmul.mubr.bf16.gmra.mrb[0].mxu0 %v1866
        %v2170 = vpop.f32.mrb[0].mxu0
        %v2171 = vadd.f32 %v1690, %v2170
        %v2172 = vpop.f32.mrb[0].mxu0
        %v2173 = vadd.f32 %v1690, %v2172
        %v2174 = vpop.f32.mrb[0].mxu0
        %v2175 = vadd.f32 %v1695, %v2174
        %v2176 = vpop.f32.mrb[0].mxu0
        %v2177 = vadd.f32 %v1695, %v2176
        %2178 = vmatprep.mubr.bf16.mxu0 0
        %2179 = vmatmul.mubr.bf16.gmra.mrb[0].mxu0 %v1867
        %v2180 = vpop.f32.mrb[0].mxu0
        %v2181 = vadd.f32 %v1700, %v2180
        %v2182 = vpop.f32.mrb[0].mxu0
        %v2183 = vadd.f32 %v1700, %v2182
        %v2184 = vpop.f32.mrb[0].mxu0
        %v2185 = vadd.f32 %v1705, %v2184
        %v2186 = vpop.f32.mrb[0].mxu0
        %v2187 = vadd.f32 %v1705, %v2186
        %2188 = vmatprep.mubr.bf16.mxu0 0
        %2189 = vmatmul.mubr.bf16.gmra.mrb[0].mxu0 %v1868
        %v2190 = vpop.f32.mrb[0].mxu0
        %v2191 = vadd.f32 %v1710, %v2190
        %v2192 = vpop.f32.mrb[0].mxu0
        %v2193 = vadd.f32 %v1710, %v2192
        %v2194 = vpop.f32.mrb[0].mxu0
        %v2195 = vadd.f32 %v1715, %v2194
        %v2196 = vpop.f32.mrb[0].mxu0
        %v2197 = vadd.f32 %v1715, %v2196
        %2198 = vmatprep.mubr.bf16.mxu0 0
        %2199 = vmatmul.mubr.bf16.gmra.mrb[0].mxu0 %v1869
        %v2200 = vpop.f32.mrb[0].mxu0
        %v2201 = vadd.f32 %v1720, %v2200
        %v2202 = vpop.f32.mrb[0].mxu0
        %v2203 = vadd.f32 %v1720, %v2202
        %v2204 = vpop.f32.mrb[0].mxu0
        %v2205 = vadd.f32 %v1725, %v2204
        %v2206 = vpop.f32.mrb[0].mxu0
        %v2207 = vadd.f32 %v1725, %v2206
        %2208 = vmatprep.mubr.bf16.mxu0 0
        %2209 = vmatmul.mubr.bf16.gmra.mrb[0].mxu0 %v1870
        %v2210 = vpop.f32.mrb[0].mxu0
        %v2211 = vadd.f32 %v1730, %v2210
        %v2212 = vpop.f32.mrb[0].mxu0
        %v2213 = vadd.f32 %v1730, %v2212
        %v2214 = vpop.f32.mrb[0].mxu0
        %v2215 = vadd.f32 %v1735, %v2214
        %v2216 = vpop.f32.mrb[0].mxu0
        %v2217 = vadd.f32 %v1735, %v2216
        %2218 = vmatprep.mubr.bf16.mxu0 0
        %2219 = vmatmul.mubr.bf16.gmra.mrb[0].mxu0 %v1871
        %v2220 = vpop.f32.mrb[0].mxu0
        %v2221 = vadd.f32 %v1740, %v2220
        %v2222 = vpop.f32.mrb[0].mxu0
        %v2223 = vadd.f32 %v1740, %v2222
        %v2224 = vpop.f32.mrb[0].mxu0
        %v2225 = vadd.f32 %v1745, %v2224
        %v2226 = vpop.f32.mrb[0].mxu0
        %v2227 = vadd.f32 %v1745, %v2226
        %2228 = vmatprep.mubr.bf16.mxu0 0
        %2229 = vmatmul.mubr.bf16.gmra.mrb[0].mxu0 %v1872
        %v2230 = vpop.f32.mrb[0].mxu0
        %v2231 = vadd.f32 %v1750, %v2230
        %v2232 = vpop.f32.mrb[0].mxu0
        %v2233 = vadd.f32 %v1750, %v2232
        %v2234 = vpop.f32.mrb[0].mxu0
        %v2235 = vadd.f32 %v1755, %v2234
        %v2236 = vpop.f32.mrb[0].mxu0
        %v2237 = vadd.f32 %v1755, %v2236
        %2238 = vmatprep.mubr.bf16.mxu0 0
        %2239 = vmatmul.mubr.bf16.gmra.mrb[0].mxu0 %v1873
        %v2240 = vpop.f32.mrb[0].mxu0
        %v2241 = vadd.f32 %v1760, %v2240
        %v2242 = vpop.f32.mrb[0].mxu0
        %v2243 = vadd.f32 %v1760, %v2242
        %v2244 = vpop.f32.mrb[0].mxu0
        %v2245 = vadd.f32 %v1765, %v2244
        %v2246 = vpop.f32.mrb[0].mxu0
        %v2247 = vadd.f32 %v1765, %v2246
        %2248 = vmatprep.mubr.bf16.mxu0 0
        %2249 = vmatmul.mubr.bf16.gmra.mrb[0].mxu0 %v1874
        %v2250 = vpop.f32.mrb[0].mxu0
        %v2251 = vadd.f32 %v1770, %v2250
        %v2252 = vpop.f32.mrb[0].mxu0
        %v2253 = vadd.f32 %v1770, %v2252
        %v2254 = vpop.f32.mrb[0].mxu0
        %v2255 = vadd.f32 %v1775, %v2254
        %v2256 = vpop.f32.mrb[0].mxu0
        %v2257 = vadd.f32 %v1775, %v2256
        %2258 = vmatprep.mubr.bf16.mxu0 0
        %2259 = vmatmul.mubr.bf16.gmra.mrb[0].mxu0 %v1875
        %v2260 = vpop.f32.mrb[0].mxu0
        %v2261 = vadd.f32 %v1780, %v2260
        %v2262 = vpop.f32.mrb[0].mxu0
        %v2263 = vadd.f32 %v1780, %v2262
        %v2264 = vpop.f32.mrb[0].mxu0
        %v2265 = vadd.f32 %v1785, %v2264
        %v2266 = vpop.f32.mrb[0].mxu0
        %v2267 = vadd.f32 %v1785, %v2266
        %2268 = vmatprep.mubr.bf16.mxu0 0
        %2269 = vmatmul.mubr.bf16.gmra.mrb[0].mxu0 %v1876
        %v2270 = vpop.f32.mrb[0].mxu0
        %v2271 = vadd.f32 %v1790, %v2270
        %v2272 = vpop.f32.mrb[0].mxu0
        %v2273 = vadd.f32 %v1790, %v2272
        %v2274 = vpop.f32.mrb[0].mxu0
        %v2275 = vadd.f32 %v1795, %v2274
        %v2276 = vpop.f32.mrb[0].mxu0
        %v2277 = vadd.f32 %v1795, %v2276
        %2278 = vdwg.mxu0
        %v2279 = vxor.u32 %v2008, 2147483648
        %v2280 = vxor.u32 %v2010, 2147483648
        %v2281 = vxor.u32 %v2201, 2147483648
        %v2282 = vxor.u32 %v2203, 2147483648
        %v2283 = vxor.u32 %v2012, 2147483648
        %v2284 = vxor.u32 %v2014, 2147483648
        %v2285 = vxor.u32 %v2205, 2147483648
        %v2286 = vxor.u32 %v2207, 2147483648
        %v2287 = vxor.u32 %v2018, 2147483648
        %v2288 = vxor.u32 %v2020, 2147483648
        %v2289 = vxor.u32 %v2211, 2147483648
        %v2290 = vxor.u32 %v2213, 2147483648
        %v2291 = vxor.u32 %v2022, 2147483648
        %v2292 = vxor.u32 %v2024, 2147483648
        %v2293 = vxor.u32 %v2215, 2147483648
        %v2294 = vxor.u32 %v2217, 2147483648
        %v2295 = vxor.u32 %v2028, 2147483648
        %v2296 = vxor.u32 %v2030, 2147483648
        %v2297 = vxor.u32 %v2221, 2147483648
        %v2298 = vxor.u32 %v2223, 2147483648
        %v2299 = vxor.u32 %v2032, 2147483648
        %v2300 = vxor.u32 %v2034, 2147483648
        %v2301 = vxor.u32 %v2225, 2147483648
        %v2302 = vxor.u32 %v2227, 2147483648
        %v2303 = vxor.u32 %v2038, 2147483648
        %v2304 = vxor.u32 %v2040, 2147483648
        %v2305 = vxor.u32 %v2231, 2147483648
        %v2306 = vxor.u32 %v2233, 2147483648
        %v2307 = vxor.u32 %v2042, 2147483648
        %v2308 = vxor.u32 %v2044, 2147483648
        %v2309 = vxor.u32 %v2235, 2147483648
        %v2310 = vxor.u32 %v2237, 2147483648
        %v2311 = vxor.u32 %v2048, 2147483648
        %v2312 = vxor.u32 %v2050, 2147483648
        %v2313 = vxor.u32 %v2241, 2147483648
        %v2314 = vxor.u32 %v2243, 2147483648
        %v2315 = vxor.u32 %v2052, 2147483648
        %v2316 = vxor.u32 %v2054, 2147483648
        %v2317 = vxor.u32 %v2245, 2147483648
        %v2318 = vxor.u32 %v2247, 2147483648
        %v2319 = vxor.u32 %v2058, 2147483648
        %v2320 = vxor.u32 %v2060, 2147483648
        %v2321 = vxor.u32 %v2251, 2147483648
        %v2322 = vxor.u32 %v2253, 2147483648
        %v2323 = vxor.u32 %v2062, 2147483648
        %v2324 = vxor.u32 %v2064, 2147483648
        %v2325 = vxor.u32 %v2255, 2147483648
        %v2326 = vxor.u32 %v2257, 2147483648
        %v2327 = vxor.u32 %v2068, 2147483648
        %v2328 = vxor.u32 %v2070, 2147483648
        %v2329 = vxor.u32 %v2261, 2147483648
        %v2330 = vxor.u32 %v2263, 2147483648
        %v2331 = vxor.u32 %v2072, 2147483648
        %v2332 = vxor.u32 %v2074, 2147483648
        %v2333 = vxor.u32 %v2265, 2147483648
        %v2334 = vxor.u32 %v2267, 2147483648
        %v2335 = vxor.u32 %v2078, 2147483648
        %v2336 = vxor.u32 %v2080, 2147483648
        %v2337 = vxor.u32 %v2271, 2147483648
        %v2338 = vxor.u32 %v2273, 2147483648
        %v2339 = vxor.u32 %v2082, 2147483648
        %v2340 = vxor.u32 %v2084, 2147483648
        %v2341 = vxor.u32 %v2275, 2147483648
        %v2342 = vxor.u32 %v2277, 2147483648
        %v2343 = vmul.f32 %v2279, 1.442695
        %v2344 = vpow.pop %v2343
        %v2345 = vmul.f32 %v2280, 1.442695
        %v2346 = vpow.pop %v2345
        %v2347 = vmul.f32 %v2281, 1.442695
        %v2348 = vpow.pop %v2347
        %v2349 = vmul.f32 %v2282, 1.442695
        %v2350 = vpow.pop %v2349
        %v2351 = vmul.f32 %v2283, 1.442695
        %v2352 = vpow.pop %v2351
        %v2353 = vmul.f32 %v2284, 1.442695
        %v2354 = vpow.pop %v2353
        %v2355 = vmul.f32 %v2285, 1.442695
        %v2356 = vpow.pop %v2355
        %v2357 = vmul.f32 %v2286, 1.442695
        %v2358 = vpow.pop %v2357
        %v2359 = vmul.f32 %v2287, 1.442695
        %v2360 = vpow.pop %v2359
        %v2361 = vmul.f32 %v2288, 1.442695
        %v2362 = vpow.pop %v2361
        %v2363 = vmul.f32 %v2289, 1.442695
        %v2364 = vpow.pop %v2363
        %v2365 = vmul.f32 %v2290, 1.442695
        %v2366 = vpow.pop %v2365
        %v2367 = vmul.f32 %v2291, 1.442695
        %v2368 = vpow.pop %v2367
        %v2369 = vmul.f32 %v2292, 1.442695
        %v2370 = vpow.pop %v2369
        %v2371 = vmul.f32 %v2293, 1.442695
        %v2372 = vpow.pop %v2371
        %v2373 = vmul.f32 %v2294, 1.442695
        %v2374 = vpow.pop %v2373
        %v2375 = vmul.f32 %v2295, 1.442695
        %v2376 = vpow.pop %v2375
        %v2377 = vmul.f32 %v2296, 1.442695
        %v2378 = vpow.pop %v2377
        %v2379 = vmul.f32 %v2297, 1.442695
        %v2380 = vpow.pop %v2379
        %v2381 = vmul.f32 %v2298, 1.442695
        %v2382 = vpow.pop %v2381
        %v2383 = vmul.f32 %v2299, 1.442695
        %v2384 = vpow.pop %v2383
        %v2385 = vmul.f32 %v2300, 1.442695
        %v2386 = vpow.pop %v2385
        %v2387 = vmul.f32 %v2301, 1.442695
        %v2388 = vpow.pop %v2387
        %v2389 = vmul.f32 %v2302, 1.442695
        %v2390 = vpow.pop %v2389
        %v2391 = vmul.f32 %v2303, 1.442695
        %v2392 = vpow.pop %v2391
        %v2393 = vmul.f32 %v2304, 1.442695
        %v2394 = vpow.pop %v2393
        %v2395 = vmul.f32 %v2305, 1.442695
        %v2396 = vpow.pop %v2395
        %v2397 = vmul.f32 %v2306, 1.442695
        %v2398 = vpow.pop %v2397
        %v2399 = vmul.f32 %v2307, 1.442695
        %v2400 = vpow.pop %v2399
        %v2401 = vmul.f32 %v2308, 1.442695
        %v2402 = vpow.pop %v2401
        %v2403 = vmul.f32 %v2309, 1.442695
        %v2404 = vpow.pop %v2403
        %v2405 = vmul.f32 %v2310, 1.442695
        %v2406 = vpow.pop %v2405
        %v2407 = vmul.f32 %v2311, 1.442695
        %v2408 = vpow.pop %v2407
        %v2409 = vmul.f32 %v2312, 1.442695
        %v2410 = vpow.pop %v2409
        %v2411 = vmul.f32 %v2313, 1.442695
        %v2412 = vpow.pop %v2411
        %v2413 = vmul.f32 %v2314, 1.442695
        %v2414 = vpow.pop %v2413
        %v2415 = vmul.f32 %v2315, 1.442695
        %v2416 = vpow.pop %v2415
        %v2417 = vmul.f32 %v2316, 1.442695
        %v2418 = vpow.pop %v2417
        %v2419 = vmul.f32 %v2317, 1.442695
        %v2420 = vpow.pop %v2419
        %v2421 = vmul.f32 %v2318, 1.442695
        %v2422 = vpow.pop %v2421
        %v2423 = vmul.f32 %v2319, 1.442695
        %v2424 = vpow.pop %v2423
        %v2425 = vmul.f32 %v2320, 1.442695
        %v2426 = vpow.pop %v2425
        %v2427 = vmul.f32 %v2321, 1.442695
        %v2428 = vpow.pop %v2427
        %v2429 = vmul.f32 %v2322, 1.442695
        %v2430 = vpow.pop %v2429
        %v2431 = vmul.f32 %v2323, 1.442695
        %v2432 = vpow.pop %v2431
        %v2433 = vmul.f32 %v2324, 1.442695
        %v2434 = vpow.pop %v2433
        %v2435 = vmul.f32 %v2325, 1.442695
        %v2436 = vpow.pop %v2435
        %v2437 = vmul.f32 %v2326, 1.442695
        %v2438 = vpow.pop %v2437
        %v2439 = vmul.f32 %v2327, 1.442695
        %v2440 = vpow.pop %v2439
        %v2441 = vmul.f32 %v2328, 1.442695
        %v2442 = vpow.pop %v2441
        %v2443 = vmul.f32 %v2329, 1.442695
        %v2444 = vpow.pop %v2443
        %v2445 = vmul.f32 %v2330, 1.442695
        %v2446 = vpow.pop %v2445
        %v2447 = vmul.f32 %v2331, 1.442695
        %v2448 = vpow.pop %v2447
        %v2449 = vmul.f32 %v2332, 1.442695
        %v2450 = vpow.pop %v2449
        %v2451 = vmul.f32 %v2333, 1.442695
        %v2452 = vpow.pop %v2451
        %v2453 = vmul.f32 %v2334, 1.442695
        %v2454 = vpow.pop %v2453
        %v2455 = vmul.f32 %v2335, 1.442695
        %v2456 = vpow.pop %v2455
        %v2457 = vmul.f32 %v2336, 1.442695
        %v2458 = vpow.pop %v2457
        %v2459 = vmul.f32 %v2337, 1.442695
        %v2460 = vpow.pop %v2459
        %v2461 = vmul.f32 %v2338, 1.442695
        %v2462 = vpow.pop %v2461
        %v2463 = vmul.f32 %v2339, 1.442695
        %v2464 = vpow.pop %v2463
        %v2465 = vmul.f32 %v2340, 1.442695
        %v2466 = vpow.pop %v2465
        %v2467 = vmul.f32 %v2341, 1.442695
        %v2468 = vpow.pop %v2467
        %v2469 = vmul.f32 %v2342, 1.442695
        %v2470 = vpow.pop %v2469
        %v2471 = vadd.f32 %v2344, 1.0
        %v2472 = vadd.f32 %v2346, 1.0
        %v2473 = vadd.f32 %v2348, 1.0
        %v2474 = vadd.f32 %v2350, 1.0
        %v2475 = vadd.f32 %v2352, 1.0
        %v2476 = vadd.f32 %v2354, 1.0
        %v2477 = vadd.f32 %v2356, 1.0
        %v2478 = vadd.f32 %v2358, 1.0
        %v2479 = vadd.f32 %v2360, 1.0
        %v2480 = vadd.f32 %v2362, 1.0
        %v2481 = vadd.f32 %v2364, 1.0
        %v2482 = vadd.f32 %v2366, 1.0
        %v2483 = vadd.f32 %v2368, 1.0
        %v2484 = vadd.f32 %v2370, 1.0
        %v2485 = vadd.f32 %v2372, 1.0
        %v2486 = vadd.f32 %v2374, 1.0
        %v2487 = vadd.f32 %v2376, 1.0
        %v2488 = vadd.f32 %v2378, 1.0
        %v2489 = vadd.f32 %v2380, 1.0
        %v2490 = vadd.f32 %v2382, 1.0
        %v2491 = vadd.f32 %v2384, 1.0
        %v2492 = vadd.f32 %v2386, 1.0
        %v2493 = vadd.f32 %v2388, 1.0
        %v2494 = vadd.f32 %v2390, 1.0
        %v2495 = vadd.f32 %v2392, 1.0
        %v2496 = vadd.f32 %v2394, 1.0
        %v2497 = vadd.f32 %v2396, 1.0
        %v2498 = vadd.f32 %v2398, 1.0
        %v2499 = vadd.f32 %v2400, 1.0
        %v2500 = vadd.f32 %v2402, 1.0
        %v2501 = vadd.f32 %v2404, 1.0
        %v2502 = vadd.f32 %v2406, 1.0
        %v2503 = vadd.f32 %v2408, 1.0
        %v2504 = vadd.f32 %v2410, 1.0
        %v2505 = vadd.f32 %v2412, 1.0
        %v2506 = vadd.f32 %v2414, 1.0
        %v2507 = vadd.f32 %v2416, 1.0
        %v2508 = vadd.f32 %v2418, 1.0
        %v2509 = vadd.f32 %v2420, 1.0
        %v2510 = vadd.f32 %v2422, 1.0
        %v2511 = vadd.f32 %v2424, 1.0
        %v2512 = vadd.f32 %v2426, 1.0
        %v2513 = vadd.f32 %v2428, 1.0
        %v2514 = vadd.f32 %v2430, 1.0
        %v2515 = vadd.f32 %v2432, 1.0
        %v2516 = vadd.f32 %v2434, 1.0
        %v2517 = vadd.f32 %v2436, 1.0
        %v2518 = vadd.f32 %v2438, 1.0
        %v2519 = vadd.f32 %v2440, 1.0
        %v2520 = vadd.f32 %v2442, 1.0
        %v2521 = vadd.f32 %v2444, 1.0
        %v2522 = vadd.f32 %v2446, 1.0
        %v2523 = vadd.f32 %v2448, 1.0
        %v2524 = vadd.f32 %v2450, 1.0
        %v2525 = vadd.f32 %v2452, 1.0
        %v2526 = vadd.f32 %v2454, 1.0
        %v2527 = vadd.f32 %v2456, 1.0
        %v2528 = vadd.f32 %v2458, 1.0
        %v2529 = vadd.f32 %v2460, 1.0
        %v2530 = vadd.f32 %v2462, 1.0
        %v2531 = vadd.f32 %v2464, 1.0
        %v2532 = vadd.f32 %v2466, 1.0
        %v2533 = vadd.f32 %v2468, 1.0
        %v2534 = vadd.f32 %v2470, 1.0
        %v2535 = vrcp.pop %v2471
        %v2536 = vmul.f32 1.0, %v2535
        %v2537 = vrcp.pop %v2472
        %v2538 = vmul.f32 1.0, %v2537
        %v2539 = vrcp.pop %v2473
        %v2540 = vmul.f32 1.0, %v2539
        %v2541 = vrcp.pop %v2474
        %v2542 = vmul.f32 1.0, %v2541
        %v2543 = vrcp.pop %v2475
        %v2544 = vmul.f32 1.0, %v2543
        %v2545 = vrcp.pop %v2476
        %v2546 = vmul.f32 1.0, %v2545
        %v2547 = vrcp.pop %v2477
        %v2548 = vmul.f32 1.0, %v2547
        %v2549 = vrcp.pop %v2478
        %v2550 = vmul.f32 1.0, %v2549
        %v2551 = vrcp.pop %v2479
        %v2552 = vmul.f32 1.0, %v2551
        %v2553 = vrcp.pop %v2480
        %v2554 = vmul.f32 1.0, %v2553
        %v2555 = vrcp.pop %v2481
        %v2556 = vmul.f32 1.0, %v2555
        %v2557 = vrcp.pop %v2482
        %v2558 = vmul.f32 1.0, %v2557
        %v2559 = vrcp.pop %v2483
        %v2560 = vmul.f32 1.0, %v2559
        %v2561 = vrcp.pop %v2484
        %v2562 = vmul.f32 1.0, %v2561
        %v2563 = vrcp.pop %v2485
        %v2564 = vmul.f32 1.0, %v2563
        %v2565 = vrcp.pop %v2486
        %v2566 = vmul.f32 1.0, %v2565
        %v2567 = vrcp.pop %v2487
        %v2568 = vmul.f32 1.0, %v2567
        %v2569 = vrcp.pop %v2488
        %v2570 = vmul.f32 1.0, %v2569
        %v2571 = vrcp.pop %v2489
        %v2572 = vmul.f32 1.0, %v2571
        %v2573 = vrcp.pop %v2490
        %v2574 = vmul.f32 1.0, %v2573
        %v2575 = vrcp.pop %v2491
        %v2576 = vmul.f32 1.0, %v2575
        %v2577 = vrcp.pop %v2492
        %v2578 = vmul.f32 1.0, %v2577
        %v2579 = vrcp.pop %v2493
        %v2580 = vmul.f32 1.0, %v2579
        %v2581 = vrcp.pop %v2494
        %v2582 = vmul.f32 1.0, %v2581
        %v2583 = vrcp.pop %v2495
        %v2584 = vmul.f32 1.0, %v2583
        %v2585 = vrcp.pop %v2496
        %v2586 = vmul.f32 1.0, %v2585
        %v2587 = vrcp.pop %v2497
        %v2588 = vmul.f32 1.0, %v2587
        %v2589 = vrcp.pop %v2498
        %v2590 = vmul.f32 1.0, %v2589
        %v2591 = vrcp.pop %v2499
        %v2592 = vmul.f32 1.0, %v2591
        %v2593 = vrcp.pop %v2500
        %v2594 = vmul.f32 1.0, %v2593
        %v2595 = vrcp.pop %v2501
        %v2596 = vmul.f32 1.0, %v2595
        %v2597 = vrcp.pop %v2502
        %v2598 = vmul.f32 1.0, %v2597
        %v2599 = vrcp.pop %v2503
        %v2600 = vmul.f32 1.0, %v2599
        %v2601 = vrcp.pop %v2504
        %v2602 = vmul.f32 1.0, %v2601
        %v2603 = vrcp.pop %v2505
        %v2604 = vmul.f32 1.0, %v2603
        %v2605 = vrcp.pop %v2506
        %v2606 = vmul.f32 1.0, %v2605
        %v2607 = vrcp.pop %v2507
        %v2608 = vmul.f32 1.0, %v2607
        %v2609 = vrcp.pop %v2508
        %v2610 = vmul.f32 1.0, %v2609
        %v2611 = vrcp.pop %v2509
        %v2612 = vmul.f32 1.0, %v2611
        %v2613 = vrcp.pop %v2510
        %v2614 = vmul.f32 1.0, %v2613
        %v2615 = vrcp.pop %v2511
        %v2616 = vmul.f32 1.0, %v2615
        %v2617 = vrcp.pop %v2512
        %v2618 = vmul.f32 1.0, %v2617
        %v2619 = vrcp.pop %v2513
        %v2620 = vmul.f32 1.0, %v2619
        %v2621 = vrcp.pop %v2514
        %v2622 = vmul.f32 1.0, %v2621
        %v2623 = vrcp.pop %v2515
        %v2624 = vmul.f32 1.0, %v2623
        %v2625 = vrcp.pop %v2516
        %v2626 = vmul.f32 1.0, %v2625
        %v2627 = vrcp.pop %v2517
        %v2628 = vmul.f32 1.0, %v2627
        %v2629 = vrcp.pop %v2518
        %v2630 = vmul.f32 1.0, %v2629
        %v2631 = vrcp.pop %v2519
        %v2632 = vmul.f32 1.0, %v2631
        %v2633 = vrcp.pop %v2520
        %v2634 = vmul.f32 1.0, %v2633
        %v2635 = vrcp.pop %v2521
        %v2636 = vmul.f32 1.0, %v2635
        %v2637 = vrcp.pop %v2522
        %v2638 = vmul.f32 1.0, %v2637
        %v2639 = vrcp.pop %v2523
        %v2640 = vmul.f32 1.0, %v2639
        %v2641 = vrcp.pop %v2524
        %v2642 = vmul.f32 1.0, %v2641
        %v2643 = vrcp.pop %v2525
        %v2644 = vmul.f32 1.0, %v2643
        %v2645 = vrcp.pop %v2526
        %v2646 = vmul.f32 1.0, %v2645
        %v2647 = vrcp.pop %v2527
        %v2648 = vmul.f32 1.0, %v2647
        %v2649 = vrcp.pop %v2528
        %v2650 = vmul.f32 1.0, %v2649
        %v2651 = vrcp.pop %v2529
        %v2652 = vmul.f32 1.0, %v2651
        %v2653 = vrcp.pop %v2530
        %v2654 = vmul.f32 1.0, %v2653
        %v2655 = vrcp.pop %v2531
        %v2656 = vmul.f32 1.0, %v2655
        %v2657 = vrcp.pop %v2532
        %v2658 = vmul.f32 1.0, %v2657
        %v2659 = vrcp.pop %v2533
        %v2660 = vmul.f32 1.0, %v2659
        %v2661 = vrcp.pop %v2534
        %v2662 = vmul.f32 1.0, %v2661
        %v2663 = vmul.f32 %v1928, %v2536
        %v2664 = vmul.f32 %v1930, %v2538
        %v2665 = vmul.f32 %v2121, %v2540
        %v2666 = vmul.f32 %v2123, %v2542
        %v2667 = vmul.f32 %v1932, %v2544
        %v2668 = vmul.f32 %v1934, %v2546
        %v2669 = vmul.f32 %v2125, %v2548
        %v2670 = vmul.f32 %v2127, %v2550
        %v2671 = vmul.f32 %v1938, %v2552
        %v2672 = vmul.f32 %v1940, %v2554
        %v2673 = vmul.f32 %v2131, %v2556
        %v2674 = vmul.f32 %v2133, %v2558
        %v2675 = vmul.f32 %v1942, %v2560
        %v2676 = vmul.f32 %v1944, %v2562
        %v2677 = vmul.f32 %v2135, %v2564
        %v2678 = vmul.f32 %v2137, %v2566
        %v2679 = vmul.f32 %v1948, %v2568
        %v2680 = vmul.f32 %v1950, %v2570
        %v2681 = vmul.f32 %v2141, %v2572
        %v2682 = vmul.f32 %v2143, %v2574
        %v2683 = vmul.f32 %v1952, %v2576
        %v2684 = vmul.f32 %v1954, %v2578
        %v2685 = vmul.f32 %v2145, %v2580
        %v2686 = vmul.f32 %v2147, %v2582
        %v2687 = vmul.f32 %v1958, %v2584
        %v2688 = vmul.f32 %v1960, %v2586
        %v2689 = vmul.f32 %v2151, %v2588
        %v2690 = vmul.f32 %v2153, %v2590
        %v2691 = vmul.f32 %v1962, %v2592
        %v2692 = vmul.f32 %v1964, %v2594
        %v2693 = vmul.f32 %v2155, %v2596
        %v2694 = vmul.f32 %v2157, %v2598
        %v2695 = vmul.f32 %v1968, %v2600
        %v2696 = vmul.f32 %v1970, %v2602
        %v2697 = vmul.f32 %v2161, %v2604
        %v2698 = vmul.f32 %v2163, %v2606
        %v2699 = vmul.f32 %v1972, %v2608
        %v2700 = vmul.f32 %v1974, %v2610
        %v2701 = vmul.f32 %v2165, %v2612
        %v2702 = vmul.f32 %v2167, %v2614
        %v2703 = vmul.f32 %v1978, %v2616
        %v2704 = vmul.f32 %v1980, %v2618
        %v2705 = vmul.f32 %v2171, %v2620
        %v2706 = vmul.f32 %v2173, %v2622
        %v2707 = vmul.f32 %v1982, %v2624
        %v2708 = vmul.f32 %v1984, %v2626
        %v2709 = vmul.f32 %v2175, %v2628
        %v2710 = vmul.f32 %v2177, %v2630
        %v2711 = vmul.f32 %v1988, %v2632
        %v2712 = vmul.f32 %v1990, %v2634
        %v2713 = vmul.f32 %v2181, %v2636
        %v2714 = vmul.f32 %v2183, %v2638
        %v2715 = vmul.f32 %v1992, %v2640
        %v2716 = vmul.f32 %v1994, %v2642
        %v2717 = vmul.f32 %v2185, %v2644
        %v2718 = vmul.f32 %v2187, %v2646
        %v2719 = vmul.f32 %v1998, %v2648
        %v2720 = vmul.f32 %v2000, %v2650
        %v2721 = vmul.f32 %v2191, %v2652
        %v2722 = vmul.f32 %v2193, %v2654
        %v2723 = vmul.f32 %v2002, %v2656
        %v2724 = vmul.f32 %v2004, %v2658
        %v2725 = vmul.f32 %v2195, %v2660
        %v2726 = vmul.f32 %v2197, %v2662
        %v2727 = vsel %vm840, 1, 0
        %v2728 = vsel %vm841, 1, 0
        %v2729 = vsel %vm842, 1, 0
        %v2730 = vsel %vm843, 1, 0
        %vm2731 = vcmp.eq.s32.totalorder %v2727, 1
        %vm2732 = vcmp.eq.s32.totalorder %v2728, 1
        %vm2733 = vcmp.eq.s32.totalorder %v2729, 1
        %vm2734 = vcmp.eq.s32.totalorder %v2730, 1
        %v2735 = vsel %vm2731, %v2663, 0.0
        %v2736 = vsel %vm2732, %v2664, 0.0
        %v2737 = vsel %vm2733, %v2665, 0.0
        %v2738 = vsel %vm2734, %v2666, 0.0
        %v2739 = vsel %vm2731, %v2667, 0.0
        %v2740 = vsel %vm2732, %v2668, 0.0
        %v2741 = vsel %vm2733, %v2669, 0.0
        %v2742 = vsel %vm2734, %v2670, 0.0
        %v2743 = vsel %vm2731, %v2671, 0.0
        %v2744 = vsel %vm2732, %v2672, 0.0
        %v2745 = vsel %vm2733, %v2673, 0.0
        %v2746 = vsel %vm2734, %v2674, 0.0
        %v2747 = vsel %vm2731, %v2675, 0.0
        %v2748 = vsel %vm2732, %v2676, 0.0
        %v2749 = vsel %vm2733, %v2677, 0.0
        %v2750 = vsel %vm2734, %v2678, 0.0
        %v2751 = vsel %vm2731, %v2679, 0.0
        %v2752 = vsel %vm2732, %v2680, 0.0
        %v2753 = vsel %vm2733, %v2681, 0.0
        %v2754 = vsel %vm2734, %v2682, 0.0
        %v2755 = vsel %vm2731, %v2683, 0.0
        %v2756 = vsel %vm2732, %v2684, 0.0
        %v2757 = vsel %vm2733, %v2685, 0.0
        %v2758 = vsel %vm2734, %v2686, 0.0
        %v2759 = vsel %vm2731, %v2687, 0.0
        %v2760 = vsel %vm2732, %v2688, 0.0
        %v2761 = vsel %vm2733, %v2689, 0.0
        %v2762 = vsel %vm2734, %v2690, 0.0
        %v2763 = vsel %vm2731, %v2691, 0.0
        %v2764 = vsel %vm2732, %v2692, 0.0
        %v2765 = vsel %vm2733, %v2693, 0.0
        %v2766 = vsel %vm2734, %v2694, 0.0
        %v2767 = vsel %vm2731, %v2695, 0.0
        %v2768 = vsel %vm2732, %v2696, 0.0
        %v2769 = vsel %vm2733, %v2697, 0.0
        %v2770 = vsel %vm2734, %v2698, 0.0
        %v2771 = vsel %vm2731, %v2699, 0.0
        %v2772 = vsel %vm2732, %v2700, 0.0
        %v2773 = vsel %vm2733, %v2701, 0.0
        %v2774 = vsel %vm2734, %v2702, 0.0
        %v2775 = vsel %vm2731, %v2703, 0.0
        %v2776 = vsel %vm2732, %v2704, 0.0
        %v2777 = vsel %vm2733, %v2705, 0.0
        %v2778 = vsel %vm2734, %v2706, 0.0
        %v2779 = vsel %vm2731, %v2707, 0.0
        %v2780 = vsel %vm2732, %v2708, 0.0
        %v2781 = vsel %vm2733, %v2709, 0.0
        %v2782 = vsel %vm2734, %v2710, 0.0
        %v2783 = vsel %vm2731, %v2711, 0.0
        %v2784 = vsel %vm2732, %v2712, 0.0
        %v2785 = vsel %vm2733, %v2713, 0.0
        %v2786 = vsel %vm2734, %v2714, 0.0
        %v2787 = vsel %vm2731, %v2715, 0.0
        %v2788 = vsel %vm2732, %v2716, 0.0
        %v2789 = vsel %vm2733, %v2717, 0.0
        %v2790 = vsel %vm2734, %v2718, 0.0
        %v2791 = vsel %vm2731, %v2719, 0.0
        %v2792 = vsel %vm2732, %v2720, 0.0
        %v2793 = vsel %vm2733, %v2721, 0.0
        %v2794 = vsel %vm2734, %v2722, 0.0
        %v2795 = vsel %vm2731, %v2723, 0.0
        %v2796 = vsel %vm2732, %v2724, 0.0
        %v2797 = vsel %vm2733, %v2725, 0.0
        %v2798 = vsel %vm2734, %v2726, 0.0
        %2799 = vrot.lane.b32.xlu0 %v2735, 3
        %v2800 = vpop.permute.xlu0 %2799
        %2801 = vrot.lane.b32.xlu0 %v2739, 3
        %v2802 = vpop.permute.xlu0 %2801
        %2803 = vrot.lane.b32.xlu0 %v2743, 3
        %v2804 = vpop.permute.xlu0 %2803
        %2805 = vrot.lane.b32.xlu0 %v2747, 3
        %v2806 = vpop.permute.xlu0 %2805
        %2807 = vrot.lane.b32.xlu0 %v2751, 3
        %v2808 = vpop.permute.xlu0 %2807
        %2809 = vrot.lane.b32.xlu0 %v2755, 3
        %v2810 = vpop.permute.xlu0 %2809
        %2811 = vrot.lane.b32.xlu0 %v2759, 3
        %v2812 = vpop.permute.xlu0 %2811
        %2813 = vrot.lane.b32.xlu0 %v2763, 3
        %v2814 = vpop.permute.xlu0 %2813
        %2815 = vrot.lane.b32.xlu0 %v2767, 3
        %v2816 = vpop.permute.xlu0 %2815
        %2817 = vrot.lane.b32.xlu0 %v2771, 3
        %v2818 = vpop.permute.xlu0 %2817
        %2819 = vrot.lane.b32.xlu0 %v2775, 3
        %v2820 = vpop.permute.xlu0 %2819
        %2821 = vrot.lane.b32.xlu0 %v2779, 3
        %v2822 = vpop.permute.xlu0 %2821
        %2823 = vrot.lane.b32.xlu0 %v2783, 3
        %v2824 = vpop.permute.xlu0 %2823
        %2825 = vrot.lane.b32.xlu0 %v2787, 3
        %v2826 = vpop.permute.xlu0 %2825
        %2827 = vrot.lane.b32.xlu0 %v2791, 3
        %v2828 = vpop.permute.xlu0 %2827
        %2829 = vrot.lane.b32.xlu0 %v2795, 3
        %v2830 = vpop.permute.xlu0 %2829
        %2831 = vrot.lane.b32.xlu0 %v2736, 3
        %v2832 = vpop.permute.xlu0 %2831
        %2833 = vrot.lane.b32.xlu0 %v2740, 3
        %v2834 = vpop.permute.xlu0 %2833
        %2835 = vrot.lane.b32.xlu0 %v2744, 3
        %v2836 = vpop.permute.xlu0 %2835
        %2837 = vrot.lane.b32.xlu0 %v2748, 3
        %v2838 = vpop.permute.xlu0 %2837
        %2839 = vrot.lane.b32.xlu0 %v2752, 3
        %v2840 = vpop.permute.xlu0 %2839
        %2841 = vrot.lane.b32.xlu0 %v2756, 3
        %v2842 = vpop.permute.xlu0 %2841
        %2843 = vrot.lane.b32.xlu0 %v2760, 3
        %v2844 = vpop.permute.xlu0 %2843
        %2845 = vrot.lane.b32.xlu0 %v2764, 3
        %v2846 = vpop.permute.xlu0 %2845
        %2847 = vrot.lane.b32.xlu0 %v2768, 3
        %v2848 = vpop.permute.xlu0 %2847
        %2849 = vrot.lane.b32.xlu0 %v2772, 3
        %v2850 = vpop.permute.xlu0 %2849
        %2851 = vrot.lane.b32.xlu0 %v2776, 3
        %v2852 = vpop.permute.xlu0 %2851
        %2853 = vrot.lane.b32.xlu0 %v2780, 3
        %v2854 = vpop.permute.xlu0 %2853
        %2855 = vrot.lane.b32.xlu0 %v2784, 3
        %v2856 = vpop.permute.xlu0 %2855
        %2857 = vrot.lane.b32.xlu0 %v2788, 3
        %v2858 = vpop.permute.xlu0 %2857
        %2859 = vrot.lane.b32.xlu0 %v2792, 3
        %v2860 = vpop.permute.xlu0 %2859
        %2861 = vrot.lane.b32.xlu0 %v2796, 3
        %v2862 = vpop.permute.xlu0 %2861
        %2863 = vrot.lane.b32.xlu0 %v2737, 3
        %v2864 = vpop.permute.xlu0 %2863
        %2865 = vrot.lane.b32.xlu0 %v2741, 3
        %v2866 = vpop.permute.xlu0 %2865
        %2867 = vrot.lane.b32.xlu0 %v2745, 3
        %v2868 = vpop.permute.xlu0 %2867
        %2869 = vrot.lane.b32.xlu0 %v2749, 3
        %v2870 = vpop.permute.xlu0 %2869
        %2871 = vrot.lane.b32.xlu0 %v2753, 3
        %v2872 = vpop.permute.xlu0 %2871
        %2873 = vrot.lane.b32.xlu0 %v2757, 3
        %v2874 = vpop.permute.xlu0 %2873
        %2875 = vrot.lane.b32.xlu0 %v2761, 3
        %v2876 = vpop.permute.xlu0 %2875
        %2877 = vrot.lane.b32.xlu0 %v2765, 3
        %v2878 = vpop.permute.xlu0 %2877
        %2879 = vrot.lane.b32.xlu0 %v2769, 3
        %v2880 = vpop.permute.xlu0 %2879
        %2881 = vrot.lane.b32.xlu0 %v2773, 3
        %v2882 = vpop.permute.xlu0 %2881
        %2883 = vrot.lane.b32.xlu0 %v2777, 3
        %v2884 = vpop.permute.xlu0 %2883
        %2885 = vrot.lane.b32.xlu0 %v2781, 3
        %v2886 = vpop.permute.xlu0 %2885
        %2887 = vrot.lane.b32.xlu0 %v2785, 3
        %v2888 = vpop.permute.xlu0 %2887
        %2889 = vrot.lane.b32.xlu0 %v2789, 3
        %v2890 = vpop.permute.xlu0 %2889
        %2891 = vrot.lane.b32.xlu0 %v2793, 3
        %v2892 = vpop.permute.xlu0 %2891
        %2893 = vrot.lane.b32.xlu0 %v2797, 3
        %v2894 = vpop.permute.xlu0 %2893
        %vm2895 = vcmp.lt.s32.totalorder %v823, 3
        %v2896 = vsel %vm2895, %v2832, %v2864
        %v2897 = vsel %vm2895, %v2834, %v2866
        %v2898 = vsel %vm2895, %v2836, %v2868
        %v2899 = vsel %vm2895, %v2838, %v2870
        %v2900 = vsel %vm2895, %v2840, %v2872
        %v2901 = vsel %vm2895, %v2842, %v2874
        %v2902 = vsel %vm2895, %v2844, %v2876
        %v2903 = vsel %vm2895, %v2846, %v2878
        %v2904 = vsel %vm2895, %v2848, %v2880
        %v2905 = vsel %vm2895, %v2850, %v2882
        %v2906 = vsel %vm2895, %v2852, %v2884
        %v2907 = vsel %vm2895, %v2854, %v2886
        %v2908 = vsel %vm2895, %v2856, %v2888
        %v2909 = vsel %vm2895, %v2858, %v2890
        %v2910 = vsel %vm2895, %v2860, %v2892
        %v2911 = vsel %vm2895, %v2862, %v2894
        %v2912 = vsel %vm2895, %v2800, %v2832
        %v2913 = vsel %vm2895, %v2802, %v2834
        %v2914 = vsel %vm2895, %v2804, %v2836
        %v2915 = vsel %vm2895, %v2806, %v2838
        %v2916 = vsel %vm2895, %v2808, %v2840
        %v2917 = vsel %vm2895, %v2810, %v2842
        %v2918 = vsel %vm2895, %v2812, %v2844
        %v2919 = vsel %vm2895, %v2814, %v2846
        %v2920 = vsel %vm2895, %v2816, %v2848
        %v2921 = vsel %vm2895, %v2818, %v2850
        %v2922 = vsel %vm2895, %v2820, %v2852
        %v2923 = vsel %vm2895, %v2822, %v2854
        %v2924 = vsel %vm2895, %v2824, %v2856
        %v2925 = vsel %vm2895, %v2826, %v2858
        %v2926 = vsel %vm2895, %v2828, %v2860
        %v2927 = vsel %vm2895, %v2830, %v2862
        %v2928 = vld [vmem:[%s7] sm:$0xf]
        %v2929 = vld [vmem:[%s7 + $0x4] sm:$0xf]
        %v2930 = vld [vmem:[%s7 + $0x8] sm:$0xf]
        %v2931 = vld [vmem:[%s7 + $0xc] sm:$0xf]
        %v2932 = vld [vmem:[%s7 + $0x10] sm:$0xf]
        %v2933 = vld [vmem:[%s7 + $0x14] sm:$0xf]
        %v2934 = vld [vmem:[%s7 + $0x18] sm:$0xf]
        %v2935 = vld [vmem:[%s7 + $0x1c] sm:$0xf]
        %v2936 = vld [vmem:[%s7 + $0x20] sm:$0xf]
        %v2937 = vld [vmem:[%s7 + $0x24] sm:$0xf]
        %v2938 = vld [vmem:[%s7 + $0x28] sm:$0xf]
        %v2939 = vld [vmem:[%s7 + $0x2c] sm:$0xf]
        %v2940 = vld [vmem:[%s7 + $0x30] sm:$0xf]
        %v2941 = vld [vmem:[%s7 + $0x34] sm:$0xf]
        %v2942 = vld [vmem:[%s7 + $0x38] sm:$0xf]
        %v2943 = vld [vmem:[%s7 + $0x3c] sm:$0xf]
        %v2944 = vpack.c.bf16 %v2913, %v2912
        %v2945 = vpack.c.bf16 %v2897, %v2896
        %v2946 = vpack.c.bf16 %v2915, %v2914
        %v2947 = vpack.c.bf16 %v2899, %v2898
        %v2948 = vpack.c.bf16 %v2917, %v2916
        %v2949 = vpack.c.bf16 %v2901, %v2900
        %v2950 = vpack.c.bf16 %v2919, %v2918
        %v2951 = vpack.c.bf16 %v2903, %v2902
        %v2952 = vpack.c.bf16 %v2921, %v2920
        %v2953 = vpack.c.bf16 %v2905, %v2904
        %v2954 = vpack.c.bf16 %v2923, %v2922
        %v2955 = vpack.c.bf16 %v2907, %v2906
        %v2956 = vpack.c.bf16 %v2925, %v2924
        %v2957 = vpack.c.bf16 %v2909, %v2908
        %v2958 = vpack.c.bf16 %v2927, %v2926
        %v2959 = vpack.c.bf16 %v2911, %v2910
        %2960 = vrot.lane.b32.xlu0 %v2735, 2
        %v2961 = vpop.permute.xlu0 %2960
        %2962 = vrot.lane.b32.xlu0 %v2739, 2
        %v2963 = vpop.permute.xlu0 %2962
        %2964 = vrot.lane.b32.xlu0 %v2743, 2
        %v2965 = vpop.permute.xlu0 %2964
        %2966 = vrot.lane.b32.xlu0 %v2747, 2
        %v2967 = vpop.permute.xlu0 %2966
        %2968 = vrot.lane.b32.xlu0 %v2751, 2
        %v2969 = vpop.permute.xlu0 %2968
        %2970 = vrot.lane.b32.xlu0 %v2755, 2
        %v2971 = vpop.permute.xlu0 %2970
        %2972 = vrot.lane.b32.xlu0 %v2759, 2
        %v2973 = vpop.permute.xlu0 %2972
        %2974 = vrot.lane.b32.xlu0 %v2763, 2
        %v2975 = vpop.permute.xlu0 %2974
        %2976 = vrot.lane.b32.xlu0 %v2767, 2
        %v2977 = vpop.permute.xlu0 %2976
        %2978 = vrot.lane.b32.xlu0 %v2771, 2
        %v2979 = vpop.permute.xlu0 %2978
        %2980 = vrot.lane.b32.xlu0 %v2775, 2
        %v2981 = vpop.permute.xlu0 %2980
        %2982 = vrot.lane.b32.xlu0 %v2779, 2
        %v2983 = vpop.permute.xlu0 %2982
        %2984 = vrot.lane.b32.xlu0 %v2783, 2
        %v2985 = vpop.permute.xlu0 %2984
        %2986 = vrot.lane.b32.xlu0 %v2787, 2
        %v2987 = vpop.permute.xlu0 %2986
        %2988 = vrot.lane.b32.xlu0 %v2791, 2
        %v2989 = vpop.permute.xlu0 %2988
        %2990 = vrot.lane.b32.xlu0 %v2795, 2
        %v2991 = vpop.permute.xlu0 %2990
        %2992 = vrot.lane.b32.xlu0 %v2736, 2
        %v2993 = vpop.permute.xlu0 %2992
        %2994 = vrot.lane.b32.xlu0 %v2740, 2
        %v2995 = vpop.permute.xlu0 %2994
        %2996 = vrot.lane.b32.xlu0 %v2744, 2
        %v2997 = vpop.permute.xlu0 %2996
        %2998 = vrot.lane.b32.xlu0 %v2748, 2
        %v2999 = vpop.permute.xlu0 %2998
        %3000 = vrot.lane.b32.xlu0 %v2752, 2
        %v3001 = vpop.permute.xlu0 %3000
        %3002 = vrot.lane.b32.xlu0 %v2756, 2
        %v3003 = vpop.permute.xlu0 %3002
        %3004 = vrot.lane.b32.xlu0 %v2760, 2
        %v3005 = vpop.permute.xlu0 %3004
        %3006 = vrot.lane.b32.xlu0 %v2764, 2
        %v3007 = vpop.permute.xlu0 %3006
        %3008 = vrot.lane.b32.xlu0 %v2768, 2
        %v3009 = vpop.permute.xlu0 %3008
        %3010 = vrot.lane.b32.xlu0 %v2772, 2
        %v3011 = vpop.permute.xlu0 %3010
        %3012 = vrot.lane.b32.xlu0 %v2776, 2
        %v3013 = vpop.permute.xlu0 %3012
        %3014 = vrot.lane.b32.xlu0 %v2780, 2
        %v3015 = vpop.permute.xlu0 %3014
        %3016 = vrot.lane.b32.xlu0 %v2784, 2
        %v3017 = vpop.permute.xlu0 %3016
        %3018 = vrot.lane.b32.xlu0 %v2788, 2
        %v3019 = vpop.permute.xlu0 %3018
        %3020 = vrot.lane.b32.xlu0 %v2792, 2
        %v3021 = vpop.permute.xlu0 %3020
        %3022 = vrot.lane.b32.xlu0 %v2796, 2
        %v3023 = vpop.permute.xlu0 %3022
        %3024 = vrot.lane.b32.xlu0 %v2737, 2
        %v3025 = vpop.permute.xlu0 %3024
        %3026 = vrot.lane.b32.xlu0 %v2741, 2
        %v3027 = vpop.permute.xlu0 %3026
        %3028 = vrot.lane.b32.xlu0 %v2745, 2
        %v3029 = vpop.permute.xlu0 %3028
        %3030 = vrot.lane.b32.xlu0 %v2749, 2
        %v3031 = vpop.permute.xlu0 %3030
        %3032 = vrot.lane.b32.xlu0 %v2753, 2
        %v3033 = vpop.permute.xlu0 %3032
        %3034 = vrot.lane.b32.xlu0 %v2757, 2
        %v3035 = vpop.permute.xlu0 %3034
        %3036 = vrot.lane.b32.xlu0 %v2761, 2
        %v3037 = vpop.permute.xlu0 %3036
        %3038 = vrot.lane.b32.xlu0 %v2765, 2
        %v3039 = vpop.permute.xlu0 %3038
        %3040 = vrot.lane.b32.xlu0 %v2769, 2
        %v3041 = vpop.permute.xlu0 %3040
        %3042 = vrot.lane.b32.xlu0 %v2773, 2
        %v3043 = vpop.permute.xlu0 %3042
        %3044 = vrot.lane.b32.xlu0 %v2777, 2
        %v3045 = vpop.permute.xlu0 %3044
        %3046 = vrot.lane.b32.xlu0 %v2781, 2
        %v3047 = vpop.permute.xlu0 %3046
        %3048 = vrot.lane.b32.xlu0 %v2785, 2
        %v3049 = vpop.permute.xlu0 %3048
        %3050 = vrot.lane.b32.xlu0 %v2789, 2
        %v3051 = vpop.permute.xlu0 %3050
        %3052 = vrot.lane.b32.xlu0 %v2793, 2
        %v3053 = vpop.permute.xlu0 %3052
        %3054 = vrot.lane.b32.xlu0 %v2797, 2
        %v3055 = vpop.permute.xlu0 %3054
        %vm3056 = vcmp.lt.s32.totalorder %v823, 2
        %v3057 = vsel %vm3056, %v2993, %v3025
        %v3058 = vsel %vm3056, %v2995, %v3027
        %v3059 = vsel %vm3056, %v2997, %v3029
        %v3060 = vsel %vm3056, %v2999, %v3031
        %v3061 = vsel %vm3056, %v3001, %v3033
        %v3062 = vsel %vm3056, %v3003, %v3035
        %v3063 = vsel %vm3056, %v3005, %v3037
        %v3064 = vsel %vm3056, %v3007, %v3039
        %v3065 = vsel %vm3056, %v3009, %v3041
        %v3066 = vsel %vm3056, %v3011, %v3043
        %v3067 = vsel %vm3056, %v3013, %v3045
        %v3068 = vsel %vm3056, %v3015, %v3047
        %v3069 = vsel %vm3056, %v3017, %v3049
        %v3070 = vsel %vm3056, %v3019, %v3051
        %v3071 = vsel %vm3056, %v3021, %v3053
        %v3072 = vsel %vm3056, %v3023, %v3055
        %v3073 = vsel %vm3056, %v2961, %v2993
        %v3074 = vsel %vm3056, %v2963, %v2995
        %v3075 = vsel %vm3056, %v2965, %v2997
        %v3076 = vsel %vm3056, %v2967, %v2999
        %v3077 = vsel %vm3056, %v2969, %v3001
        %v3078 = vsel %vm3056, %v2971, %v3003
        %v3079 = vsel %vm3056, %v2973, %v3005
        %v3080 = vsel %vm3056, %v2975, %v3007
        %v3081 = vsel %vm3056, %v2977, %v3009
        %v3082 = vsel %vm3056, %v2979, %v3011
        %v3083 = vsel %vm3056, %v2981, %v3013
        %v3084 = vsel %vm3056, %v2983, %v3015
        %v3085 = vsel %vm3056, %v2985, %v3017
        %v3086 = vsel %vm3056, %v2987, %v3019
        %v3087 = vsel %vm3056, %v2989, %v3021
        %v3088 = vsel %vm3056, %v2991, %v3023
        %s3089 = scalar_lea.vmem %s7, 64
        %v3090 = vld [vmem:[%s3089] sm:$0xf]
        %v3091 = vld [vmem:[%s3089 + $0x4] sm:$0xf]
        %v3092 = vld [vmem:[%s3089 + $0x8] sm:$0xf]
        %v3093 = vld [vmem:[%s3089 + $0xc] sm:$0xf]
        %v3094 = vld [vmem:[%s3089 + $0x10] sm:$0xf]
        %v3095 = vld [vmem:[%s3089 + $0x14] sm:$0xf]
        %v3096 = vld [vmem:[%s3089 + $0x18] sm:$0xf]
        %v3097 = vld [vmem:[%s3089 + $0x1c] sm:$0xf]
        %v3098 = vld [vmem:[%s3089 + $0x20] sm:$0xf]
        %v3099 = vld [vmem:[%s3089 + $0x24] sm:$0xf]
        %v3100 = vld [vmem:[%s3089 + $0x28] sm:$0xf]
        %v3101 = vld [vmem:[%s3089 + $0x2c] sm:$0xf]
        %v3102 = vld [vmem:[%s3089 + $0x30] sm:$0xf]
        %v3103 = vld [vmem:[%s3089 + $0x34] sm:$0xf]
        %v3104 = vld [vmem:[%s3089 + $0x38] sm:$0xf]
        %v3105 = vld [vmem:[%s3089 + $0x3c] sm:$0xf]
        %v3106 = vpack.c.bf16 %v3074, %v3073
        %v3107 = vpack.c.bf16 %v3058, %v3057
        %v3108 = vpack.c.bf16 %v3076, %v3075
        %v3109 = vpack.c.bf16 %v3060, %v3059
        %v3110 = vpack.c.bf16 %v3078, %v3077
        %v3111 = vpack.c.bf16 %v3062, %v3061
        %v3112 = vpack.c.bf16 %v3080, %v3079
        %v3113 = vpack.c.bf16 %v3064, %v3063
        %v3114 = vpack.c.bf16 %v3082, %v3081
        %v3115 = vpack.c.bf16 %v3066, %v3065
        %v3116 = vpack.c.bf16 %v3084, %v3083
        %v3117 = vpack.c.bf16 %v3068, %v3067
        %v3118 = vpack.c.bf16 %v3086, %v3085
        %v3119 = vpack.c.bf16 %v3070, %v3069
        %v3120 = vpack.c.bf16 %v3088, %v3087
        %v3121 = vpack.c.bf16 %v3072, %v3071
        %v3138 = vunpack.c.l.b16 %v3090
        %v3139 = vunpack.c.l.b16 %v3091
        %v3140 = vunpack.c.l.b16 %v3092
        %v3141 = vunpack.c.l.b16 %v3093
        %v3142 = vunpack.c.l.b16 %v3094
        %v3143 = vunpack.c.l.b16 %v3095
        %v3144 = vunpack.c.l.b16 %v3096
        %v3145 = vunpack.c.l.b16 %v3097
        %v3146 = vunpack.c.l.b16 %v3098
        %v3147 = vunpack.c.l.b16 %v3099
        %v3148 = vunpack.c.l.b16 %v3100
        %v3149 = vunpack.c.l.b16 %v3101
        %v3150 = vunpack.c.l.b16 %v3102
        %v3151 = vunpack.c.l.b16 %v3103
        %v3152 = vunpack.c.l.b16 %v3104
        %v3153 = vunpack.c.l.b16 %v3105
        %v3154 = vpack.c.b16 %v3139, %v3138
        %v3155 = vpack.c.b16 %v3141, %v3140
        %v3156 = vpack.c.b16 %v3143, %v3142
        %v3157 = vpack.c.b16 %v3145, %v3144
        %v3158 = vpack.c.b16 %v3147, %v3146
        %v3159 = vpack.c.b16 %v3149, %v3148
        %v3160 = vpack.c.b16 %v3151, %v3150
        %v3161 = vpack.c.b16 %v3153, %v3152
        %3170 = vmatprep.subr.bf16.mxu0 %v3107
        %3171 = vmatpush1.bf16.msra.mxu0 %v3106
        %3172 = vmatprep.subr.bf16.mxu0 %v3109
        %3173 = vmatpush1.bf16.msra.mxu0 %v3108
        %3174 = vmatprep.subr.bf16.mxu0 %v3111
        %3175 = vmatpush1.bf16.msra.mxu0 %v3110
        %3176 = vmatprep.subr.bf16.mxu0 %v3113
        %3177 = vmatpush1.bf16.msra.mxu0 %v3112
        %3178 = vmatprep.subr.bf16.mxu0 %v3115
        %3179 = vmatpush1.bf16.msra.mxu0 %v3114
        %3180 = vmatprep.subr.bf16.mxu0 %v3117
        %3181 = vmatpush1.bf16.msra.mxu0 %v3116
        %3182 = vmatprep.subr.bf16.mxu0 %v3119
        %3183 = vmatpush1.bf16.msra.mxu0 %v3118
        %3184 = vmatprep.subr.bf16.mxu0 %v3121
        %3185 = vmatpush1.bf16.msra.mxu0 %v3120
        %3186 = vmatprep.subr.bf16.mxu0 0
        %3187 = vmatpush1.bf16.msra.mxu0 0
        %3188 = vmatprep.subr.bf16.mxu0 0
        %3189 = vmatpush1.bf16.msra.mxu0 0
        %3190 = vmatprep.subr.bf16.mxu0 0
        %3191 = vmatpush1.bf16.msra.mxu0 0
        %3192 = vmatprep.subr.bf16.mxu0 0
        %3193 = vmatpush1.bf16.msra.mxu0 0
        %3194 = vmatprep.subr.bf16.mxu0 0
        %3195 = vmatpush1.bf16.msra.mxu0 0
        %3196 = vmatprep.subr.bf16.mxu0 0
        %3197 = vmatpush1.bf16.msra.mxu0 0
        %3198 = vmatprep.subr.bf16.mxu0 0
        %3199 = vmatpush1.bf16.msra.mxu0 0
        %3200 = vmatprep.subr.bf16.mxu0 0
        %3201 = vmatpush1.bf16.msra.mxu0 0
        %3202 = vmatprep.mubr.bf16.mxu0 0
        %3203 = vmatmul.mubr.bf16.gmra.mrb[0].mxu0 %v3154
        %v3204 = vpop.f32.mrb[0].mxu0
        %v3205 = vadd.f32 0.0, %v3204
        %v3206 = vpop.f32.mrb[0].mxu0
        %v3207 = vadd.f32 0.0, %v3206
        %v3208 = vpop.f32.mrb[0].mxu0
        %v3209 = vadd.f32 0.0, %v3208
        %v3210 = vpop.f32.mrb[0].mxu0
        %v3211 = vadd.f32 0.0, %v3210
        %3212 = vmatprep.mubr.bf16.mxu0 0
        %3213 = vmatmul.mubr.bf16.gmra.mrb[0].mxu0 %v3155
        %v3214 = vpop.f32.mrb[0].mxu0
        %v3215 = vadd.f32 0.0, %v3214
        %v3216 = vpop.f32.mrb[0].mxu0
        %v3217 = vadd.f32 0.0, %v3216
        %v3218 = vpop.f32.mrb[0].mxu0
        %v3219 = vadd.f32 0.0, %v3218
        %v3220 = vpop.f32.mrb[0].mxu0
        %v3221 = vadd.f32 0.0, %v3220
        %3222 = vmatprep.mubr.bf16.mxu0 0
        %3223 = vmatmul.mubr.bf16.gmra.mrb[0].mxu0 %v3156
        %v3224 = vpop.f32.mrb[0].mxu0
        %v3225 = vadd.f32 0.0, %v3224
        %v3226 = vpop.f32.mrb[0].mxu0
        %v3227 = vadd.f32 0.0, %v3226
        %v3228 = vpop.f32.mrb[0].mxu0
        %v3229 = vadd.f32 0.0, %v3228
        %v3230 = vpop.f32.mrb[0].mxu0
        %v3231 = vadd.f32 0.0, %v3230
        %3232 = vmatprep.mubr.bf16.mxu0 0
        %3233 = vmatmul.mubr.bf16.gmra.mrb[0].mxu0 %v3157
        %v3234 = vpop.f32.mrb[0].mxu0
        %v3235 = vadd.f32 0.0, %v3234
        %v3236 = vpop.f32.mrb[0].mxu0
        %v3237 = vadd.f32 0.0, %v3236
        %v3238 = vpop.f32.mrb[0].mxu0
        %v3239 = vadd.f32 0.0, %v3238
        %v3240 = vpop.f32.mrb[0].mxu0
        %v3241 = vadd.f32 0.0, %v3240
        %3242 = vmatprep.mubr.bf16.mxu0 0
        %3243 = vmatmul.mubr.bf16.gmra.mrb[0].mxu0 %v3158
        %v3244 = vpop.f32.mrb[0].mxu0
        %v3245 = vadd.f32 0.0, %v3244
        %v3246 = vpop.f32.mrb[0].mxu0
        %v3247 = vadd.f32 0.0, %v3246
        %v3248 = vpop.f32.mrb[0].mxu0
        %v3249 = vadd.f32 0.0, %v3248
        %v3250 = vpop.f32.mrb[0].mxu0
        %v3251 = vadd.f32 0.0, %v3250
        %3252 = vmatprep.mubr.bf16.mxu0 0
        %3253 = vmatmul.mubr.bf16.gmra.mrb[0].mxu0 %v3159
        %v3254 = vpop.f32.mrb[0].mxu0
        %v3255 = vadd.f32 0.0, %v3254
        %v3256 = vpop.f32.mrb[0].mxu0
        %v3257 = vadd.f32 0.0, %v3256
        %v3258 = vpop.f32.mrb[0].mxu0
        %v3259 = vadd.f32 0.0, %v3258
        %v3260 = vpop.f32.mrb[0].mxu0
        %v3261 = vadd.f32 0.0, %v3260
        %3262 = vmatprep.mubr.bf16.mxu0 0
        %3263 = vmatmul.mubr.bf16.gmra.mrb[0].mxu0 %v3160
        %v3264 = vpop.f32.mrb[0].mxu0
        %v3265 = vadd.f32 0.0, %v3264
        %v3266 = vpop.f32.mrb[0].mxu0
        %v3267 = vadd.f32 0.0, %v3266
        %v3268 = vpop.f32.mrb[0].mxu0
        %v3269 = vadd.f32 0.0, %v3268
        %v3270 = vpop.f32.mrb[0].mxu0
        %v3271 = vadd.f32 0.0, %v3270
        %3272 = vmatprep.mubr.bf16.mxu0 0
        %3273 = vmatmul.mubr.bf16.gmra.mrb[0].mxu0 %v3161
        %v3274 = vpop.f32.mrb[0].mxu0
        %v3275 = vadd.f32 0.0, %v3274
        %v3276 = vpop.f32.mrb[0].mxu0
        %v3277 = vadd.f32 0.0, %v3276
        %v3278 = vpop.f32.mrb[0].mxu0
        %v3279 = vadd.f32 0.0, %v3278
        %v3280 = vpop.f32.mrb[0].mxu0
        %v3281 = vadd.f32 0.0, %v3280
        %3282 = vdwg.mxu0
        %v3299 = vunpack.c.l.b16 %v2928
        %v3300 = vunpack.c.l.b16 %v2929
        %v3301 = vunpack.c.l.b16 %v2930
        %v3302 = vunpack.c.l.b16 %v2931
        %v3303 = vunpack.c.l.b16 %v2932
        %v3304 = vunpack.c.l.b16 %v2933
        %v3305 = vunpack.c.l.b16 %v2934
        %v3306 = vunpack.c.l.b16 %v2935
        %v3307 = vunpack.c.l.b16 %v2936
        %v3308 = vunpack.c.l.b16 %v2937
        %v3309 = vunpack.c.l.b16 %v2938
        %v3310 = vunpack.c.l.b16 %v2939
        %v3311 = vunpack.c.l.b16 %v2940
        %v3312 = vunpack.c.l.b16 %v2941
        %v3313 = vunpack.c.l.b16 %v2942
        %v3314 = vunpack.c.l.b16 %v2943
        %v3315 = vpack.c.b16 %v3300, %v3299
        %v3316 = vpack.c.b16 %v3302, %v3301
        %v3317 = vpack.c.b16 %v3304, %v3303
        %v3318 = vpack.c.b16 %v3306, %v3305
        %v3319 = vpack.c.b16 %v3308, %v3307
        %v3320 = vpack.c.b16 %v3310, %v3309
        %v3321 = vpack.c.b16 %v3312, %v3311
        %v3322 = vpack.c.b16 %v3314, %v3313
        %3331 = vmatprep.subr.bf16.mxu0 %v2945
        %3332 = vmatpush1.bf16.msra.mxu0 %v2944
        %3333 = vmatprep.subr.bf16.mxu0 %v2947
        %3334 = vmatpush1.bf16.msra.mxu0 %v2946
        %3335 = vmatprep.subr.bf16.mxu0 %v2949
        %3336 = vmatpush1.bf16.msra.mxu0 %v2948
        %3337 = vmatprep.subr.bf16.mxu0 %v2951
        %3338 = vmatpush1.bf16.msra.mxu0 %v2950
        %3339 = vmatprep.subr.bf16.mxu0 %v2953
        %3340 = vmatpush1.bf16.msra.mxu0 %v2952
        %3341 = vmatprep.subr.bf16.mxu0 %v2955
        %3342 = vmatpush1.bf16.msra.mxu0 %v2954
        %3343 = vmatprep.subr.bf16.mxu0 %v2957
        %3344 = vmatpush1.bf16.msra.mxu0 %v2956
        %3345 = vmatprep.subr.bf16.mxu0 %v2959
        %3346 = vmatpush1.bf16.msra.mxu0 %v2958
        %3347 = vmatprep.subr.bf16.mxu0 0
        %3348 = vmatpush1.bf16.msra.mxu0 0
        %3349 = vmatprep.subr.bf16.mxu0 0
        %3350 = vmatpush1.bf16.msra.mxu0 0
        %3351 = vmatprep.subr.bf16.mxu0 0
        %3352 = vmatpush1.bf16.msra.mxu0 0
        %3353 = vmatprep.subr.bf16.mxu0 0
        %3354 = vmatpush1.bf16.msra.mxu0 0
        %3355 = vmatprep.subr.bf16.mxu0 0
        %3356 = vmatpush1.bf16.msra.mxu0 0
        %3357 = vmatprep.subr.bf16.mxu0 0
        %3358 = vmatpush1.bf16.msra.mxu0 0
        %3359 = vmatprep.subr.bf16.mxu0 0
        %3360 = vmatpush1.bf16.msra.mxu0 0
        %3361 = vmatprep.subr.bf16.mxu0 0
        %3362 = vmatpush1.bf16.msra.mxu0 0
        %3363 = vmatprep.mubr.bf16.mxu0 0
        %3364 = vmatmul.mubr.bf16.gmra.mrb[0].mxu0 %v3315
        %v3365 = vpop.f32.mrb[0].mxu0
        %v3366 = vadd.f32 %v3205, %v3365
        %v3367 = vpop.f32.mrb[0].mxu0
        %v3368 = vadd.f32 %v3207, %v3367
        %v3369 = vpop.f32.mrb[0].mxu0
        %v3370 = vadd.f32 %v3209, %v3369
        %v3371 = vpop.f32.mrb[0].mxu0
        %v3372 = vadd.f32 %v3211, %v3371
        %3373 = vmatprep.mubr.bf16.mxu0 0
        %3374 = vmatmul.mubr.bf16.gmra.mrb[0].mxu0 %v3316
        %v3375 = vpop.f32.mrb[0].mxu0
        %v3376 = vadd.f32 %v3215, %v3375
        %v3377 = vpop.f32.mrb[0].mxu0
        %v3378 = vadd.f32 %v3217, %v3377
        %v3379 = vpop.f32.mrb[0].mxu0
        %v3380 = vadd.f32 %v3219, %v3379
        %v3381 = vpop.f32.mrb[0].mxu0
        %v3382 = vadd.f32 %v3221, %v3381
        %3383 = vmatprep.mubr.bf16.mxu0 0
        %3384 = vmatmul.mubr.bf16.gmra.mrb[0].mxu0 %v3317
        %v3385 = vpop.f32.mrb[0].mxu0
        %v3386 = vadd.f32 %v3225, %v3385
        %v3387 = vpop.f32.mrb[0].mxu0
        %v3388 = vadd.f32 %v3227, %v3387
        %v3389 = vpop.f32.mrb[0].mxu0
        %v3390 = vadd.f32 %v3229, %v3389
        %v3391 = vpop.f32.mrb[0].mxu0
        %v3392 = vadd.f32 %v3231, %v3391
        %3393 = vmatprep.mubr.bf16.mxu0 0
        %3394 = vmatmul.mubr.bf16.gmra.mrb[0].mxu0 %v3318
        %v3395 = vpop.f32.mrb[0].mxu0
        %v3396 = vadd.f32 %v3235, %v3395
        %v3397 = vpop.f32.mrb[0].mxu0
        %v3398 = vadd.f32 %v3237, %v3397
        %v3399 = vpop.f32.mrb[0].mxu0
        %v3400 = vadd.f32 %v3239, %v3399
        %v3401 = vpop.f32.mrb[0].mxu0
        %v3402 = vadd.f32 %v3241, %v3401
        %3403 = vmatprep.mubr.bf16.mxu0 0
        %3404 = vmatmul.mubr.bf16.gmra.mrb[0].mxu0 %v3319
        %v3405 = vpop.f32.mrb[0].mxu0
        %v3406 = vadd.f32 %v3245, %v3405
        %v3407 = vpop.f32.mrb[0].mxu0
        %v3408 = vadd.f32 %v3247, %v3407
        %v3409 = vpop.f32.mrb[0].mxu0
        %v3410 = vadd.f32 %v3249, %v3409
        %v3411 = vpop.f32.mrb[0].mxu0
        %v3412 = vadd.f32 %v3251, %v3411
        %3413 = vmatprep.mubr.bf16.mxu0 0
        %3414 = vmatmul.mubr.bf16.gmra.mrb[0].mxu0 %v3320
        %v3415 = vpop.f32.mrb[0].mxu0
        %v3416 = vadd.f32 %v3255, %v3415
        %v3417 = vpop.f32.mrb[0].mxu0
        %v3418 = vadd.f32 %v3257, %v3417
        %v3419 = vpop.f32.mrb[0].mxu0
        %v3420 = vadd.f32 %v3259, %v3419
        %v3421 = vpop.f32.mrb[0].mxu0
        %v3422 = vadd.f32 %v3261, %v3421
        %3423 = vmatprep.mubr.bf16.mxu0 0
        %3424 = vmatmul.mubr.bf16.gmra.mrb[0].mxu0 %v3321
        %v3425 = vpop.f32.mrb[0].mxu0
        %v3426 = vadd.f32 %v3265, %v3425
        %v3427 = vpop.f32.mrb[0].mxu0
        %v3428 = vadd.f32 %v3267, %v3427
        %v3429 = vpop.f32.mrb[0].mxu0
        %v3430 = vadd.f32 %v3269, %v3429
        %v3431 = vpop.f32.mrb[0].mxu0
        %v3432 = vadd.f32 %v3271, %v3431
        %3433 = vmatprep.mubr.bf16.mxu0 0
        %3434 = vmatmul.mubr.bf16.gmra.mrb[0].mxu0 %v3322
        %v3435 = vpop.f32.mrb[0].mxu0
        %v3436 = vadd.f32 %v3275, %v3435
        %v3437 = vpop.f32.mrb[0].mxu0
        %v3438 = vadd.f32 %v3277, %v3437
        %v3439 = vpop.f32.mrb[0].mxu0
        %v3440 = vadd.f32 %v3279, %v3439
        %v3441 = vpop.f32.mrb[0].mxu0
        %v3442 = vadd.f32 %v3281, %v3441
        %3443 = vdwg.mxu0
        %3444 = vrot.lane.b32.xlu0 %v2735, 1
        %v3445 = vpop.permute.xlu0 %3444
        %3446 = vrot.lane.b32.xlu0 %v2739, 1
        %v3447 = vpop.permute.xlu0 %3446
        %3448 = vrot.lane.b32.xlu0 %v2743, 1
        %v3449 = vpop.permute.xlu0 %3448
        %3450 = vrot.lane.b32.xlu0 %v2747, 1
        %v3451 = vpop.permute.xlu0 %3450
        %3452 = vrot.lane.b32.xlu0 %v2751, 1
        %v3453 = vpop.permute.xlu0 %3452
        %3454 = vrot.lane.b32.xlu0 %v2755, 1
        %v3455 = vpop.permute.xlu0 %3454
        %3456 = vrot.lane.b32.xlu0 %v2759, 1
        %v3457 = vpop.permute.xlu0 %3456
        %3458 = vrot.lane.b32.xlu0 %v2763, 1
        %v3459 = vpop.permute.xlu0 %3458
        %3460 = vrot.lane.b32.xlu0 %v2767, 1
        %v3461 = vpop.permute.xlu0 %3460
        %3462 = vrot.lane.b32.xlu0 %v2771, 1
        %v3463 = vpop.permute.xlu0 %3462
        %3464 = vrot.lane.b32.xlu0 %v2775, 1
        %v3465 = vpop.permute.xlu0 %3464
        %3466 = vrot.lane.b32.xlu0 %v2779, 1
        %v3467 = vpop.permute.xlu0 %3466
        %3468 = vrot.lane.b32.xlu0 %v2783, 1
        %v3469 = vpop.permute.xlu0 %3468
        %3470 = vrot.lane.b32.xlu0 %v2787, 1
        %v3471 = vpop.permute.xlu0 %3470
        %3472 = vrot.lane.b32.xlu0 %v2791, 1
        %v3473 = vpop.permute.xlu0 %3472
        %3474 = vrot.lane.b32.xlu0 %v2795, 1
        %v3475 = vpop.permute.xlu0 %3474
        %3476 = vrot.lane.b32.xlu0 %v2736, 1
        %v3477 = vpop.permute.xlu0 %3476
        %3478 = vrot.lane.b32.xlu0 %v2740, 1
        %v3479 = vpop.permute.xlu0 %3478
        %3480 = vrot.lane.b32.xlu0 %v2744, 1
        %v3481 = vpop.permute.xlu0 %3480
        %3482 = vrot.lane.b32.xlu0 %v2748, 1
        %v3483 = vpop.permute.xlu0 %3482
        %3484 = vrot.lane.b32.xlu0 %v2752, 1
        %v3485 = vpop.permute.xlu0 %3484
        %3486 = vrot.lane.b32.xlu0 %v2756, 1
        %v3487 = vpop.permute.xlu0 %3486
        %3488 = vrot.lane.b32.xlu0 %v2760, 1
        %v3489 = vpop.permute.xlu0 %3488
        %3490 = vrot.lane.b32.xlu0 %v2764, 1
        %v3491 = vpop.permute.xlu0 %3490
        %3492 = vrot.lane.b32.xlu0 %v2768, 1
        %v3493 = vpop.permute.xlu0 %3492
        %3494 = vrot.lane.b32.xlu0 %v2772, 1
        %v3495 = vpop.permute.xlu0 %3494
        %3496 = vrot.lane.b32.xlu0 %v2776, 1
        %v3497 = vpop.permute.xlu0 %3496
        %3498 = vrot.lane.b32.xlu0 %v2780, 1
        %v3499 = vpop.permute.xlu0 %3498
        %3500 = vrot.lane.b32.xlu0 %v2784, 1
        %v3501 = vpop.permute.xlu0 %3500
        %3502 = vrot.lane.b32.xlu0 %v2788, 1
        %v3503 = vpop.permute.xlu0 %3502
        %3504 = vrot.lane.b32.xlu0 %v2792, 1
        %v3505 = vpop.permute.xlu0 %3504
        %3506 = vrot.lane.b32.xlu0 %v2796, 1
        %v3507 = vpop.permute.xlu0 %3506
        %3508 = vrot.lane.b32.xlu0 %v2737, 1
        %v3509 = vpop.permute.xlu0 %3508
        %3510 = vrot.lane.b32.xlu0 %v2741, 1
        %v3511 = vpop.permute.xlu0 %3510
        %3512 = vrot.lane.b32.xlu0 %v2745, 1
        %v3513 = vpop.permute.xlu0 %3512
        %3514 = vrot.lane.b32.xlu0 %v2749, 1
        %v3515 = vpop.permute.xlu0 %3514
        %3516 = vrot.lane.b32.xlu0 %v2753, 1
        %v3517 = vpop.permute.xlu0 %3516
        %3518 = vrot.lane.b32.xlu0 %v2757, 1
        %v3519 = vpop.permute.xlu0 %3518
        %3520 = vrot.lane.b32.xlu0 %v2761, 1
        %v3521 = vpop.permute.xlu0 %3520
        %3522 = vrot.lane.b32.xlu0 %v2765, 1
        %v3523 = vpop.permute.xlu0 %3522
        %3524 = vrot.lane.b32.xlu0 %v2769, 1
        %v3525 = vpop.permute.xlu0 %3524
        %3526 = vrot.lane.b32.xlu0 %v2773, 1
        %v3527 = vpop.permute.xlu0 %3526
        %3528 = vrot.lane.b32.xlu0 %v2777, 1
        %v3529 = vpop.permute.xlu0 %3528
        %3530 = vrot.lane.b32.xlu0 %v2781, 1
        %v3531 = vpop.permute.xlu0 %3530
        %3532 = vrot.lane.b32.xlu0 %v2785, 1
        %v3533 = vpop.permute.xlu0 %3532
        %3534 = vrot.lane.b32.xlu0 %v2789, 1
        %v3535 = vpop.permute.xlu0 %3534
        %3536 = vrot.lane.b32.xlu0 %v2793, 1
        %v3537 = vpop.permute.xlu0 %3536
        %3538 = vrot.lane.b32.xlu0 %v2797, 1
        %v3539 = vpop.permute.xlu0 %3538
        %vm3540 = vcmp.lt.s32.totalorder %v823, 1
        %v3541 = vsel %vm3540, %v3477, %v3509
        %v3542 = vsel %vm3540, %v3479, %v3511
        %v3543 = vsel %vm3540, %v3481, %v3513
        %v3544 = vsel %vm3540, %v3483, %v3515
        %v3545 = vsel %vm3540, %v3485, %v3517
        %v3546 = vsel %vm3540, %v3487, %v3519
        %v3547 = vsel %vm3540, %v3489, %v3521
        %v3548 = vsel %vm3540, %v3491, %v3523
        %v3549 = vsel %vm3540, %v3493, %v3525
        %v3550 = vsel %vm3540, %v3495, %v3527
        %v3551 = vsel %vm3540, %v3497, %v3529
        %v3552 = vsel %vm3540, %v3499, %v3531
        %v3553 = vsel %vm3540, %v3501, %v3533
        %v3554 = vsel %vm3540, %v3503, %v3535
        %v3555 = vsel %vm3540, %v3505, %v3537
        %v3556 = vsel %vm3540, %v3507, %v3539
        %v3557 = vsel %vm3540, %v3445, %v3477
        %v3558 = vsel %vm3540, %v3447, %v3479
        %v3559 = vsel %vm3540, %v3449, %v3481
        %v3560 = vsel %vm3540, %v3451, %v3483
        %v3561 = vsel %vm3540, %v3453, %v3485
        %v3562 = vsel %vm3540, %v3455, %v3487
        %v3563 = vsel %vm3540, %v3457, %v3489
        %v3564 = vsel %vm3540, %v3459, %v3491
        %v3565 = vsel %vm3540, %v3461, %v3493
        %v3566 = vsel %vm3540, %v3463, %v3495
        %v3567 = vsel %vm3540, %v3465, %v3497
        %v3568 = vsel %vm3540, %v3467, %v3499
        %v3569 = vsel %vm3540, %v3469, %v3501
        %v3570 = vsel %vm3540, %v3471, %v3503
        %v3571 = vsel %vm3540, %v3473, %v3505
        %v3572 = vsel %vm3540, %v3475, %v3507
        %s3573 = scalar_lea.vmem %s7, 128
        %v3574 = vld [vmem:[%s3573] sm:$0xf]
        %v3575 = vld [vmem:[%s3573 + $0x4] sm:$0xf]
        %v3576 = vld [vmem:[%s3573 + $0x8] sm:$0xf]
        %v3577 = vld [vmem:[%s3573 + $0xc] sm:$0xf]
        %v3578 = vld [vmem:[%s3573 + $0x10] sm:$0xf]
        %v3579 = vld [vmem:[%s3573 + $0x14] sm:$0xf]
        %v3580 = vld [vmem:[%s3573 + $0x18] sm:$0xf]
        %v3581 = vld [vmem:[%s3573 + $0x1c] sm:$0xf]
        %v3582 = vld [vmem:[%s3573 + $0x20] sm:$0xf]
        %v3583 = vld [vmem:[%s3573 + $0x24] sm:$0xf]
        %v3584 = vld [vmem:[%s3573 + $0x28] sm:$0xf]
        %v3585 = vld [vmem:[%s3573 + $0x2c] sm:$0xf]
        %v3586 = vld [vmem:[%s3573 + $0x30] sm:$0xf]
        %v3587 = vld [vmem:[%s3573 + $0x34] sm:$0xf]
        %v3588 = vld [vmem:[%s3573 + $0x38] sm:$0xf]
        %v3589 = vld [vmem:[%s3573 + $0x3c] sm:$0xf]
        %v3590 = vpack.c.bf16 %v3558, %v3557
        %v3591 = vpack.c.bf16 %v3542, %v3541
        %v3592 = vpack.c.bf16 %v3560, %v3559
        %v3593 = vpack.c.bf16 %v3544, %v3543
        %v3594 = vpack.c.bf16 %v3562, %v3561
        %v3595 = vpack.c.bf16 %v3546, %v3545
        %v3596 = vpack.c.bf16 %v3564, %v3563
        %v3597 = vpack.c.bf16 %v3548, %v3547
        %v3598 = vpack.c.bf16 %v3566, %v3565
        %v3599 = vpack.c.bf16 %v3550, %v3549
        %v3600 = vpack.c.bf16 %v3568, %v3567
        %v3601 = vpack.c.bf16 %v3552, %v3551
        %v3602 = vpack.c.bf16 %v3570, %v3569
        %v3603 = vpack.c.bf16 %v3554, %v3553
        %v3604 = vpack.c.bf16 %v3572, %v3571
        %v3605 = vpack.c.bf16 %v3556, %v3555
        %v3622 = vunpack.c.l.b16 %v3574
        %v3623 = vunpack.c.l.b16 %v3575
        %v3624 = vunpack.c.l.b16 %v3576
        %v3625 = vunpack.c.l.b16 %v3577
        %v3626 = vunpack.c.l.b16 %v3578
        %v3627 = vunpack.c.l.b16 %v3579
        %v3628 = vunpack.c.l.b16 %v3580
        %v3629 = vunpack.c.l.b16 %v3581
        %v3630 = vunpack.c.l.b16 %v3582
        %v3631 = vunpack.c.l.b16 %v3583
        %v3632 = vunpack.c.l.b16 %v3584
        %v3633 = vunpack.c.l.b16 %v3585
        %v3634 = vunpack.c.l.b16 %v3586
        %v3635 = vunpack.c.l.b16 %v3587
        %v3636 = vunpack.c.l.b16 %v3588
        %v3637 = vunpack.c.l.b16 %v3589
        %v3638 = vpack.c.b16 %v3623, %v3622
        %v3639 = vpack.c.b16 %v3625, %v3624
        %v3640 = vpack.c.b16 %v3627, %v3626
        %v3641 = vpack.c.b16 %v3629, %v3628
        %v3642 = vpack.c.b16 %v3631, %v3630
        %v3643 = vpack.c.b16 %v3633, %v3632
        %v3644 = vpack.c.b16 %v3635, %v3634
        %v3645 = vpack.c.b16 %v3637, %v3636
        %3654 = vmatprep.subr.bf16.mxu0 %v3591
        %3655 = vmatpush1.bf16.msra.mxu0 %v3590
        %3656 = vmatprep.subr.bf16.mxu0 %v3593
        %3657 = vmatpush1.bf16.msra.mxu0 %v3592
        %3658 = vmatprep.subr.bf16.mxu0 %v3595
        %3659 = vmatpush1.bf16.msra.mxu0 %v3594
        %3660 = vmatprep.subr.bf16.mxu0 %v3597
        %3661 = vmatpush1.bf16.msra.mxu0 %v3596
        %3662 = vmatprep.subr.bf16.mxu0 %v3599
        %3663 = vmatpush1.bf16.msra.mxu0 %v3598
        %3664 = vmatprep.subr.bf16.mxu0 %v3601
        %3665 = vmatpush1.bf16.msra.mxu0 %v3600
        %3666 = vmatprep.subr.bf16.mxu0 %v3603
        %3667 = vmatpush1.bf16.msra.mxu0 %v3602
        %3668 = vmatprep.subr.bf16.mxu0 %v3605
        %3669 = vmatpush1.bf16.msra.mxu0 %v3604
        %3670 = vmatprep.subr.bf16.mxu0 0
        %3671 = vmatpush1.bf16.msra.mxu0 0
        %3672 = vmatprep.subr.bf16.mxu0 0
        %3673 = vmatpush1.bf16.msra.mxu0 0
        %3674 = vmatprep.subr.bf16.mxu0 0
        %3675 = vmatpush1.bf16.msra.mxu0 0
        %3676 = vmatprep.subr.bf16.mxu0 0
        %3677 = vmatpush1.bf16.msra.mxu0 0
        %3678 = vmatprep.subr.bf16.mxu0 0
        %3679 = vmatpush1.bf16.msra.mxu0 0
        %3680 = vmatprep.subr.bf16.mxu0 0
        %3681 = vmatpush1.bf16.msra.mxu0 0
        %3682 = vmatprep.subr.bf16.mxu0 0
        %3683 = vmatpush1.bf16.msra.mxu0 0
        %3684 = vmatprep.subr.bf16.mxu0 0
        %3685 = vmatpush1.bf16.msra.mxu0 0
        %3686 = vmatprep.mubr.bf16.mxu0 0
        %3687 = vmatmul.mubr.bf16.gmra.mrb[0].mxu0 %v3638
        %v3688 = vpop.f32.mrb[0].mxu0
        %v3689 = vadd.f32 0.0, %v3688
        %v3690 = vpop.f32.mrb[0].mxu0
        %v3691 = vadd.f32 0.0, %v3690
        %v3692 = vpop.f32.mrb[0].mxu0
        %v3693 = vadd.f32 0.0, %v3692
        %v3694 = vpop.f32.mrb[0].mxu0
        %v3695 = vadd.f32 0.0, %v3694
        %3696 = vmatprep.mubr.bf16.mxu0 0
        %3697 = vmatmul.mubr.bf16.gmra.mrb[0].mxu0 %v3639
        %v3698 = vpop.f32.mrb[0].mxu0
        %v3699 = vadd.f32 0.0, %v3698
        %v3700 = vpop.f32.mrb[0].mxu0
        %v3701 = vadd.f32 0.0, %v3700
        %v3702 = vpop.f32.mrb[0].mxu0
        %v3703 = vadd.f32 0.0, %v3702
        %v3704 = vpop.f32.mrb[0].mxu0
        %v3705 = vadd.f32 0.0, %v3704
        %3706 = vmatprep.mubr.bf16.mxu0 0
        %3707 = vmatmul.mubr.bf16.gmra.mrb[0].mxu0 %v3640
        %v3708 = vpop.f32.mrb[0].mxu0
        %v3709 = vadd.f32 0.0, %v3708
        %v3710 = vpop.f32.mrb[0].mxu0
        %v3711 = vadd.f32 0.0, %v3710
        %v3712 = vpop.f32.mrb[0].mxu0
        %v3713 = vadd.f32 0.0, %v3712
        %v3714 = vpop.f32.mrb[0].mxu0
        %v3715 = vadd.f32 0.0, %v3714
        %3716 = vmatprep.mubr.bf16.mxu0 0
        %3717 = vmatmul.mubr.bf16.gmra.mrb[0].mxu0 %v3641
        %v3718 = vpop.f32.mrb[0].mxu0
        %v3719 = vadd.f32 0.0, %v3718
        %v3720 = vpop.f32.mrb[0].mxu0
        %v3721 = vadd.f32 0.0, %v3720
        %v3722 = vpop.f32.mrb[0].mxu0
        %v3723 = vadd.f32 0.0, %v3722
        %v3724 = vpop.f32.mrb[0].mxu0
        %v3725 = vadd.f32 0.0, %v3724
        %3726 = vmatprep.mubr.bf16.mxu0 0
        %3727 = vmatmul.mubr.bf16.gmra.mrb[0].mxu0 %v3642
        %v3728 = vpop.f32.mrb[0].mxu0
        %v3729 = vadd.f32 0.0, %v3728
        %v3730 = vpop.f32.mrb[0].mxu0
        %v3731 = vadd.f32 0.0, %v3730
        %v3732 = vpop.f32.mrb[0].mxu0
        %v3733 = vadd.f32 0.0, %v3732
        %v3734 = vpop.f32.mrb[0].mxu0
        %v3735 = vadd.f32 0.0, %v3734
        %3736 = vmatprep.mubr.bf16.mxu0 0
        %3737 = vmatmul.mubr.bf16.gmra.mrb[0].mxu0 %v3643
        %v3738 = vpop.f32.mrb[0].mxu0
        %v3739 = vadd.f32 0.0, %v3738
        %v3740 = vpop.f32.mrb[0].mxu0
        %v3741 = vadd.f32 0.0, %v3740
        %v3742 = vpop.f32.mrb[0].mxu0
        %v3743 = vadd.f32 0.0, %v3742
        %v3744 = vpop.f32.mrb[0].mxu0
        %v3745 = vadd.f32 0.0, %v3744
        %3746 = vmatprep.mubr.bf16.mxu0 0
        %3747 = vmatmul.mubr.bf16.gmra.mrb[0].mxu0 %v3644
        %v3748 = vpop.f32.mrb[0].mxu0
        %v3749 = vadd.f32 0.0, %v3748
        %v3750 = vpop.f32.mrb[0].mxu0
        %v3751 = vadd.f32 0.0, %v3750
        %v3752 = vpop.f32.mrb[0].mxu0
        %v3753 = vadd.f32 0.0, %v3752
        %v3754 = vpop.f32.mrb[0].mxu0
        %v3755 = vadd.f32 0.0, %v3754
        %3756 = vmatprep.mubr.bf16.mxu0 0
        %3757 = vmatmul.mubr.bf16.gmra.mrb[0].mxu0 %v3645
        %v3758 = vpop.f32.mrb[0].mxu0
        %v3759 = vadd.f32 0.0, %v3758
        %v3760 = vpop.f32.mrb[0].mxu0
        %v3761 = vadd.f32 0.0, %v3760
        %v3762 = vpop.f32.mrb[0].mxu0
        %v3763 = vadd.f32 0.0, %v3762
        %v3764 = vpop.f32.mrb[0].mxu0
        %v3765 = vadd.f32 0.0, %v3764
        %3766 = vdwg.mxu0
        %v3767 = vadd.f32 %v3366, %v3689
        %v3768 = vadd.f32 %v3368, %v3691
        %v3769 = vadd.f32 %v3370, %v3693
        %v3770 = vadd.f32 %v3372, %v3695
        %v3771 = vadd.f32 %v3376, %v3699
        %v3772 = vadd.f32 %v3378, %v3701
        %v3773 = vadd.f32 %v3380, %v3703
        %v3774 = vadd.f32 %v3382, %v3705
        %v3775 = vadd.f32 %v3386, %v3709
        %v3776 = vadd.f32 %v3388, %v3711
        %v3777 = vadd.f32 %v3390, %v3713
        %v3778 = vadd.f32 %v3392, %v3715
        %v3779 = vadd.f32 %v3396, %v3719
        %v3780 = vadd.f32 %v3398, %v3721
        %v3781 = vadd.f32 %v3400, %v3723
        %v3782 = vadd.f32 %v3402, %v3725
        %v3783 = vadd.f32 %v3406, %v3729
        %v3784 = vadd.f32 %v3408, %v3731
        %v3785 = vadd.f32 %v3410, %v3733
        %v3786 = vadd.f32 %v3412, %v3735
        %v3787 = vadd.f32 %v3416, %v3739
        %v3788 = vadd.f32 %v3418, %v3741
        %v3789 = vadd.f32 %v3420, %v3743
        %v3790 = vadd.f32 %v3422, %v3745
        %v3791 = vadd.f32 %v3426, %v3749
        %v3792 = vadd.f32 %v3428, %v3751
        %v3793 = vadd.f32 %v3430, %v3753
        %v3794 = vadd.f32 %v3432, %v3755
        %v3795 = vadd.f32 %v3436, %v3759
        %v3796 = vadd.f32 %v3438, %v3761
        %v3797 = vadd.f32 %v3440, %v3763
        %v3798 = vadd.f32 %v3442, %v3765
        %s3799 = scalar_lea.vmem %s7, 192
        %v3800 = vld [vmem:[%s3799] sm:$0xf]
        %v3801 = vld [vmem:[%s3799 + $0x4] sm:$0xf]
        %v3802 = vld [vmem:[%s3799 + $0x8] sm:$0xf]
        %v3803 = vld [vmem:[%s3799 + $0xc] sm:$0xf]
        %v3804 = vld [vmem:[%s3799 + $0x10] sm:$0xf]
        %v3805 = vld [vmem:[%s3799 + $0x14] sm:$0xf]
        %v3806 = vld [vmem:[%s3799 + $0x18] sm:$0xf]
        %v3807 = vld [vmem:[%s3799 + $0x1c] sm:$0xf]
        %v3808 = vld [vmem:[%s3799 + $0x20] sm:$0xf]
        %v3809 = vld [vmem:[%s3799 + $0x24] sm:$0xf]
        %v3810 = vld [vmem:[%s3799 + $0x28] sm:$0xf]
        %v3811 = vld [vmem:[%s3799 + $0x2c] sm:$0xf]
        %v3812 = vld [vmem:[%s3799 + $0x30] sm:$0xf]
        %v3813 = vld [vmem:[%s3799 + $0x34] sm:$0xf]
        %v3814 = vld [vmem:[%s3799 + $0x38] sm:$0xf]
        %v3815 = vld [vmem:[%s3799 + $0x3c] sm:$0xf]
        %v3816 = vpack.c.bf16 %v2740, %v2736
        %v3817 = vpack.c.bf16 %v2741, %v2737
        %v3818 = vpack.c.bf16 %v2748, %v2744
        %v3819 = vpack.c.bf16 %v2749, %v2745
        %v3820 = vpack.c.bf16 %v2756, %v2752
        %v3821 = vpack.c.bf16 %v2757, %v2753
        %v3822 = vpack.c.bf16 %v2764, %v2760
        %v3823 = vpack.c.bf16 %v2765, %v2761
        %v3824 = vpack.c.bf16 %v2772, %v2768
        %v3825 = vpack.c.bf16 %v2773, %v2769
        %v3826 = vpack.c.bf16 %v2780, %v2776
        %v3827 = vpack.c.bf16 %v2781, %v2777
        %v3828 = vpack.c.bf16 %v2788, %v2784
        %v3829 = vpack.c.bf16 %v2789, %v2785
        %v3830 = vpack.c.bf16 %v2796, %v2792
        %v3831 = vpack.c.bf16 %v2797, %v2793
        %v3848 = vunpack.c.l.b16 %v3800
        %v3849 = vunpack.c.l.b16 %v3801
        %v3850 = vunpack.c.l.b16 %v3802
        %v3851 = vunpack.c.l.b16 %v3803
        %v3852 = vunpack.c.l.b16 %v3804
        %v3853 = vunpack.c.l.b16 %v3805
        %v3854 = vunpack.c.l.b16 %v3806
        %v3855 = vunpack.c.l.b16 %v3807
        %v3856 = vunpack.c.l.b16 %v3808
        %v3857 = vunpack.c.l.b16 %v3809
        %v3858 = vunpack.c.l.b16 %v3810
        %v3859 = vunpack.c.l.b16 %v3811
        %v3860 = vunpack.c.l.b16 %v3812
        %v3861 = vunpack.c.l.b16 %v3813
        %v3862 = vunpack.c.l.b16 %v3814
        %v3863 = vunpack.c.l.b16 %v3815
        %v3864 = vpack.c.b16 %v3849, %v3848
        %v3865 = vpack.c.b16 %v3851, %v3850
        %v3866 = vpack.c.b16 %v3853, %v3852
        %v3867 = vpack.c.b16 %v3855, %v3854
        %v3868 = vpack.c.b16 %v3857, %v3856
        %v3869 = vpack.c.b16 %v3859, %v3858
        %v3870 = vpack.c.b16 %v3861, %v3860
        %v3871 = vpack.c.b16 %v3863, %v3862
        %3880 = vmatprep.subr.bf16.mxu0 %v3817
        %3881 = vmatpush1.bf16.msra.mxu0 %v3816
        %3882 = vmatprep.subr.bf16.mxu0 %v3819
        %3883 = vmatpush1.bf16.msra.mxu0 %v3818
        %3884 = vmatprep.subr.bf16.mxu0 %v3821
        %3885 = vmatpush1.bf16.msra.mxu0 %v3820
        %3886 = vmatprep.subr.bf16.mxu0 %v3823
        %3887 = vmatpush1.bf16.msra.mxu0 %v3822
        %3888 = vmatprep.subr.bf16.mxu0 %v3825
        %3889 = vmatpush1.bf16.msra.mxu0 %v3824
        %3890 = vmatprep.subr.bf16.mxu0 %v3827
        %3891 = vmatpush1.bf16.msra.mxu0 %v3826
        %3892 = vmatprep.subr.bf16.mxu0 %v3829
        %3893 = vmatpush1.bf16.msra.mxu0 %v3828
        %3894 = vmatprep.subr.bf16.mxu0 %v3831
        %3895 = vmatpush1.bf16.msra.mxu0 %v3830
        %3896 = vmatprep.subr.bf16.mxu0 0
        %3897 = vmatpush1.bf16.msra.mxu0 0
        %3898 = vmatprep.subr.bf16.mxu0 0
        %3899 = vmatpush1.bf16.msra.mxu0 0
        %3900 = vmatprep.subr.bf16.mxu0 0
        %3901 = vmatpush1.bf16.msra.mxu0 0
        %3902 = vmatprep.subr.bf16.mxu0 0
        %3903 = vmatpush1.bf16.msra.mxu0 0
        %3904 = vmatprep.subr.bf16.mxu0 0
        %3905 = vmatpush1.bf16.msra.mxu0 0
        %3906 = vmatprep.subr.bf16.mxu0 0
        %3907 = vmatpush1.bf16.msra.mxu0 0
        %3908 = vmatprep.subr.bf16.mxu0 0
        %3909 = vmatpush1.bf16.msra.mxu0 0
        %3910 = vmatprep.subr.bf16.mxu0 0
        %3911 = vmatpush1.bf16.msra.mxu0 0
        %3912 = vmatprep.mubr.bf16.mxu0 0
        %3913 = vmatmul.mubr.bf16.gmra.mrb[0].mxu0 %v3864
        %v3914 = vpop.f32.mrb[0].mxu0
        %v3915 = vadd.f32 0.0, %v3914
        %v3916 = vpop.f32.mrb[0].mxu0
        %v3917 = vadd.f32 0.0, %v3916
        %v3918 = vpop.f32.mrb[0].mxu0
        %v3919 = vadd.f32 0.0, %v3918
        %v3920 = vpop.f32.mrb[0].mxu0
        %v3921 = vadd.f32 0.0, %v3920
        %3922 = vmatprep.mubr.bf16.mxu0 0
        %3923 = vmatmul.mubr.bf16.gmra.mrb[0].mxu0 %v3865
        %v3924 = vpop.f32.mrb[0].mxu0
        %v3925 = vadd.f32 0.0, %v3924
        %v3926 = vpop.f32.mrb[0].mxu0
        %v3927 = vadd.f32 0.0, %v3926
        %v3928 = vpop.f32.mrb[0].mxu0
        %v3929 = vadd.f32 0.0, %v3928
        %v3930 = vpop.f32.mrb[0].mxu0
        %v3931 = vadd.f32 0.0, %v3930
        %3932 = vmatprep.mubr.bf16.mxu0 0
        %3933 = vmatmul.mubr.bf16.gmra.mrb[0].mxu0 %v3866
        %v3934 = vpop.f32.mrb[0].mxu0
        %v3935 = vadd.f32 0.0, %v3934
        %v3936 = vpop.f32.mrb[0].mxu0
        %v3937 = vadd.f32 0.0, %v3936
        %v3938 = vpop.f32.mrb[0].mxu0
        %v3939 = vadd.f32 0.0, %v3938
        %v3940 = vpop.f32.mrb[0].mxu0
        %v3941 = vadd.f32 0.0, %v3940
        %3942 = vmatprep.mubr.bf16.mxu0 0
        %3943 = vmatmul.mubr.bf16.gmra.mrb[0].mxu0 %v3867
        %v3944 = vpop.f32.mrb[0].mxu0
        %v3945 = vadd.f32 0.0, %v3944
        %v3946 = vpop.f32.mrb[0].mxu0
        %v3947 = vadd.f32 0.0, %v3946
        %v3948 = vpop.f32.mrb[0].mxu0
        %v3949 = vadd.f32 0.0, %v3948
        %v3950 = vpop.f32.mrb[0].mxu0
        %v3951 = vadd.f32 0.0, %v3950
        %3952 = vmatprep.mubr.bf16.mxu0 0
        %3953 = vmatmul.mubr.bf16.gmra.mrb[0].mxu0 %v3868
        %v3954 = vpop.f32.mrb[0].mxu0
        %v3955 = vadd.f32 0.0, %v3954
        %v3956 = vpop.f32.mrb[0].mxu0
        %v3957 = vadd.f32 0.0, %v3956
        %v3958 = vpop.f32.mrb[0].mxu0
        %v3959 = vadd.f32 0.0, %v3958
        %v3960 = vpop.f32.mrb[0].mxu0
        %v3961 = vadd.f32 0.0, %v3960
        %3962 = vmatprep.mubr.bf16.mxu0 0
        %3963 = vmatmul.mubr.bf16.gmra.mrb[0].mxu0 %v3869
        %v3964 = vpop.f32.mrb[0].mxu0
        %v3965 = vadd.f32 0.0, %v3964
        %v3966 = vpop.f32.mrb[0].mxu0
        %v3967 = vadd.f32 0.0, %v3966
        %v3968 = vpop.f32.mrb[0].mxu0
        %v3969 = vadd.f32 0.0, %v3968
        %v3970 = vpop.f32.mrb[0].mxu0
        %v3971 = vadd.f32 0.0, %v3970
        %3972 = vmatprep.mubr.bf16.mxu0 0
        %3973 = vmatmul.mubr.bf16.gmra.mrb[0].mxu0 %v3870
        %v3974 = vpop.f32.mrb[0].mxu0
        %v3975 = vadd.f32 0.0, %v3974
        %v3976 = vpop.f32.mrb[0].mxu0
        %v3977 = vadd.f32 0.0, %v3976
        %v3978 = vpop.f32.mrb[0].mxu0
        %v3979 = vadd.f32 0.0, %v3978
        %v3980 = vpop.f32.mrb[0].mxu0
        %v3981 = vadd.f32 0.0, %v3980
        %3982 = vmatprep.mubr.bf16.mxu0 0
        %3983 = vmatmul.mubr.bf16.gmra.mrb[0].mxu0 %v3871
        %v3984 = vpop.f32.mrb[0].mxu0
        %v3985 = vadd.f32 0.0, %v3984
        %v3986 = vpop.f32.mrb[0].mxu0
        %v3987 = vadd.f32 0.0, %v3986
        %v3988 = vpop.f32.mrb[0].mxu0
        %v3989 = vadd.f32 0.0, %v3988
        %v3990 = vpop.f32.mrb[0].mxu0
        %v3991 = vadd.f32 0.0, %v3990
        %3992 = vdwg.mxu0
        %v3993 = vadd.f32 %v3767, %v3915
        %v3994 = vadd.f32 %v3768, %v3917
        %v3995 = vadd.f32 %v3769, %v3919
        %v3996 = vadd.f32 %v3770, %v3921
        %v3997 = vadd.f32 %v3771, %v3925
        %v3998 = vadd.f32 %v3772, %v3927
        %v3999 = vadd.f32 %v3773, %v3929
        %v4000 = vadd.f32 %v3774, %v3931
        %v4001 = vadd.f32 %v3775, %v3935
        %v4002 = vadd.f32 %v3776, %v3937
        %v4003 = vadd.f32 %v3777, %v3939
        %v4004 = vadd.f32 %v3778, %v3941
        %v4005 = vadd.f32 %v3779, %v3945
        %v4006 = vadd.f32 %v3780, %v3947
        %v4007 = vadd.f32 %v3781, %v3949
        %v4008 = vadd.f32 %v3782, %v3951
        %v4009 = vadd.f32 %v3783, %v3955
        %v4010 = vadd.f32 %v3784, %v3957
        %v4011 = vadd.f32 %v3785, %v3959
        %v4012 = vadd.f32 %v3786, %v3961
        %v4013 = vadd.f32 %v3787, %v3965
        %v4014 = vadd.f32 %v3788, %v3967
        %v4015 = vadd.f32 %v3789, %v3969
        %v4016 = vadd.f32 %v3790, %v3971
        %v4017 = vadd.f32 %v3791, %v3975
        %v4018 = vadd.f32 %v3792, %v3977
        %v4019 = vadd.f32 %v3793, %v3979
        %v4020 = vadd.f32 %v3794, %v3981
        %v4021 = vadd.f32 %v3795, %v3985
        %v4022 = vadd.f32 %v3796, %v3987
        %v4023 = vadd.f32 %v3797, %v3989
        %v4024 = vadd.f32 %v3798, %v3991
        %4025 = vrot.lane.b32.xlu0 %v2736, 127
        %v4026 = vpop.permute.xlu0 %4025
        %4027 = vrot.lane.b32.xlu0 %v2740, 127
        %v4028 = vpop.permute.xlu0 %4027
        %4029 = vrot.lane.b32.xlu0 %v2744, 127
        %v4030 = vpop.permute.xlu0 %4029
        %4031 = vrot.lane.b32.xlu0 %v2748, 127
        %v4032 = vpop.permute.xlu0 %4031
        %4033 = vrot.lane.b32.xlu0 %v2752, 127
        %v4034 = vpop.permute.xlu0 %4033
        %4035 = vrot.lane.b32.xlu0 %v2756, 127
        %v4036 = vpop.permute.xlu0 %4035
        %4037 = vrot.lane.b32.xlu0 %v2760, 127
        %v4038 = vpop.permute.xlu0 %4037
        %4039 = vrot.lane.b32.xlu0 %v2764, 127
        %v4040 = vpop.permute.xlu0 %4039
        %4041 = vrot.lane.b32.xlu0 %v2768, 127
        %v4042 = vpop.permute.xlu0 %4041
        %4043 = vrot.lane.b32.xlu0 %v2772, 127
        %v4044 = vpop.permute.xlu0 %4043
        %4045 = vrot.lane.b32.xlu0 %v2776, 127
        %v4046 = vpop.permute.xlu0 %4045
        %4047 = vrot.lane.b32.xlu0 %v2780, 127
        %v4048 = vpop.permute.xlu0 %4047
        %4049 = vrot.lane.b32.xlu0 %v2784, 127
        %v4050 = vpop.permute.xlu0 %4049
        %4051 = vrot.lane.b32.xlu0 %v2788, 127
        %v4052 = vpop.permute.xlu0 %4051
        %4053 = vrot.lane.b32.xlu0 %v2792, 127
        %v4054 = vpop.permute.xlu0 %4053
        %4055 = vrot.lane.b32.xlu0 %v2796, 127
        %v4056 = vpop.permute.xlu0 %4055
        %4057 = vrot.lane.b32.xlu0 %v2737, 127
        %v4058 = vpop.permute.xlu0 %4057
        %4059 = vrot.lane.b32.xlu0 %v2741, 127
        %v4060 = vpop.permute.xlu0 %4059
        %4061 = vrot.lane.b32.xlu0 %v2745, 127
        %v4062 = vpop.permute.xlu0 %4061
        %4063 = vrot.lane.b32.xlu0 %v2749, 127
        %v4064 = vpop.permute.xlu0 %4063
        %4065 = vrot.lane.b32.xlu0 %v2753, 127
        %v4066 = vpop.permute.xlu0 %4065
        %4067 = vrot.lane.b32.xlu0 %v2757, 127
        %v4068 = vpop.permute.xlu0 %4067
        %4069 = vrot.lane.b32.xlu0 %v2761, 127
        %v4070 = vpop.permute.xlu0 %4069
        %4071 = vrot.lane.b32.xlu0 %v2765, 127
        %v4072 = vpop.permute.xlu0 %4071
        %4073 = vrot.lane.b32.xlu0 %v2769, 127
        %v4074 = vpop.permute.xlu0 %4073
        %4075 = vrot.lane.b32.xlu0 %v2773, 127
        %v4076 = vpop.permute.xlu0 %4075
        %4077 = vrot.lane.b32.xlu0 %v2777, 127
        %v4078 = vpop.permute.xlu0 %4077
        %4079 = vrot.lane.b32.xlu0 %v2781, 127
        %v4080 = vpop.permute.xlu0 %4079
        %4081 = vrot.lane.b32.xlu0 %v2785, 127
        %v4082 = vpop.permute.xlu0 %4081
        %4083 = vrot.lane.b32.xlu0 %v2789, 127
        %v4084 = vpop.permute.xlu0 %4083
        %4085 = vrot.lane.b32.xlu0 %v2793, 127
        %v4086 = vpop.permute.xlu0 %4085
        %4087 = vrot.lane.b32.xlu0 %v2797, 127
        %v4088 = vpop.permute.xlu0 %4087
        %4089 = vrot.lane.b32.xlu0 %v2738, 127
        %v4090 = vpop.permute.xlu0 %4089
        %4091 = vrot.lane.b32.xlu0 %v2742, 127
        %v4092 = vpop.permute.xlu0 %4091
        %4093 = vrot.lane.b32.xlu0 %v2746, 127
        %v4094 = vpop.permute.xlu0 %4093
        %4095 = vrot.lane.b32.xlu0 %v2750, 127
        %v4096 = vpop.permute.xlu0 %4095
        %4097 = vrot.lane.b32.xlu0 %v2754, 127
        %v4098 = vpop.permute.xlu0 %4097
        %4099 = vrot.lane.b32.xlu0 %v2758, 127
        %v4100 = vpop.permute.xlu0 %4099
        %4101 = vrot.lane.b32.xlu0 %v2762, 127
        %v4102 = vpop.permute.xlu0 %4101
        %4103 = vrot.lane.b32.xlu0 %v2766, 127
        %v4104 = vpop.permute.xlu0 %4103
        %4105 = vrot.lane.b32.xlu0 %v2770, 127
        %v4106 = vpop.permute.xlu0 %4105
        %4107 = vrot.lane.b32.xlu0 %v2774, 127
        %v4108 = vpop.permute.xlu0 %4107
        %4109 = vrot.lane.b32.xlu0 %v2778, 127
        %v4110 = vpop.permute.xlu0 %4109
        %4111 = vrot.lane.b32.xlu0 %v2782, 127
        %v4112 = vpop.permute.xlu0 %4111
        %4113 = vrot.lane.b32.xlu0 %v2786, 127
        %v4114 = vpop.permute.xlu0 %4113
        %4115 = vrot.lane.b32.xlu0 %v2790, 127
        %v4116 = vpop.permute.xlu0 %4115
        %4117 = vrot.lane.b32.xlu0 %v2794, 127
        %v4118 = vpop.permute.xlu0 %4117
        %4119 = vrot.lane.b32.xlu0 %v2798, 127
        %v4120 = vpop.permute.xlu0 %4119
        %vm4121 = vcmp.lt.s32.totalorder %v823, 127
        %v4122 = vsel %vm4121, %v4058, %v4090
        %v4123 = vsel %vm4121, %v4060, %v4092
        %v4124 = vsel %vm4121, %v4062, %v4094
        %v4125 = vsel %vm4121, %v4064, %v4096
        %v4126 = vsel %vm4121, %v4066, %v4098
        %v4127 = vsel %vm4121, %v4068, %v4100
        %v4128 = vsel %vm4121, %v4070, %v4102
        %v4129 = vsel %vm4121, %v4072, %v4104
        %v4130 = vsel %vm4121, %v4074, %v4106
        %v4131 = vsel %vm4121, %v4076, %v4108
        %v4132 = vsel %vm4121, %v4078, %v4110
        %v4133 = vsel %vm4121, %v4080, %v4112
        %v4134 = vsel %vm4121, %v4082, %v4114
        %v4135 = vsel %vm4121, %v4084, %v4116
        %v4136 = vsel %vm4121, %v4086, %v4118
        %v4137 = vsel %vm4121, %v4088, %v4120
        %v4138 = vsel %vm4121, %v4026, %v4058
        %v4139 = vsel %vm4121, %v4028, %v4060
        %v4140 = vsel %vm4121, %v4030, %v4062
        %v4141 = vsel %vm4121, %v4032, %v4064
        %v4142 = vsel %vm4121, %v4034, %v4066
        %v4143 = vsel %vm4121, %v4036, %v4068
        %v4144 = vsel %vm4121, %v4038, %v4070
        %v4145 = vsel %vm4121, %v4040, %v4072
        %v4146 = vsel %vm4121, %v4042, %v4074
        %v4147 = vsel %vm4121, %v4044, %v4076
        %v4148 = vsel %vm4121, %v4046, %v4078
        %v4149 = vsel %vm4121, %v4048, %v4080
        %v4150 = vsel %vm4121, %v4050, %v4082
        %v4151 = vsel %vm4121, %v4052, %v4084
        %v4152 = vsel %vm4121, %v4054, %v4086
        %v4153 = vsel %vm4121, %v4056, %v4088
        %s4154 = scalar_lea.vmem %s7, 256
        %v4155 = vld [vmem:[%s4154] sm:$0xf]
        %v4156 = vld [vmem:[%s4154 + $0x4] sm:$0xf]
        %v4157 = vld [vmem:[%s4154 + $0x8] sm:$0xf]
        %v4158 = vld [vmem:[%s4154 + $0xc] sm:$0xf]
        %v4159 = vld [vmem:[%s4154 + $0x10] sm:$0xf]
        %v4160 = vld [vmem:[%s4154 + $0x14] sm:$0xf]
        %v4161 = vld [vmem:[%s4154 + $0x18] sm:$0xf]
        %v4162 = vld [vmem:[%s4154 + $0x1c] sm:$0xf]
        %v4163 = vld [vmem:[%s4154 + $0x20] sm:$0xf]
        %v4164 = vld [vmem:[%s4154 + $0x24] sm:$0xf]
        %v4165 = vld [vmem:[%s4154 + $0x28] sm:$0xf]
        %v4166 = vld [vmem:[%s4154 + $0x2c] sm:$0xf]
        %v4167 = vld [vmem:[%s4154 + $0x30] sm:$0xf]
        %v4168 = vld [vmem:[%s4154 + $0x34] sm:$0xf]
        %v4169 = vld [vmem:[%s4154 + $0x38] sm:$0xf]
        %v4170 = vld [vmem:[%s4154 + $0x3c] sm:$0xf]
        %v4171 = vpack.c.bf16 %v4139, %v4138
        %v4172 = vpack.c.bf16 %v4123, %v4122
        %v4173 = vpack.c.bf16 %v4141, %v4140
        %v4174 = vpack.c.bf16 %v4125, %v4124
        %v4175 = vpack.c.bf16 %v4143, %v4142
        %v4176 = vpack.c.bf16 %v4127, %v4126
        %v4177 = vpack.c.bf16 %v4145, %v4144
        %v4178 = vpack.c.bf16 %v4129, %v4128
        %v4179 = vpack.c.bf16 %v4147, %v4146
        %v4180 = vpack.c.bf16 %v4131, %v4130
        %v4181 = vpack.c.bf16 %v4149, %v4148
        %v4182 = vpack.c.bf16 %v4133, %v4132
        %v4183 = vpack.c.bf16 %v4151, %v4150
        %v4184 = vpack.c.bf16 %v4135, %v4134
        %v4185 = vpack.c.bf16 %v4153, %v4152
        %v4186 = vpack.c.bf16 %v4137, %v4136
        %v4203 = vunpack.c.l.b16 %v4155
        %v4204 = vunpack.c.l.b16 %v4156
        %v4205 = vunpack.c.l.b16 %v4157
        %v4206 = vunpack.c.l.b16 %v4158
        %v4207 = vunpack.c.l.b16 %v4159
        %v4208 = vunpack.c.l.b16 %v4160
        %v4209 = vunpack.c.l.b16 %v4161
        %v4210 = vunpack.c.l.b16 %v4162
        %v4211 = vunpack.c.l.b16 %v4163
        %v4212 = vunpack.c.l.b16 %v4164
        %v4213 = vunpack.c.l.b16 %v4165
        %v4214 = vunpack.c.l.b16 %v4166
        %v4215 = vunpack.c.l.b16 %v4167
        %v4216 = vunpack.c.l.b16 %v4168
        %v4217 = vunpack.c.l.b16 %v4169
        %v4218 = vunpack.c.l.b16 %v4170
        %v4219 = vpack.c.b16 %v4204, %v4203
        %v4220 = vpack.c.b16 %v4206, %v4205
        %v4221 = vpack.c.b16 %v4208, %v4207
        %v4222 = vpack.c.b16 %v4210, %v4209
        %v4223 = vpack.c.b16 %v4212, %v4211
        %v4224 = vpack.c.b16 %v4214, %v4213
        %v4225 = vpack.c.b16 %v4216, %v4215
        %v4226 = vpack.c.b16 %v4218, %v4217
        %4235 = vmatprep.subr.bf16.mxu0 %v4172
        %4236 = vmatpush1.bf16.msra.mxu0 %v4171
        %4237 = vmatprep.subr.bf16.mxu0 %v4174
        %4238 = vmatpush1.bf16.msra.mxu0 %v4173
        %4239 = vmatprep.subr.bf16.mxu0 %v4176
        %4240 = vmatpush1.bf16.msra.mxu0 %v4175
        %4241 = vmatprep.subr.bf16.mxu0 %v4178
        %4242 = vmatpush1.bf16.msra.mxu0 %v4177
        %4243 = vmatprep.subr.bf16.mxu0 %v4180
        %4244 = vmatpush1.bf16.msra.mxu0 %v4179
        %4245 = vmatprep.subr.bf16.mxu0 %v4182
        %4246 = vmatpush1.bf16.msra.mxu0 %v4181
        %4247 = vmatprep.subr.bf16.mxu0 %v4184
        %4248 = vmatpush1.bf16.msra.mxu0 %v4183
        %4249 = vmatprep.subr.bf16.mxu0 %v4186
        %4250 = vmatpush1.bf16.msra.mxu0 %v4185
        %4251 = vmatprep.subr.bf16.mxu0 0
        %4252 = vmatpush1.bf16.msra.mxu0 0
        %4253 = vmatprep.subr.bf16.mxu0 0
        %4254 = vmatpush1.bf16.msra.mxu0 0
        %4255 = vmatprep.subr.bf16.mxu0 0
        %4256 = vmatpush1.bf16.msra.mxu0 0
        %4257 = vmatprep.subr.bf16.mxu0 0
        %4258 = vmatpush1.bf16.msra.mxu0 0
        %4259 = vmatprep.subr.bf16.mxu0 0
        %4260 = vmatpush1.bf16.msra.mxu0 0
        %4261 = vmatprep.subr.bf16.mxu0 0
        %4262 = vmatpush1.bf16.msra.mxu0 0
        %4263 = vmatprep.subr.bf16.mxu0 0
        %4264 = vmatpush1.bf16.msra.mxu0 0
        %4265 = vmatprep.subr.bf16.mxu0 0
        %4266 = vmatpush1.bf16.msra.mxu0 0
        %4267 = vmatprep.mubr.bf16.mxu0 0
        %4268 = vmatmul.mubr.bf16.gmra.mrb[0].mxu0 %v4219
        %v4269 = vpop.f32.mrb[0].mxu0
        %v4270 = vadd.f32 0.0, %v4269
        %v4271 = vpop.f32.mrb[0].mxu0
        %v4272 = vadd.f32 0.0, %v4271
        %v4273 = vpop.f32.mrb[0].mxu0
        %v4274 = vadd.f32 0.0, %v4273
        %v4275 = vpop.f32.mrb[0].mxu0
        %v4276 = vadd.f32 0.0, %v4275
        %4277 = vmatprep.mubr.bf16.mxu0 0
        %4278 = vmatmul.mubr.bf16.gmra.mrb[0].mxu0 %v4220
        %v4279 = vpop.f32.mrb[0].mxu0
        %v4280 = vadd.f32 0.0, %v4279
        %v4281 = vpop.f32.mrb[0].mxu0
        %v4282 = vadd.f32 0.0, %v4281
        %v4283 = vpop.f32.mrb[0].mxu0
        %v4284 = vadd.f32 0.0, %v4283
        %v4285 = vpop.f32.mrb[0].mxu0
        %v4286 = vadd.f32 0.0, %v4285
        %4287 = vmatprep.mubr.bf16.mxu0 0
        %4288 = vmatmul.mubr.bf16.gmra.mrb[0].mxu0 %v4221
        %v4289 = vpop.f32.mrb[0].mxu0
        %v4290 = vadd.f32 0.0, %v4289
        %v4291 = vpop.f32.mrb[0].mxu0
        %v4292 = vadd.f32 0.0, %v4291
        %v4293 = vpop.f32.mrb[0].mxu0
        %v4294 = vadd.f32 0.0, %v4293
        %v4295 = vpop.f32.mrb[0].mxu0
        %v4296 = vadd.f32 0.0, %v4295
        %4297 = vmatprep.mubr.bf16.mxu0 0
        %4298 = vmatmul.mubr.bf16.gmra.mrb[0].mxu0 %v4222
        %v4299 = vpop.f32.mrb[0].mxu0
        %v4300 = vadd.f32 0.0, %v4299
        %v4301 = vpop.f32.mrb[0].mxu0
        %v4302 = vadd.f32 0.0, %v4301
        %v4303 = vpop.f32.mrb[0].mxu0
        %v4304 = vadd.f32 0.0, %v4303
        %v4305 = vpop.f32.mrb[0].mxu0
        %v4306 = vadd.f32 0.0, %v4305
        %4307 = vmatprep.mubr.bf16.mxu0 0
        %4308 = vmatmul.mubr.bf16.gmra.mrb[0].mxu0 %v4223
        %v4309 = vpop.f32.mrb[0].mxu0
        %v4310 = vadd.f32 0.0, %v4309
        %v4311 = vpop.f32.mrb[0].mxu0
        %v4312 = vadd.f32 0.0, %v4311
        %v4313 = vpop.f32.mrb[0].mxu0
        %v4314 = vadd.f32 0.0, %v4313
        %v4315 = vpop.f32.mrb[0].mxu0
        %v4316 = vadd.f32 0.0, %v4315
        %4317 = vmatprep.mubr.bf16.mxu0 0
        %4318 = vmatmul.mubr.bf16.gmra.mrb[0].mxu0 %v4224
        %v4319 = vpop.f32.mrb[0].mxu0
        %v4320 = vadd.f32 0.0, %v4319
        %v4321 = vpop.f32.mrb[0].mxu0
        %v4322 = vadd.f32 0.0, %v4321
        %v4323 = vpop.f32.mrb[0].mxu0
        %v4324 = vadd.f32 0.0, %v4323
        %v4325 = vpop.f32.mrb[0].mxu0
        %v4326 = vadd.f32 0.0, %v4325
        %4327 = vmatprep.mubr.bf16.mxu0 0
        %4328 = vmatmul.mubr.bf16.gmra.mrb[0].mxu0 %v4225
        %v4329 = vpop.f32.mrb[0].mxu0
        %v4330 = vadd.f32 0.0, %v4329
        %v4331 = vpop.f32.mrb[0].mxu0
        %v4332 = vadd.f32 0.0, %v4331
        %v4333 = vpop.f32.mrb[0].mxu0
        %v4334 = vadd.f32 0.0, %v4333
        %v4335 = vpop.f32.mrb[0].mxu0
        %v4336 = vadd.f32 0.0, %v4335
        %4337 = vmatprep.mubr.bf16.mxu0 0
        %4338 = vmatmul.mubr.bf16.gmra.mrb[0].mxu0 %v4226
        %v4339 = vpop.f32.mrb[0].mxu0
        %v4340 = vadd.f32 0.0, %v4339
        %v4341 = vpop.f32.mrb[0].mxu0
        %v4342 = vadd.f32 0.0, %v4341
        %v4343 = vpop.f32.mrb[0].mxu0
        %v4344 = vadd.f32 0.0, %v4343
        %v4345 = vpop.f32.mrb[0].mxu0
        %v4346 = vadd.f32 0.0, %v4345
        %4347 = vdwg.mxu0
        %v4348 = vadd.f32 %v3993, %v4270
        %v4349 = vadd.f32 %v3994, %v4272
        %v4350 = vadd.f32 %v3995, %v4274
        %v4351 = vadd.f32 %v3996, %v4276
        %v4352 = vadd.f32 %v3997, %v4280
        %v4353 = vadd.f32 %v3998, %v4282
        %v4354 = vadd.f32 %v3999, %v4284
        %v4355 = vadd.f32 %v4000, %v4286
        %v4356 = vadd.f32 %v4001, %v4290
        %v4357 = vadd.f32 %v4002, %v4292
        %v4358 = vadd.f32 %v4003, %v4294
        %v4359 = vadd.f32 %v4004, %v4296
        %v4360 = vadd.f32 %v4005, %v4300
        %v4361 = vadd.f32 %v4006, %v4302
        %v4362 = vadd.f32 %v4007, %v4304
        %v4363 = vadd.f32 %v4008, %v4306
        %v4364 = vadd.f32 %v4009, %v4310
        %v4365 = vadd.f32 %v4010, %v4312
        %v4366 = vadd.f32 %v4011, %v4314
        %v4367 = vadd.f32 %v4012, %v4316
        %v4368 = vadd.f32 %v4013, %v4320
        %v4369 = vadd.f32 %v4014, %v4322
        %v4370 = vadd.f32 %v4015, %v4324
        %v4371 = vadd.f32 %v4016, %v4326
        %v4372 = vadd.f32 %v4017, %v4330
        %v4373 = vadd.f32 %v4018, %v4332
        %v4374 = vadd.f32 %v4019, %v4334
        %v4375 = vadd.f32 %v4020, %v4336
        %v4376 = vadd.f32 %v4021, %v4340
        %v4377 = vadd.f32 %v4022, %v4342
        %v4378 = vadd.f32 %v4023, %v4344
        %v4379 = vadd.f32 %v4024, %v4346
        %4380 = vrot.lane.b32.xlu0 %v2736, 126
        %v4381 = vpop.permute.xlu0 %4380
        %4382 = vrot.lane.b32.xlu0 %v2740, 126
        %v4383 = vpop.permute.xlu0 %4382
        %4384 = vrot.lane.b32.xlu0 %v2744, 126
        %v4385 = vpop.permute.xlu0 %4384
        %4386 = vrot.lane.b32.xlu0 %v2748, 126
        %v4387 = vpop.permute.xlu0 %4386
        %4388 = vrot.lane.b32.xlu0 %v2752, 126
        %v4389 = vpop.permute.xlu0 %4388
        %4390 = vrot.lane.b32.xlu0 %v2756, 126
        %v4391 = vpop.permute.xlu0 %4390
        %4392 = vrot.lane.b32.xlu0 %v2760, 126
        %v4393 = vpop.permute.xlu0 %4392
        %4394 = vrot.lane.b32.xlu0 %v2764, 126
        %v4395 = vpop.permute.xlu0 %4394
        %4396 = vrot.lane.b32.xlu0 %v2768, 126
        %v4397 = vpop.permute.xlu0 %4396
        %4398 = vrot.lane.b32.xlu0 %v2772, 126
        %v4399 = vpop.permute.xlu0 %4398
        %4400 = vrot.lane.b32.xlu0 %v2776, 126
        %v4401 = vpop.permute.xlu0 %4400
        %4402 = vrot.lane.b32.xlu0 %v2780, 126
        %v4403 = vpop.permute.xlu0 %4402
        %4404 = vrot.lane.b32.xlu0 %v2784, 126
        %v4405 = vpop.permute.xlu0 %4404
        %4406 = vrot.lane.b32.xlu0 %v2788, 126
        %v4407 = vpop.permute.xlu0 %4406
        %4408 = vrot.lane.b32.xlu0 %v2792, 126
        %v4409 = vpop.permute.xlu0 %4408
        %4410 = vrot.lane.b32.xlu0 %v2796, 126
        %v4411 = vpop.permute.xlu0 %4410
        %4412 = vrot.lane.b32.xlu0 %v2737, 126
        %v4413 = vpop.permute.xlu0 %4412
        %4414 = vrot.lane.b32.xlu0 %v2741, 126
        %v4415 = vpop.permute.xlu0 %4414
        %4416 = vrot.lane.b32.xlu0 %v2745, 126
        %v4417 = vpop.permute.xlu0 %4416
        %4418 = vrot.lane.b32.xlu0 %v2749, 126
        %v4419 = vpop.permute.xlu0 %4418
        %4420 = vrot.lane.b32.xlu0 %v2753, 126
        %v4421 = vpop.permute.xlu0 %4420
        %4422 = vrot.lane.b32.xlu0 %v2757, 126
        %v4423 = vpop.permute.xlu0 %4422
        %4424 = vrot.lane.b32.xlu0 %v2761, 126
        %v4425 = vpop.permute.xlu0 %4424
        %4426 = vrot.lane.b32.xlu0 %v2765, 126
        %v4427 = vpop.permute.xlu0 %4426
        %4428 = vrot.lane.b32.xlu0 %v2769, 126
        %v4429 = vpop.permute.xlu0 %4428
        %4430 = vrot.lane.b32.xlu0 %v2773, 126
        %v4431 = vpop.permute.xlu0 %4430
        %4432 = vrot.lane.b32.xlu0 %v2777, 126
        %v4433 = vpop.permute.xlu0 %4432
        %4434 = vrot.lane.b32.xlu0 %v2781, 126
        %v4435 = vpop.permute.xlu0 %4434
        %4436 = vrot.lane.b32.xlu0 %v2785, 126
        %v4437 = vpop.permute.xlu0 %4436
        %4438 = vrot.lane.b32.xlu0 %v2789, 126
        %v4439 = vpop.permute.xlu0 %4438
        %4440 = vrot.lane.b32.xlu0 %v2793, 126
        %v4441 = vpop.permute.xlu0 %4440
        %4442 = vrot.lane.b32.xlu0 %v2797, 126
        %v4443 = vpop.permute.xlu0 %4442
        %4444 = vrot.lane.b32.xlu0 %v2738, 126
        %v4445 = vpop.permute.xlu0 %4444
        %4446 = vrot.lane.b32.xlu0 %v2742, 126
        %v4447 = vpop.permute.xlu0 %4446
        %4448 = vrot.lane.b32.xlu0 %v2746, 126
        %v4449 = vpop.permute.xlu0 %4448
        %4450 = vrot.lane.b32.xlu0 %v2750, 126
        %v4451 = vpop.permute.xlu0 %4450
        %4452 = vrot.lane.b32.xlu0 %v2754, 126
        %v4453 = vpop.permute.xlu0 %4452
        %4454 = vrot.lane.b32.xlu0 %v2758, 126
        %v4455 = vpop.permute.xlu0 %4454
        %4456 = vrot.lane.b32.xlu0 %v2762, 126
        %v4457 = vpop.permute.xlu0 %4456
        %4458 = vrot.lane.b32.xlu0 %v2766, 126
        %v4459 = vpop.permute.xlu0 %4458
        %4460 = vrot.lane.b32.xlu0 %v2770, 126
        %v4461 = vpop.permute.xlu0 %4460
        %4462 = vrot.lane.b32.xlu0 %v2774, 126
        %v4463 = vpop.permute.xlu0 %4462
        %4464 = vrot.lane.b32.xlu0 %v2778, 126
        %v4465 = vpop.permute.xlu0 %4464
        %4466 = vrot.lane.b32.xlu0 %v2782, 126
        %v4467 = vpop.permute.xlu0 %4466
        %4468 = vrot.lane.b32.xlu0 %v2786, 126
        %v4469 = vpop.permute.xlu0 %4468
        %4470 = vrot.lane.b32.xlu0 %v2790, 126
        %v4471 = vpop.permute.xlu0 %4470
        %4472 = vrot.lane.b32.xlu0 %v2794, 126
        %v4473 = vpop.permute.xlu0 %4472
        %4474 = vrot.lane.b32.xlu0 %v2798, 126
        %v4475 = vpop.permute.xlu0 %4474
        %vm4476 = vcmp.lt.s32.totalorder %v823, 126
        %v4477 = vsel %vm4476, %v4413, %v4445
        %v4478 = vsel %vm4476, %v4415, %v4447
        %v4479 = vsel %vm4476, %v4417, %v4449
        %v4480 = vsel %vm4476, %v4419, %v4451
        %v4481 = vsel %vm4476, %v4421, %v4453
        %v4482 = vsel %vm4476, %v4423, %v4455
        %v4483 = vsel %vm4476, %v4425, %v4457
        %v4484 = vsel %vm4476, %v4427, %v4459
        %v4485 = vsel %vm4476, %v4429, %v4461
        %v4486 = vsel %vm4476, %v4431, %v4463
        %v4487 = vsel %vm4476, %v4433, %v4465
        %v4488 = vsel %vm4476, %v4435, %v4467
        %v4489 = vsel %vm4476, %v4437, %v4469
        %v4490 = vsel %vm4476, %v4439, %v4471
        %v4491 = vsel %vm4476, %v4441, %v4473
        %v4492 = vsel %vm4476, %v4443, %v4475
        %v4493 = vsel %vm4476, %v4381, %v4413
        %v4494 = vsel %vm4476, %v4383, %v4415
        %v4495 = vsel %vm4476, %v4385, %v4417
        %v4496 = vsel %vm4476, %v4387, %v4419
        %v4497 = vsel %vm4476, %v4389, %v4421
        %v4498 = vsel %vm4476, %v4391, %v4423
        %v4499 = vsel %vm4476, %v4393, %v4425
        %v4500 = vsel %vm4476, %v4395, %v4427
        %v4501 = vsel %vm4476, %v4397, %v4429
        %v4502 = vsel %vm4476, %v4399, %v4431
        %v4503 = vsel %vm4476, %v4401, %v4433
        %v4504 = vsel %vm4476, %v4403, %v4435
        %v4505 = vsel %vm4476, %v4405, %v4437
        %v4506 = vsel %vm4476, %v4407, %v4439
        %v4507 = vsel %vm4476, %v4409, %v4441
        %v4508 = vsel %vm4476, %v4411, %v4443
        %s4509 = scalar_lea.vmem %s7, 320
        %v4510 = vld [vmem:[%s4509] sm:$0xf]
        %v4511 = vld [vmem:[%s4509 + $0x4] sm:$0xf]
        %v4512 = vld [vmem:[%s4509 + $0x8] sm:$0xf]
        %v4513 = vld [vmem:[%s4509 + $0xc] sm:$0xf]
        %v4514 = vld [vmem:[%s4509 + $0x10] sm:$0xf]
        %v4515 = vld [vmem:[%s4509 + $0x14] sm:$0xf]
        %v4516 = vld [vmem:[%s4509 + $0x18] sm:$0xf]
        %v4517 = vld [vmem:[%s4509 + $0x1c] sm:$0xf]
        %v4518 = vld [vmem:[%s4509 + $0x20] sm:$0xf]
        %v4519 = vld [vmem:[%s4509 + $0x24] sm:$0xf]
        %v4520 = vld [vmem:[%s4509 + $0x28] sm:$0xf]
        %v4521 = vld [vmem:[%s4509 + $0x2c] sm:$0xf]
        %v4522 = vld [vmem:[%s4509 + $0x30] sm:$0xf]
        %v4523 = vld [vmem:[%s4509 + $0x34] sm:$0xf]
        %v4524 = vld [vmem:[%s4509 + $0x38] sm:$0xf]
        %v4525 = vld [vmem:[%s4509 + $0x3c] sm:$0xf]
        %v4526 = vpack.c.bf16 %v4494, %v4493
        %v4527 = vpack.c.bf16 %v4478, %v4477
        %v4528 = vpack.c.bf16 %v4496, %v4495
        %v4529 = vpack.c.bf16 %v4480, %v4479
        %v4530 = vpack.c.bf16 %v4498, %v4497
        %v4531 = vpack.c.bf16 %v4482, %v4481
        %v4532 = vpack.c.bf16 %v4500, %v4499
        %v4533 = vpack.c.bf16 %v4484, %v4483
        %v4534 = vpack.c.bf16 %v4502, %v4501
        %v4535 = vpack.c.bf16 %v4486, %v4485
        %v4536 = vpack.c.bf16 %v4504, %v4503
        %v4537 = vpack.c.bf16 %v4488, %v4487
        %v4538 = vpack.c.bf16 %v4506, %v4505
        %v4539 = vpack.c.bf16 %v4490, %v4489
        %v4540 = vpack.c.bf16 %v4508, %v4507
        %v4541 = vpack.c.bf16 %v4492, %v4491
        %v4558 = vunpack.c.l.b16 %v4510
        %v4559 = vunpack.c.l.b16 %v4511
        %v4560 = vunpack.c.l.b16 %v4512
        %v4561 = vunpack.c.l.b16 %v4513
        %v4562 = vunpack.c.l.b16 %v4514
        %v4563 = vunpack.c.l.b16 %v4515
        %v4564 = vunpack.c.l.b16 %v4516
        %v4565 = vunpack.c.l.b16 %v4517
        %v4566 = vunpack.c.l.b16 %v4518
        %v4567 = vunpack.c.l.b16 %v4519
        %v4568 = vunpack.c.l.b16 %v4520
        %v4569 = vunpack.c.l.b16 %v4521
        %v4570 = vunpack.c.l.b16 %v4522
        %v4571 = vunpack.c.l.b16 %v4523
        %v4572 = vunpack.c.l.b16 %v4524
        %v4573 = vunpack.c.l.b16 %v4525
        %v4574 = vpack.c.b16 %v4559, %v4558
        %v4575 = vpack.c.b16 %v4561, %v4560
        %v4576 = vpack.c.b16 %v4563, %v4562
        %v4577 = vpack.c.b16 %v4565, %v4564
        %v4578 = vpack.c.b16 %v4567, %v4566
        %v4579 = vpack.c.b16 %v4569, %v4568
        %v4580 = vpack.c.b16 %v4571, %v4570
        %v4581 = vpack.c.b16 %v4573, %v4572
        %4590 = vmatprep.subr.bf16.mxu0 %v4527
        %4591 = vmatpush1.bf16.msra.mxu0 %v4526
        %4592 = vmatprep.subr.bf16.mxu0 %v4529
        %4593 = vmatpush1.bf16.msra.mxu0 %v4528
        %4594 = vmatprep.subr.bf16.mxu0 %v4531
        %4595 = vmatpush1.bf16.msra.mxu0 %v4530
        %4596 = vmatprep.subr.bf16.mxu0 %v4533
        %4597 = vmatpush1.bf16.msra.mxu0 %v4532
        %4598 = vmatprep.subr.bf16.mxu0 %v4535
        %4599 = vmatpush1.bf16.msra.mxu0 %v4534
        %4600 = vmatprep.subr.bf16.mxu0 %v4537
        %4601 = vmatpush1.bf16.msra.mxu0 %v4536
        %4602 = vmatprep.subr.bf16.mxu0 %v4539
        %4603 = vmatpush1.bf16.msra.mxu0 %v4538
        %4604 = vmatprep.subr.bf16.mxu0 %v4541
        %4605 = vmatpush1.bf16.msra.mxu0 %v4540
        %4606 = vmatprep.subr.bf16.mxu0 0
        %4607 = vmatpush1.bf16.msra.mxu0 0
        %4608 = vmatprep.subr.bf16.mxu0 0
        %4609 = vmatpush1.bf16.msra.mxu0 0
        %4610 = vmatprep.subr.bf16.mxu0 0
        %4611 = vmatpush1.bf16.msra.mxu0 0
        %4612 = vmatprep.subr.bf16.mxu0 0
        %4613 = vmatpush1.bf16.msra.mxu0 0
        %4614 = vmatprep.subr.bf16.mxu0 0
        %4615 = vmatpush1.bf16.msra.mxu0 0
        %4616 = vmatprep.subr.bf16.mxu0 0
        %4617 = vmatpush1.bf16.msra.mxu0 0
        %4618 = vmatprep.subr.bf16.mxu0 0
        %4619 = vmatpush1.bf16.msra.mxu0 0
        %4620 = vmatprep.subr.bf16.mxu0 0
        %4621 = vmatpush1.bf16.msra.mxu0 0
        %4622 = vmatprep.mubr.bf16.mxu0 0
        %4623 = vmatmul.mubr.bf16.gmra.mrb[0].mxu0 %v4574
        %v4624 = vpop.f32.mrb[0].mxu0
        %v4625 = vadd.f32 0.0, %v4624
        %v4626 = vpop.f32.mrb[0].mxu0
        %v4627 = vadd.f32 0.0, %v4626
        %v4628 = vpop.f32.mrb[0].mxu0
        %v4629 = vadd.f32 0.0, %v4628
        %v4630 = vpop.f32.mrb[0].mxu0
        %v4631 = vadd.f32 0.0, %v4630
        %4632 = vmatprep.mubr.bf16.mxu0 0
        %4633 = vmatmul.mubr.bf16.gmra.mrb[0].mxu0 %v4575
        %v4634 = vpop.f32.mrb[0].mxu0
        %v4635 = vadd.f32 0.0, %v4634
        %v4636 = vpop.f32.mrb[0].mxu0
        %v4637 = vadd.f32 0.0, %v4636
        %v4638 = vpop.f32.mrb[0].mxu0
        %v4639 = vadd.f32 0.0, %v4638
        %v4640 = vpop.f32.mrb[0].mxu0
        %v4641 = vadd.f32 0.0, %v4640
        %4642 = vmatprep.mubr.bf16.mxu0 0
        %4643 = vmatmul.mubr.bf16.gmra.mrb[0].mxu0 %v4576
        %v4644 = vpop.f32.mrb[0].mxu0
        %v4645 = vadd.f32 0.0, %v4644
        %v4646 = vpop.f32.mrb[0].mxu0
        %v4647 = vadd.f32 0.0, %v4646
        %v4648 = vpop.f32.mrb[0].mxu0
        %v4649 = vadd.f32 0.0, %v4648
        %v4650 = vpop.f32.mrb[0].mxu0
        %v4651 = vadd.f32 0.0, %v4650
        %4652 = vmatprep.mubr.bf16.mxu0 0
        %4653 = vmatmul.mubr.bf16.gmra.mrb[0].mxu0 %v4577
        %v4654 = vpop.f32.mrb[0].mxu0
        %v4655 = vadd.f32 0.0, %v4654
        %v4656 = vpop.f32.mrb[0].mxu0
        %v4657 = vadd.f32 0.0, %v4656
        %v4658 = vpop.f32.mrb[0].mxu0
        %v4659 = vadd.f32 0.0, %v4658
        %v4660 = vpop.f32.mrb[0].mxu0
        %v4661 = vadd.f32 0.0, %v4660
        %4662 = vmatprep.mubr.bf16.mxu0 0
        %4663 = vmatmul.mubr.bf16.gmra.mrb[0].mxu0 %v4578
        %v4664 = vpop.f32.mrb[0].mxu0
        %v4665 = vadd.f32 0.0, %v4664
        %v4666 = vpop.f32.mrb[0].mxu0
        %v4667 = vadd.f32 0.0, %v4666
        %v4668 = vpop.f32.mrb[0].mxu0
        %v4669 = vadd.f32 0.0, %v4668
        %v4670 = vpop.f32.mrb[0].mxu0
        %v4671 = vadd.f32 0.0, %v4670
        %4672 = vmatprep.mubr.bf16.mxu0 0
        %4673 = vmatmul.mubr.bf16.gmra.mrb[0].mxu0 %v4579
        %v4674 = vpop.f32.mrb[0].mxu0
        %v4675 = vadd.f32 0.0, %v4674
        %v4676 = vpop.f32.mrb[0].mxu0
        %v4677 = vadd.f32 0.0, %v4676
        %v4678 = vpop.f32.mrb[0].mxu0
        %v4679 = vadd.f32 0.0, %v4678
        %v4680 = vpop.f32.mrb[0].mxu0
        %v4681 = vadd.f32 0.0, %v4680
        %4682 = vmatprep.mubr.bf16.mxu0 0
        %4683 = vmatmul.mubr.bf16.gmra.mrb[0].mxu0 %v4580
        %v4684 = vpop.f32.mrb[0].mxu0
        %v4685 = vadd.f32 0.0, %v4684
        %v4686 = vpop.f32.mrb[0].mxu0
        %v4687 = vadd.f32 0.0, %v4686
        %v4688 = vpop.f32.mrb[0].mxu0
        %v4689 = vadd.f32 0.0, %v4688
        %v4690 = vpop.f32.mrb[0].mxu0
        %v4691 = vadd.f32 0.0, %v4690
        %4692 = vmatprep.mubr.bf16.mxu0 0
        %4693 = vmatmul.mubr.bf16.gmra.mrb[0].mxu0 %v4581
        %v4694 = vpop.f32.mrb[0].mxu0
        %v4695 = vadd.f32 0.0, %v4694
        %v4696 = vpop.f32.mrb[0].mxu0
        %v4697 = vadd.f32 0.0, %v4696
        %v4698 = vpop.f32.mrb[0].mxu0
        %v4699 = vadd.f32 0.0, %v4698
        %v4700 = vpop.f32.mrb[0].mxu0
        %v4701 = vadd.f32 0.0, %v4700
        %4702 = vdwg.mxu0
        %v4703 = vadd.f32 %v4348, %v4625
        %v4704 = vadd.f32 %v4349, %v4627
        %v4705 = vadd.f32 %v4350, %v4629
        %v4706 = vadd.f32 %v4351, %v4631
        %v4707 = vadd.f32 %v4352, %v4635
        %v4708 = vadd.f32 %v4353, %v4637
        %v4709 = vadd.f32 %v4354, %v4639
        %v4710 = vadd.f32 %v4355, %v4641
        %v4711 = vadd.f32 %v4356, %v4645
        %v4712 = vadd.f32 %v4357, %v4647
        %v4713 = vadd.f32 %v4358, %v4649
        %v4714 = vadd.f32 %v4359, %v4651
        %v4715 = vadd.f32 %v4360, %v4655
        %v4716 = vadd.f32 %v4361, %v4657
        %v4717 = vadd.f32 %v4362, %v4659
        %v4718 = vadd.f32 %v4363, %v4661
        %v4719 = vadd.f32 %v4364, %v4665
        %v4720 = vadd.f32 %v4365, %v4667
        %v4721 = vadd.f32 %v4366, %v4669
        %v4722 = vadd.f32 %v4367, %v4671
        %v4723 = vadd.f32 %v4368, %v4675
        %v4724 = vadd.f32 %v4369, %v4677
        %v4725 = vadd.f32 %v4370, %v4679
        %v4726 = vadd.f32 %v4371, %v4681
        %v4727 = vadd.f32 %v4372, %v4685
        %v4728 = vadd.f32 %v4373, %v4687
        %v4729 = vadd.f32 %v4374, %v4689
        %v4730 = vadd.f32 %v4375, %v4691
        %v4731 = vadd.f32 %v4376, %v4695
        %v4732 = vadd.f32 %v4377, %v4697
        %v4733 = vadd.f32 %v4378, %v4699
        %v4734 = vadd.f32 %v4379, %v4701
        %4735 = vrot.lane.b32.xlu0 %v2736, 125
        %v4736 = vpop.permute.xlu0 %4735
        %4737 = vrot.lane.b32.xlu0 %v2740, 125
        %v4738 = vpop.permute.xlu0 %4737
        %4739 = vrot.lane.b32.xlu0 %v2744, 125
        %v4740 = vpop.permute.xlu0 %4739
        %4741 = vrot.lane.b32.xlu0 %v2748, 125
        %v4742 = vpop.permute.xlu0 %4741
        %4743 = vrot.lane.b32.xlu0 %v2752, 125
        %v4744 = vpop.permute.xlu0 %4743
        %4745 = vrot.lane.b32.xlu0 %v2756, 125
        %v4746 = vpop.permute.xlu0 %4745
        %4747 = vrot.lane.b32.xlu0 %v2760, 125
        %v4748 = vpop.permute.xlu0 %4747
        %4749 = vrot.lane.b32.xlu0 %v2764, 125
        %v4750 = vpop.permute.xlu0 %4749
        %4751 = vrot.lane.b32.xlu0 %v2768, 125
        %v4752 = vpop.permute.xlu0 %4751
        %4753 = vrot.lane.b32.xlu0 %v2772, 125
        %v4754 = vpop.permute.xlu0 %4753
        %4755 = vrot.lane.b32.xlu0 %v2776, 125
        %v4756 = vpop.permute.xlu0 %4755
        %4757 = vrot.lane.b32.xlu0 %v2780, 125
        %v4758 = vpop.permute.xlu0 %4757
        %4759 = vrot.lane.b32.xlu0 %v2784, 125
        %v4760 = vpop.permute.xlu0 %4759
        %4761 = vrot.lane.b32.xlu0 %v2788, 125
        %v4762 = vpop.permute.xlu0 %4761
        %4763 = vrot.lane.b32.xlu0 %v2792, 125
        %v4764 = vpop.permute.xlu0 %4763
        %4765 = vrot.lane.b32.xlu0 %v2796, 125
        %v4766 = vpop.permute.xlu0 %4765
        %4767 = vrot.lane.b32.xlu0 %v2737, 125
        %v4768 = vpop.permute.xlu0 %4767
        %4769 = vrot.lane.b32.xlu0 %v2741, 125
        %v4770 = vpop.permute.xlu0 %4769
        %4771 = vrot.lane.b32.xlu0 %v2745, 125
        %v4772 = vpop.permute.xlu0 %4771
        %4773 = vrot.lane.b32.xlu0 %v2749, 125
        %v4774 = vpop.permute.xlu0 %4773
        %4775 = vrot.lane.b32.xlu0 %v2753, 125
        %v4776 = vpop.permute.xlu0 %4775
        %4777 = vrot.lane.b32.xlu0 %v2757, 125
        %v4778 = vpop.permute.xlu0 %4777
        %4779 = vrot.lane.b32.xlu0 %v2761, 125
        %v4780 = vpop.permute.xlu0 %4779
        %4781 = vrot.lane.b32.xlu0 %v2765, 125
        %v4782 = vpop.permute.xlu0 %4781
        %4783 = vrot.lane.b32.xlu0 %v2769, 125
        %v4784 = vpop.permute.xlu0 %4783
        %4785 = vrot.lane.b32.xlu0 %v2773, 125
        %v4786 = vpop.permute.xlu0 %4785
        %4787 = vrot.lane.b32.xlu0 %v2777, 125
        %v4788 = vpop.permute.xlu0 %4787
        %4789 = vrot.lane.b32.xlu0 %v2781, 125
        %v4790 = vpop.permute.xlu0 %4789
        %4791 = vrot.lane.b32.xlu0 %v2785, 125
        %v4792 = vpop.permute.xlu0 %4791
        %4793 = vrot.lane.b32.xlu0 %v2789, 125
        %v4794 = vpop.permute.xlu0 %4793
        %4795 = vrot.lane.b32.xlu0 %v2793, 125
        %v4796 = vpop.permute.xlu0 %4795
        %4797 = vrot.lane.b32.xlu0 %v2797, 125
        %v4798 = vpop.permute.xlu0 %4797
        %4799 = vrot.lane.b32.xlu0 %v2738, 125
        %v4800 = vpop.permute.xlu0 %4799
        %4801 = vrot.lane.b32.xlu0 %v2742, 125
        %v4802 = vpop.permute.xlu0 %4801
        %4803 = vrot.lane.b32.xlu0 %v2746, 125
        %v4804 = vpop.permute.xlu0 %4803
        %4805 = vrot.lane.b32.xlu0 %v2750, 125
        %v4806 = vpop.permute.xlu0 %4805
        %4807 = vrot.lane.b32.xlu0 %v2754, 125
        %v4808 = vpop.permute.xlu0 %4807
        %4809 = vrot.lane.b32.xlu0 %v2758, 125
        %v4810 = vpop.permute.xlu0 %4809
        %4811 = vrot.lane.b32.xlu0 %v2762, 125
        %v4812 = vpop.permute.xlu0 %4811
        %4813 = vrot.lane.b32.xlu0 %v2766, 125
        %v4814 = vpop.permute.xlu0 %4813
        %4815 = vrot.lane.b32.xlu0 %v2770, 125
        %v4816 = vpop.permute.xlu0 %4815
        %4817 = vrot.lane.b32.xlu0 %v2774, 125
        %v4818 = vpop.permute.xlu0 %4817
        %4819 = vrot.lane.b32.xlu0 %v2778, 125
        %v4820 = vpop.permute.xlu0 %4819
        %4821 = vrot.lane.b32.xlu0 %v2782, 125
        %v4822 = vpop.permute.xlu0 %4821
        %4823 = vrot.lane.b32.xlu0 %v2786, 125
        %v4824 = vpop.permute.xlu0 %4823
        %4825 = vrot.lane.b32.xlu0 %v2790, 125
        %v4826 = vpop.permute.xlu0 %4825
        %4827 = vrot.lane.b32.xlu0 %v2794, 125
        %v4828 = vpop.permute.xlu0 %4827
        %4829 = vrot.lane.b32.xlu0 %v2798, 125
        %v4830 = vpop.permute.xlu0 %4829
        %vm4831 = vcmp.lt.s32.totalorder %v823, 125
        %v4832 = vsel %vm4831, %v4768, %v4800
        %v4833 = vsel %vm4831, %v4770, %v4802
        %v4834 = vsel %vm4831, %v4772, %v4804
        %v4835 = vsel %vm4831, %v4774, %v4806
        %v4836 = vsel %vm4831, %v4776, %v4808
        %v4837 = vsel %vm4831, %v4778, %v4810
        %v4838 = vsel %vm4831, %v4780, %v4812
        %v4839 = vsel %vm4831, %v4782, %v4814
        %v4840 = vsel %vm4831, %v4784, %v4816
        %v4841 = vsel %vm4831, %v4786, %v4818
        %v4842 = vsel %vm4831, %v4788, %v4820
        %v4843 = vsel %vm4831, %v4790, %v4822
        %v4844 = vsel %vm4831, %v4792, %v4824
        %v4845 = vsel %vm4831, %v4794, %v4826
        %v4846 = vsel %vm4831, %v4796, %v4828
        %v4847 = vsel %vm4831, %v4798, %v4830
        %v4848 = vsel %vm4831, %v4736, %v4768
        %v4849 = vsel %vm4831, %v4738, %v4770
        %v4850 = vsel %vm4831, %v4740, %v4772
        %v4851 = vsel %vm4831, %v4742, %v4774
        %v4852 = vsel %vm4831, %v4744, %v4776
        %v4853 = vsel %vm4831, %v4746, %v4778
        %v4854 = vsel %vm4831, %v4748, %v4780
        %v4855 = vsel %vm4831, %v4750, %v4782
        %v4856 = vsel %vm4831, %v4752, %v4784
        %v4857 = vsel %vm4831, %v4754, %v4786
        %v4858 = vsel %vm4831, %v4756, %v4788
        %v4859 = vsel %vm4831, %v4758, %v4790
        %v4860 = vsel %vm4831, %v4760, %v4792
        %v4861 = vsel %vm4831, %v4762, %v4794
        %v4862 = vsel %vm4831, %v4764, %v4796
        %v4863 = vsel %vm4831, %v4766, %v4798
        %s4864 = scalar_lea.vmem %s7, 384
        %v4865 = vld [vmem:[%s4864] sm:$0xf]
        %v4866 = vld [vmem:[%s4864 + $0x4] sm:$0xf]
        %v4867 = vld [vmem:[%s4864 + $0x8] sm:$0xf]
        %v4868 = vld [vmem:[%s4864 + $0xc] sm:$0xf]
        %v4869 = vld [vmem:[%s4864 + $0x10] sm:$0xf]
        %v4870 = vld [vmem:[%s4864 + $0x14] sm:$0xf]
        %v4871 = vld [vmem:[%s4864 + $0x18] sm:$0xf]
        %v4872 = vld [vmem:[%s4864 + $0x1c] sm:$0xf]
        %v4873 = vld [vmem:[%s4864 + $0x20] sm:$0xf]
        %v4874 = vld [vmem:[%s4864 + $0x24] sm:$0xf]
        %v4875 = vld [vmem:[%s4864 + $0x28] sm:$0xf]
        %v4876 = vld [vmem:[%s4864 + $0x2c] sm:$0xf]
        %v4877 = vld [vmem:[%s4864 + $0x30] sm:$0xf]
        %v4878 = vld [vmem:[%s4864 + $0x34] sm:$0xf]
        %v4879 = vld [vmem:[%s4864 + $0x38] sm:$0xf]
        %v4880 = vld [vmem:[%s4864 + $0x3c] sm:$0xf]
        %v4881 = vpack.c.bf16 %v4849, %v4848
        %v4882 = vpack.c.bf16 %v4833, %v4832
        %v4883 = vpack.c.bf16 %v4851, %v4850
        %v4884 = vpack.c.bf16 %v4835, %v4834
        %v4885 = vpack.c.bf16 %v4853, %v4852
        %v4886 = vpack.c.bf16 %v4837, %v4836
        %v4887 = vpack.c.bf16 %v4855, %v4854
        %v4888 = vpack.c.bf16 %v4839, %v4838
        %v4889 = vpack.c.bf16 %v4857, %v4856
        %v4890 = vpack.c.bf16 %v4841, %v4840
        %v4891 = vpack.c.bf16 %v4859, %v4858
        %v4892 = vpack.c.bf16 %v4843, %v4842
        %v4893 = vpack.c.bf16 %v4861, %v4860
        %v4894 = vpack.c.bf16 %v4845, %v4844
        %v4895 = vpack.c.bf16 %v4863, %v4862
        %v4896 = vpack.c.bf16 %v4847, %v4846
        %v4913 = vunpack.c.l.b16 %v4865
        %v4914 = vunpack.c.l.b16 %v4866
        %v4915 = vunpack.c.l.b16 %v4867
        %v4916 = vunpack.c.l.b16 %v4868
        %v4917 = vunpack.c.l.b16 %v4869
        %v4918 = vunpack.c.l.b16 %v4870
        %v4919 = vunpack.c.l.b16 %v4871
        %v4920 = vunpack.c.l.b16 %v4872
        %v4921 = vunpack.c.l.b16 %v4873
        %v4922 = vunpack.c.l.b16 %v4874
        %v4923 = vunpack.c.l.b16 %v4875
        %v4924 = vunpack.c.l.b16 %v4876
        %v4925 = vunpack.c.l.b16 %v4877
        %v4926 = vunpack.c.l.b16 %v4878
        %v4927 = vunpack.c.l.b16 %v4879
        %v4928 = vunpack.c.l.b16 %v4880
        %v4929 = vpack.c.b16 %v4914, %v4913
        %v4930 = vpack.c.b16 %v4916, %v4915
        %v4931 = vpack.c.b16 %v4918, %v4917
        %v4932 = vpack.c.b16 %v4920, %v4919
        %v4933 = vpack.c.b16 %v4922, %v4921
        %v4934 = vpack.c.b16 %v4924, %v4923
        %v4935 = vpack.c.b16 %v4926, %v4925
        %v4936 = vpack.c.b16 %v4928, %v4927
        %4945 = vmatprep.subr.bf16.mxu0 %v4882
        %4946 = vmatpush1.bf16.msra.mxu0 %v4881
        %4947 = vmatprep.subr.bf16.mxu0 %v4884
        %4948 = vmatpush1.bf16.msra.mxu0 %v4883
        %4949 = vmatprep.subr.bf16.mxu0 %v4886
        %4950 = vmatpush1.bf16.msra.mxu0 %v4885
        %4951 = vmatprep.subr.bf16.mxu0 %v4888
        %4952 = vmatpush1.bf16.msra.mxu0 %v4887
        %4953 = vmatprep.subr.bf16.mxu0 %v4890
        %4954 = vmatpush1.bf16.msra.mxu0 %v4889
        %4955 = vmatprep.subr.bf16.mxu0 %v4892
        %4956 = vmatpush1.bf16.msra.mxu0 %v4891
        %4957 = vmatprep.subr.bf16.mxu0 %v4894
        %4958 = vmatpush1.bf16.msra.mxu0 %v4893
        %4959 = vmatprep.subr.bf16.mxu0 %v4896
        %4960 = vmatpush1.bf16.msra.mxu0 %v4895
        %4961 = vmatprep.subr.bf16.mxu0 0
        %4962 = vmatpush1.bf16.msra.mxu0 0
        %4963 = vmatprep.subr.bf16.mxu0 0
        %4964 = vmatpush1.bf16.msra.mxu0 0
        %4965 = vmatprep.subr.bf16.mxu0 0
        %4966 = vmatpush1.bf16.msra.mxu0 0
        %4967 = vmatprep.subr.bf16.mxu0 0
        %4968 = vmatpush1.bf16.msra.mxu0 0
        %4969 = vmatprep.subr.bf16.mxu0 0
        %4970 = vmatpush1.bf16.msra.mxu0 0
        %4971 = vmatprep.subr.bf16.mxu0 0
        %4972 = vmatpush1.bf16.msra.mxu0 0
        %4973 = vmatprep.subr.bf16.mxu0 0
        %4974 = vmatpush1.bf16.msra.mxu0 0
        %4975 = vmatprep.subr.bf16.mxu0 0
        %4976 = vmatpush1.bf16.msra.mxu0 0
        %4977 = vmatprep.mubr.bf16.mxu0 0
        %4978 = vmatmul.mubr.bf16.gmra.mrb[0].mxu0 %v4929
        %v4979 = vpop.f32.mrb[0].mxu0
        %v4980 = vadd.f32 0.0, %v4979
        %v4981 = vpop.f32.mrb[0].mxu0
        %v4982 = vadd.f32 0.0, %v4981
        %v4983 = vpop.f32.mrb[0].mxu0
        %v4984 = vadd.f32 0.0, %v4983
        %v4985 = vpop.f32.mrb[0].mxu0
        %v4986 = vadd.f32 0.0, %v4985
        %4987 = vmatprep.mubr.bf16.mxu0 0
        %4988 = vmatmul.mubr.bf16.gmra.mrb[0].mxu0 %v4930
        %v4989 = vpop.f32.mrb[0].mxu0
        %v4990 = vadd.f32 0.0, %v4989
        %v4991 = vpop.f32.mrb[0].mxu0
        %v4992 = vadd.f32 0.0, %v4991
        %v4993 = vpop.f32.mrb[0].mxu0
        %v4994 = vadd.f32 0.0, %v4993
        %v4995 = vpop.f32.mrb[0].mxu0
        %v4996 = vadd.f32 0.0, %v4995
        %4997 = vmatprep.mubr.bf16.mxu0 0
        %4998 = vmatmul.mubr.bf16.gmra.mrb[0].mxu0 %v4931
        %v4999 = vpop.f32.mrb[0].mxu0
        %v5000 = vadd.f32 0.0, %v4999
        %v5001 = vpop.f32.mrb[0].mxu0
        %v5002 = vadd.f32 0.0, %v5001
        %v5003 = vpop.f32.mrb[0].mxu0
        %v5004 = vadd.f32 0.0, %v5003
        %v5005 = vpop.f32.mrb[0].mxu0
        %v5006 = vadd.f32 0.0, %v5005
        %5007 = vmatprep.mubr.bf16.mxu0 0
        %5008 = vmatmul.mubr.bf16.gmra.mrb[0].mxu0 %v4932
        %v5009 = vpop.f32.mrb[0].mxu0
        %v5010 = vadd.f32 0.0, %v5009
        %v5011 = vpop.f32.mrb[0].mxu0
        %v5012 = vadd.f32 0.0, %v5011
        %v5013 = vpop.f32.mrb[0].mxu0
        %v5014 = vadd.f32 0.0, %v5013
        %v5015 = vpop.f32.mrb[0].mxu0
        %v5016 = vadd.f32 0.0, %v5015
        %5017 = vmatprep.mubr.bf16.mxu0 0
        %5018 = vmatmul.mubr.bf16.gmra.mrb[0].mxu0 %v4933
        %v5019 = vpop.f32.mrb[0].mxu0
        %v5020 = vadd.f32 0.0, %v5019
        %v5021 = vpop.f32.mrb[0].mxu0
        %v5022 = vadd.f32 0.0, %v5021
        %v5023 = vpop.f32.mrb[0].mxu0
        %v5024 = vadd.f32 0.0, %v5023
        %v5025 = vpop.f32.mrb[0].mxu0
        %v5026 = vadd.f32 0.0, %v5025
        %5027 = vmatprep.mubr.bf16.mxu0 0
        %5028 = vmatmul.mubr.bf16.gmra.mrb[0].mxu0 %v4934
        %v5029 = vpop.f32.mrb[0].mxu0
        %v5030 = vadd.f32 0.0, %v5029
        %v5031 = vpop.f32.mrb[0].mxu0
        %v5032 = vadd.f32 0.0, %v5031
        %v5033 = vpop.f32.mrb[0].mxu0
        %v5034 = vadd.f32 0.0, %v5033
        %v5035 = vpop.f32.mrb[0].mxu0
        %v5036 = vadd.f32 0.0, %v5035
        %5037 = vmatprep.mubr.bf16.mxu0 0
        %5038 = vmatmul.mubr.bf16.gmra.mrb[0].mxu0 %v4935
        %v5039 = vpop.f32.mrb[0].mxu0
        %v5040 = vadd.f32 0.0, %v5039
        %v5041 = vpop.f32.mrb[0].mxu0
        %v5042 = vadd.f32 0.0, %v5041
        %v5043 = vpop.f32.mrb[0].mxu0
        %v5044 = vadd.f32 0.0, %v5043
        %v5045 = vpop.f32.mrb[0].mxu0
        %v5046 = vadd.f32 0.0, %v5045
        %5047 = vmatprep.mubr.bf16.mxu0 0
        %5048 = vmatmul.mubr.bf16.gmra.mrb[0].mxu0 %v4936
        %v5049 = vpop.f32.mrb[0].mxu0
        %v5050 = vadd.f32 0.0, %v5049
        %v5051 = vpop.f32.mrb[0].mxu0
        %v5052 = vadd.f32 0.0, %v5051
        %v5053 = vpop.f32.mrb[0].mxu0
        %v5054 = vadd.f32 0.0, %v5053
        %v5055 = vpop.f32.mrb[0].mxu0
        %v5056 = vadd.f32 0.0, %v5055
        %5057 = vdwg.mxu0
        %v5058 = vadd.f32 %v4703, %v4980
        %v5059 = vadd.f32 %v4704, %v4982
        %v5060 = vadd.f32 %v4705, %v4984
        %v5061 = vadd.f32 %v4706, %v4986
        %v5062 = vadd.f32 %v4707, %v4990
        %v5063 = vadd.f32 %v4708, %v4992
        %v5064 = vadd.f32 %v4709, %v4994
        %v5065 = vadd.f32 %v4710, %v4996
        %v5066 = vadd.f32 %v4711, %v5000
        %v5067 = vadd.f32 %v4712, %v5002
        %v5068 = vadd.f32 %v4713, %v5004
        %v5069 = vadd.f32 %v4714, %v5006
        %v5070 = vadd.f32 %v4715, %v5010
        %v5071 = vadd.f32 %v4716, %v5012
        %v5072 = vadd.f32 %v4717, %v5014
        %v5073 = vadd.f32 %v4718, %v5016
        %v5074 = vadd.f32 %v4719, %v5020
        %v5075 = vadd.f32 %v4720, %v5022
        %v5076 = vadd.f32 %v4721, %v5024
        %v5077 = vadd.f32 %v4722, %v5026
        %v5078 = vadd.f32 %v4723, %v5030
        %v5079 = vadd.f32 %v4724, %v5032
        %v5080 = vadd.f32 %v4725, %v5034
        %v5081 = vadd.f32 %v4726, %v5036
        %v5082 = vadd.f32 %v4727, %v5040
        %v5083 = vadd.f32 %v4728, %v5042
        %v5084 = vadd.f32 %v4729, %v5044
        %v5085 = vadd.f32 %v4730, %v5046
        %v5086 = vadd.f32 %v4731, %v5050
        %v5087 = vadd.f32 %v4732, %v5052
        %v5088 = vadd.f32 %v4733, %v5054
        %v5089 = vadd.f32 %v4734, %v5056
        %v5090 = vld [vmem:[%s8] sm:$0xff]
        %v5091 = vld [vmem:[%s8 + $0x8] sm:$0xff]
        %v5092 = vld [vmem:[%s8 + $0x10] sm:$0xff]
        %v5093 = vld [vmem:[%s8 + $0x18] sm:$0xff]
        %v5094 = vld [vmem:[%s8 + $0x20] sm:$0xff]
        %v5095 = vld [vmem:[%s8 + $0x28] sm:$0xff]
        %v5096 = vld [vmem:[%s8 + $0x30] sm:$0xff]
        %v5097 = vld [vmem:[%s8 + $0x38] sm:$0xff]
        %v5098 = vld [vmem:[%s8 + $0x40] sm:$0xff]
        %v5099 = vld [vmem:[%s8 + $0x48] sm:$0xff]
        %v5100 = vld [vmem:[%s8 + $0x50] sm:$0xff]
        %v5101 = vld [vmem:[%s8 + $0x58] sm:$0xff]
        %v5102 = vld [vmem:[%s8 + $0x60] sm:$0xff]
        %v5103 = vld [vmem:[%s8 + $0x68] sm:$0xff]
        %v5104 = vld [vmem:[%s8 + $0x70] sm:$0xff]
        %v5105 = vld [vmem:[%s8 + $0x78] sm:$0xff]
        %5107 = vset.pattern.permute.xlu0 0
        %5108 = vperm.xlu0 %5107, %v5090
        %v5109 = vpop.permute.xlu0 %5108
        %5112 = vset.pattern.permute.xlu0 0
        %5113 = vperm.xlu0 %5112, %v5091
        %v5114 = vpop.permute.xlu0 %5113
        %5117 = vset.pattern.permute.xlu0 0
        %5118 = vperm.xlu0 %5117, %v5092
        %v5119 = vpop.permute.xlu0 %5118
        %5122 = vset.pattern.permute.xlu0 0
        %5123 = vperm.xlu0 %5122, %v5093
        %v5124 = vpop.permute.xlu0 %5123
        %5127 = vset.pattern.permute.xlu0 0
        %5128 = vperm.xlu0 %5127, %v5094
        %v5129 = vpop.permute.xlu0 %5128
        %5132 = vset.pattern.permute.xlu0 0
        %5133 = vperm.xlu0 %5132, %v5095
        %v5134 = vpop.permute.xlu0 %5133
        %5137 = vset.pattern.permute.xlu0 0
        %5138 = vperm.xlu0 %5137, %v5096
        %v5139 = vpop.permute.xlu0 %5138
        %5142 = vset.pattern.permute.xlu0 0
        %5143 = vperm.xlu0 %5142, %v5097
        %v5144 = vpop.permute.xlu0 %5143
        %5147 = vset.pattern.permute.xlu0 0
        %5148 = vperm.xlu0 %5147, %v5098
        %v5149 = vpop.permute.xlu0 %5148
        %5152 = vset.pattern.permute.xlu0 0
        %5153 = vperm.xlu0 %5152, %v5099
        %v5154 = vpop.permute.xlu0 %5153
        %5157 = vset.pattern.permute.xlu0 0
        %5158 = vperm.xlu0 %5157, %v5100
        %v5159 = vpop.permute.xlu0 %5158
        %5162 = vset.pattern.permute.xlu0 0
        %5163 = vperm.xlu0 %5162, %v5101
        %v5164 = vpop.permute.xlu0 %5163
        %5167 = vset.pattern.permute.xlu0 0
        %5168 = vperm.xlu0 %5167, %v5102
        %v5169 = vpop.permute.xlu0 %5168
        %5172 = vset.pattern.permute.xlu0 0
        %5173 = vperm.xlu0 %5172, %v5103
        %v5174 = vpop.permute.xlu0 %5173
        %5177 = vset.pattern.permute.xlu0 0
        %5178 = vperm.xlu0 %5177, %v5104
        %v5179 = vpop.permute.xlu0 %5178
        %5182 = vset.pattern.permute.xlu0 0
        %5183 = vperm.xlu0 %5182, %v5105
        %v5184 = vpop.permute.xlu0 %5183
        %v5186 = vadd.f32 %v5058, %v5109
        %v5187 = vadd.f32 %v5059, %v5109
        %v5188 = vadd.f32 %v5060, %v5114
        %v5189 = vadd.f32 %v5061, %v5114
        %v5190 = vadd.f32 %v5062, %v5119
        %v5191 = vadd.f32 %v5063, %v5119
        %v5192 = vadd.f32 %v5064, %v5124
        %v5193 = vadd.f32 %v5065, %v5124
        %v5194 = vadd.f32 %v5066, %v5129
        %v5195 = vadd.f32 %v5067, %v5129
        %v5196 = vadd.f32 %v5068, %v5134
        %v5197 = vadd.f32 %v5069, %v5134
        %v5198 = vadd.f32 %v5070, %v5139
        %v5199 = vadd.f32 %v5071, %v5139
        %v5200 = vadd.f32 %v5072, %v5144
        %v5201 = vadd.f32 %v5073, %v5144
        %v5202 = vadd.f32 %v5074, %v5149
        %v5203 = vadd.f32 %v5075, %v5149
        %v5204 = vadd.f32 %v5076, %v5154
        %v5205 = vadd.f32 %v5077, %v5154
        %v5206 = vadd.f32 %v5078, %v5159
        %v5207 = vadd.f32 %v5079, %v5159
        %v5208 = vadd.f32 %v5080, %v5164
        %v5209 = vadd.f32 %v5081, %v5164
        %v5210 = vadd.f32 %v5082, %v5169
        %v5211 = vadd.f32 %v5083, %v5169
        %v5212 = vadd.f32 %v5084, %v5174
        %v5213 = vadd.f32 %v5085, %v5174
        %v5214 = vadd.f32 %v5086, %v5179
        %v5215 = vadd.f32 %v5087, %v5179
        %v5216 = vadd.f32 %v5088, %v5184
        %v5217 = vadd.f32 %v5089, %v5184
        %v5218 = vxor.u32 %v5186, 2147483648
        %v5219 = vxor.u32 %v5187, 2147483648
        %v5220 = vxor.u32 %v5188, 2147483648
        %v5221 = vxor.u32 %v5189, 2147483648
        %v5222 = vxor.u32 %v5190, 2147483648
        %v5223 = vxor.u32 %v5191, 2147483648
        %v5224 = vxor.u32 %v5192, 2147483648
        %v5225 = vxor.u32 %v5193, 2147483648
        %v5226 = vxor.u32 %v5194, 2147483648
        %v5227 = vxor.u32 %v5195, 2147483648
        %v5228 = vxor.u32 %v5196, 2147483648
        %v5229 = vxor.u32 %v5197, 2147483648
        %v5230 = vxor.u32 %v5198, 2147483648
        %v5231 = vxor.u32 %v5199, 2147483648
        %v5232 = vxor.u32 %v5200, 2147483648
        %v5233 = vxor.u32 %v5201, 2147483648
        %v5234 = vxor.u32 %v5202, 2147483648
        %v5235 = vxor.u32 %v5203, 2147483648
        %v5236 = vxor.u32 %v5204, 2147483648
        %v5237 = vxor.u32 %v5205, 2147483648
        %v5238 = vxor.u32 %v5206, 2147483648
        %v5239 = vxor.u32 %v5207, 2147483648
        %v5240 = vxor.u32 %v5208, 2147483648
        %v5241 = vxor.u32 %v5209, 2147483648
        %v5242 = vxor.u32 %v5210, 2147483648
        %v5243 = vxor.u32 %v5211, 2147483648
        %v5244 = vxor.u32 %v5212, 2147483648
        %v5245 = vxor.u32 %v5213, 2147483648
        %v5246 = vxor.u32 %v5214, 2147483648
        %v5247 = vxor.u32 %v5215, 2147483648
        %v5248 = vxor.u32 %v5216, 2147483648
        %v5249 = vxor.u32 %v5217, 2147483648
        %v5250 = vmul.f32 %v5218, 1.442695
        %v5251 = vpow.pop %v5250
        %v5252 = vmul.f32 %v5219, 1.442695
        %v5253 = vpow.pop %v5252
        %v5254 = vmul.f32 %v5220, 1.442695
        %v5255 = vpow.pop %v5254
        %v5256 = vmul.f32 %v5221, 1.442695
        %v5257 = vpow.pop %v5256
        %v5258 = vmul.f32 %v5222, 1.442695
        %v5259 = vpow.pop %v5258
        %v5260 = vmul.f32 %v5223, 1.442695
        %v5261 = vpow.pop %v5260
        %v5262 = vmul.f32 %v5224, 1.442695
        %v5263 = vpow.pop %v5262
        %v5264 = vmul.f32 %v5225, 1.442695
        %v5265 = vpow.pop %v5264
        %v5266 = vmul.f32 %v5226, 1.442695
        %v5267 = vpow.pop %v5266
        %v5268 = vmul.f32 %v5227, 1.442695
        %v5269 = vpow.pop %v5268
        %v5270 = vmul.f32 %v5228, 1.442695
        %v5271 = vpow.pop %v5270
        %v5272 = vmul.f32 %v5229, 1.442695
        %v5273 = vpow.pop %v5272
        %v5274 = vmul.f32 %v5230, 1.442695
        %v5275 = vpow.pop %v5274
        %v5276 = vmul.f32 %v5231, 1.442695
        %v5277 = vpow.pop %v5276
        %v5278 = vmul.f32 %v5232, 1.442695
        %v5279 = vpow.pop %v5278
        %v5280 = vmul.f32 %v5233, 1.442695
        %v5281 = vpow.pop %v5280
        %v5282 = vmul.f32 %v5234, 1.442695
        %v5283 = vpow.pop %v5282
        %v5284 = vmul.f32 %v5235, 1.442695
        %v5285 = vpow.pop %v5284
        %v5286 = vmul.f32 %v5236, 1.442695
        %v5287 = vpow.pop %v5286
        %v5288 = vmul.f32 %v5237, 1.442695
        %v5289 = vpow.pop %v5288
        %v5290 = vmul.f32 %v5238, 1.442695
        %v5291 = vpow.pop %v5290
        %v5292 = vmul.f32 %v5239, 1.442695
        %v5293 = vpow.pop %v5292
        %v5294 = vmul.f32 %v5240, 1.442695
        %v5295 = vpow.pop %v5294
        %v5296 = vmul.f32 %v5241, 1.442695
        %v5297 = vpow.pop %v5296
        %v5298 = vmul.f32 %v5242, 1.442695
        %v5299 = vpow.pop %v5298
        %v5300 = vmul.f32 %v5243, 1.442695
        %v5301 = vpow.pop %v5300
        %v5302 = vmul.f32 %v5244, 1.442695
        %v5303 = vpow.pop %v5302
        %v5304 = vmul.f32 %v5245, 1.442695
        %v5305 = vpow.pop %v5304
        %v5306 = vmul.f32 %v5246, 1.442695
        %v5307 = vpow.pop %v5306
        %v5308 = vmul.f32 %v5247, 1.442695
        %v5309 = vpow.pop %v5308
        %v5310 = vmul.f32 %v5248, 1.442695
        %v5311 = vpow.pop %v5310
        %v5312 = vmul.f32 %v5249, 1.442695
        %v5313 = vpow.pop %v5312
        %v5314 = vadd.f32 %v5251, 1.0
        %v5315 = vadd.f32 %v5253, 1.0
        %v5316 = vadd.f32 %v5255, 1.0
        %v5317 = vadd.f32 %v5257, 1.0
        %v5318 = vadd.f32 %v5259, 1.0
        %v5319 = vadd.f32 %v5261, 1.0
        %v5320 = vadd.f32 %v5263, 1.0
        %v5321 = vadd.f32 %v5265, 1.0
        %v5322 = vadd.f32 %v5267, 1.0
        %v5323 = vadd.f32 %v5269, 1.0
        %v5324 = vadd.f32 %v5271, 1.0
        %v5325 = vadd.f32 %v5273, 1.0
        %v5326 = vadd.f32 %v5275, 1.0
        %v5327 = vadd.f32 %v5277, 1.0
        %v5328 = vadd.f32 %v5279, 1.0
        %v5329 = vadd.f32 %v5281, 1.0
        %v5330 = vadd.f32 %v5283, 1.0
        %v5331 = vadd.f32 %v5285, 1.0
        %v5332 = vadd.f32 %v5287, 1.0
        %v5333 = vadd.f32 %v5289, 1.0
        %v5334 = vadd.f32 %v5291, 1.0
        %v5335 = vadd.f32 %v5293, 1.0
        %v5336 = vadd.f32 %v5295, 1.0
        %v5337 = vadd.f32 %v5297, 1.0
        %v5338 = vadd.f32 %v5299, 1.0
        %v5339 = vadd.f32 %v5301, 1.0
        %v5340 = vadd.f32 %v5303, 1.0
        %v5341 = vadd.f32 %v5305, 1.0
        %v5342 = vadd.f32 %v5307, 1.0
        %v5343 = vadd.f32 %v5309, 1.0
        %v5344 = vadd.f32 %v5311, 1.0
        %v5345 = vadd.f32 %v5313, 1.0
        %v5346 = vrcp.pop %v5314
        %v5347 = vmul.f32 1.0, %v5346
        %v5348 = vrcp.pop %v5315
        %v5349 = vmul.f32 1.0, %v5348
        %v5350 = vrcp.pop %v5316
        %v5351 = vmul.f32 1.0, %v5350
        %v5352 = vrcp.pop %v5317
        %v5353 = vmul.f32 1.0, %v5352
        %v5354 = vrcp.pop %v5318
        %v5355 = vmul.f32 1.0, %v5354
        %v5356 = vrcp.pop %v5319
        %v5357 = vmul.f32 1.0, %v5356
        %v5358 = vrcp.pop %v5320
        %v5359 = vmul.f32 1.0, %v5358
        %v5360 = vrcp.pop %v5321
        %v5361 = vmul.f32 1.0, %v5360
        %v5362 = vrcp.pop %v5322
        %v5363 = vmul.f32 1.0, %v5362
        %v5364 = vrcp.pop %v5323
        %v5365 = vmul.f32 1.0, %v5364
        %v5366 = vrcp.pop %v5324
        %v5367 = vmul.f32 1.0, %v5366
        %v5368 = vrcp.pop %v5325
        %v5369 = vmul.f32 1.0, %v5368
        %v5370 = vrcp.pop %v5326
        %v5371 = vmul.f32 1.0, %v5370
        %v5372 = vrcp.pop %v5327
        %v5373 = vmul.f32 1.0, %v5372
        %v5374 = vrcp.pop %v5328
        %v5375 = vmul.f32 1.0, %v5374
        %v5376 = vrcp.pop %v5329
        %v5377 = vmul.f32 1.0, %v5376
        %v5378 = vrcp.pop %v5330
        %v5379 = vmul.f32 1.0, %v5378
        %v5380 = vrcp.pop %v5331
        %v5381 = vmul.f32 1.0, %v5380
        %v5382 = vrcp.pop %v5332
        %v5383 = vmul.f32 1.0, %v5382
        %v5384 = vrcp.pop %v5333
        %v5385 = vmul.f32 1.0, %v5384
        %v5386 = vrcp.pop %v5334
        %v5387 = vmul.f32 1.0, %v5386
        %v5388 = vrcp.pop %v5335
        %v5389 = vmul.f32 1.0, %v5388
        %v5390 = vrcp.pop %v5336
        %v5391 = vmul.f32 1.0, %v5390
        %v5392 = vrcp.pop %v5337
        %v5393 = vmul.f32 1.0, %v5392
        %v5394 = vrcp.pop %v5338
        %v5395 = vmul.f32 1.0, %v5394
        %v5396 = vrcp.pop %v5339
        %v5397 = vmul.f32 1.0, %v5396
        %v5398 = vrcp.pop %v5340
        %v5399 = vmul.f32 1.0, %v5398
        %v5400 = vrcp.pop %v5341
        %v5401 = vmul.f32 1.0, %v5400
        %v5402 = vrcp.pop %v5342
        %v5403 = vmul.f32 1.0, %v5402
        %v5404 = vrcp.pop %v5343
        %v5405 = vmul.f32 1.0, %v5404
        %v5406 = vrcp.pop %v5344
        %v5407 = vmul.f32 1.0, %v5406
        %v5408 = vrcp.pop %v5345
        %v5409 = vmul.f32 1.0, %v5408
        %v5410 = vmul.f32 %v5186, %v5347
        %v5411 = vmul.f32 %v5187, %v5349
        %v5412 = vmul.f32 %v5188, %v5351
        %v5413 = vmul.f32 %v5189, %v5353
        %v5414 = vmul.f32 %v5190, %v5355
        %v5415 = vmul.f32 %v5191, %v5357
        %v5416 = vmul.f32 %v5192, %v5359
        %v5417 = vmul.f32 %v5193, %v5361
        %v5418 = vmul.f32 %v5194, %v5363
        %v5419 = vmul.f32 %v5195, %v5365
        %v5420 = vmul.f32 %v5196, %v5367
        %v5421 = vmul.f32 %v5197, %v5369
        %v5422 = vmul.f32 %v5198, %v5371
        %v5423 = vmul.f32 %v5199, %v5373
        %v5424 = vmul.f32 %v5200, %v5375
        %v5425 = vmul.f32 %v5201, %v5377
        %v5426 = vmul.f32 %v5202, %v5379
        %v5427 = vmul.f32 %v5203, %v5381
        %v5428 = vmul.f32 %v5204, %v5383
        %v5429 = vmul.f32 %v5205, %v5385
        %v5430 = vmul.f32 %v5206, %v5387
        %v5431 = vmul.f32 %v5207, %v5389
        %v5432 = vmul.f32 %v5208, %v5391
        %v5433 = vmul.f32 %v5209, %v5393
        %v5434 = vmul.f32 %v5210, %v5395
        %v5435 = vmul.f32 %v5211, %v5397
        %v5436 = vmul.f32 %v5212, %v5399
        %v5437 = vmul.f32 %v5213, %v5401
        %v5438 = vmul.f32 %v5214, %v5403
        %v5439 = vmul.f32 %v5215, %v5405
        %v5440 = vmul.f32 %v5216, %v5407
        %v5441 = vmul.f32 %v5217, %v5409
        %v5442 = vld [vmem:[%s9] sm:$0xf]
        %v5443 = vld [vmem:[%s9 + $0x4] sm:$0xf]
        %v5444 = vld [vmem:[%s9 + $0x8] sm:$0xf]
        %v5445 = vld [vmem:[%s9 + $0xc] sm:$0xf]
        %v5446 = vld [vmem:[%s9 + $0x10] sm:$0xf]
        %v5447 = vld [vmem:[%s9 + $0x14] sm:$0xf]
        %v5448 = vld [vmem:[%s9 + $0x18] sm:$0xf]
        %v5449 = vld [vmem:[%s9 + $0x1c] sm:$0xf]
        %v5450 = vld [vmem:[%s9 + $0x20] sm:$0xf]
        %v5451 = vld [vmem:[%s9 + $0x24] sm:$0xf]
        %v5452 = vld [vmem:[%s9 + $0x28] sm:$0xf]
        %v5453 = vld [vmem:[%s9 + $0x2c] sm:$0xf]
        %v5454 = vld [vmem:[%s9 + $0x30] sm:$0xf]
        %v5455 = vld [vmem:[%s9 + $0x34] sm:$0xf]
        %v5456 = vld [vmem:[%s9 + $0x38] sm:$0xf]
        %v5457 = vld [vmem:[%s9 + $0x3c] sm:$0xf]
        %v5458 = vpack.c.bf16 %v5412, %v5410
        %v5459 = vpack.c.bf16 %v5413, %v5411
        %v5460 = vpack.c.bf16 %v5416, %v5414
        %v5461 = vpack.c.bf16 %v5417, %v5415
        %v5462 = vpack.c.bf16 %v5420, %v5418
        %v5463 = vpack.c.bf16 %v5421, %v5419
        %v5464 = vpack.c.bf16 %v5424, %v5422
        %v5465 = vpack.c.bf16 %v5425, %v5423
        %v5466 = vpack.c.bf16 %v5428, %v5426
        %v5467 = vpack.c.bf16 %v5429, %v5427
        %v5468 = vpack.c.bf16 %v5432, %v5430
        %v5469 = vpack.c.bf16 %v5433, %v5431
        %v5470 = vpack.c.bf16 %v5436, %v5434
        %v5471 = vpack.c.bf16 %v5437, %v5435
        %v5472 = vpack.c.bf16 %v5440, %v5438
        %v5473 = vpack.c.bf16 %v5441, %v5439
        %v5474 = vld [vmem:[%s10] sm:$0xff]
        %v5475 = vld [vmem:[%s10 + $0x8] sm:$0xff]
        %v5476 = vld [vmem:[%s10 + $0x10] sm:$0xff]
        %v5477 = vld [vmem:[%s10 + $0x18] sm:$0xff]
        %v5478 = vld [vmem:[%s10 + $0x20] sm:$0xff]
        %v5479 = vld [vmem:[%s10 + $0x28] sm:$0xff]
        %v5480 = vld [vmem:[%s10 + $0x30] sm:$0xff]
        %v5481 = vld [vmem:[%s10 + $0x38] sm:$0xff]
        %v5482 = vld [vmem:[%s10 + $0x40] sm:$0xff]
        %v5483 = vld [vmem:[%s10 + $0x48] sm:$0xff]
        %v5484 = vld [vmem:[%s10 + $0x50] sm:$0xff]
        %v5485 = vld [vmem:[%s10 + $0x58] sm:$0xff]
        %v5486 = vld [vmem:[%s10 + $0x60] sm:$0xff]
        %v5487 = vld [vmem:[%s10 + $0x68] sm:$0xff]
        %v5488 = vld [vmem:[%s10 + $0x70] sm:$0xff]
        %v5489 = vld [vmem:[%s10 + $0x78] sm:$0xff]
        %5491 = vset.pattern.permute.xlu0 0
        %5492 = vperm.xlu0 %5491, %v5474
        %v5493 = vpop.permute.xlu0 %5492
        %5496 = vset.pattern.permute.xlu0 0
        %5497 = vperm.xlu0 %5496, %v5475
        %v5498 = vpop.permute.xlu0 %5497
        %5501 = vset.pattern.permute.xlu0 0
        %5502 = vperm.xlu0 %5501, %v5476
        %v5503 = vpop.permute.xlu0 %5502
        %5506 = vset.pattern.permute.xlu0 0
        %5507 = vperm.xlu0 %5506, %v5477
        %v5508 = vpop.permute.xlu0 %5507
        %5511 = vset.pattern.permute.xlu0 0
        %5512 = vperm.xlu0 %5511, %v5478
        %v5513 = vpop.permute.xlu0 %5512
        %5516 = vset.pattern.permute.xlu0 0
        %5517 = vperm.xlu0 %5516, %v5479
        %v5518 = vpop.permute.xlu0 %5517
        %5521 = vset.pattern.permute.xlu0 0
        %5522 = vperm.xlu0 %5521, %v5480
        %v5523 = vpop.permute.xlu0 %5522
        %5526 = vset.pattern.permute.xlu0 0
        %5527 = vperm.xlu0 %5526, %v5481
        %v5528 = vpop.permute.xlu0 %5527
        %5531 = vset.pattern.permute.xlu0 0
        %5532 = vperm.xlu0 %5531, %v5482
        %v5533 = vpop.permute.xlu0 %5532
        %5536 = vset.pattern.permute.xlu0 0
        %5537 = vperm.xlu0 %5536, %v5483
        %v5538 = vpop.permute.xlu0 %5537
        %5541 = vset.pattern.permute.xlu0 0
        %5542 = vperm.xlu0 %5541, %v5484
        %v5543 = vpop.permute.xlu0 %5542
        %5546 = vset.pattern.permute.xlu0 0
        %5547 = vperm.xlu0 %5546, %v5485
        %v5548 = vpop.permute.xlu0 %5547
        %5551 = vset.pattern.permute.xlu0 0
        %5552 = vperm.xlu0 %5551, %v5486
        %v5553 = vpop.permute.xlu0 %5552
        %5556 = vset.pattern.permute.xlu0 0
        %5557 = vperm.xlu0 %5556, %v5487
        %v5558 = vpop.permute.xlu0 %5557
        %5561 = vset.pattern.permute.xlu0 0
        %5562 = vperm.xlu0 %5561, %v5488
        %v5563 = vpop.permute.xlu0 %5562
        %5566 = vset.pattern.permute.xlu0 0
        %5567 = vperm.xlu0 %5566, %v5489
        %v5568 = vpop.permute.xlu0 %5567
        %v5586 = vunpack.c.l.b16 %v5442
        %v5587 = vunpack.c.l.b16 %v5443
        %v5588 = vunpack.c.l.b16 %v5444
        %v5589 = vunpack.c.l.b16 %v5445
        %v5590 = vunpack.c.l.b16 %v5446
        %v5591 = vunpack.c.l.b16 %v5447
        %v5592 = vunpack.c.l.b16 %v5448
        %v5593 = vunpack.c.l.b16 %v5449
        %v5594 = vunpack.c.l.b16 %v5450
        %v5595 = vunpack.c.l.b16 %v5451
        %v5596 = vunpack.c.l.b16 %v5452
        %v5597 = vunpack.c.l.b16 %v5453
        %v5598 = vunpack.c.l.b16 %v5454
        %v5599 = vunpack.c.l.b16 %v5455
        %v5600 = vunpack.c.l.b16 %v5456
        %v5601 = vunpack.c.l.b16 %v5457
        %v5602 = vpack.c.b16 %v5587, %v5586
        %v5603 = vpack.c.b16 %v5589, %v5588
        %v5604 = vpack.c.b16 %v5591, %v5590
        %v5605 = vpack.c.b16 %v5593, %v5592
        %v5606 = vpack.c.b16 %v5595, %v5594
        %v5607 = vpack.c.b16 %v5597, %v5596
        %v5608 = vpack.c.b16 %v5599, %v5598
        %v5609 = vpack.c.b16 %v5601, %v5600
        %5618 = vmatprep.subr.bf16.mxu0 %v5459
        %5619 = vmatpush1.bf16.msra.mxu0 %v5458
        %5620 = vmatprep.subr.bf16.mxu0 %v5461
        %5621 = vmatpush1.bf16.msra.mxu0 %v5460
        %5622 = vmatprep.subr.bf16.mxu0 %v5463
        %5623 = vmatpush1.bf16.msra.mxu0 %v5462
        %5624 = vmatprep.subr.bf16.mxu0 %v5465
        %5625 = vmatpush1.bf16.msra.mxu0 %v5464
        %5626 = vmatprep.subr.bf16.mxu0 %v5467
        %5627 = vmatpush1.bf16.msra.mxu0 %v5466
        %5628 = vmatprep.subr.bf16.mxu0 %v5469
        %5629 = vmatpush1.bf16.msra.mxu0 %v5468
        %5630 = vmatprep.subr.bf16.mxu0 %v5471
        %5631 = vmatpush1.bf16.msra.mxu0 %v5470
        %5632 = vmatprep.subr.bf16.mxu0 %v5473
        %5633 = vmatpush1.bf16.msra.mxu0 %v5472
        %5634 = vmatprep.subr.bf16.mxu0 0
        %5635 = vmatpush1.bf16.msra.mxu0 0
        %5636 = vmatprep.subr.bf16.mxu0 0
        %5637 = vmatpush1.bf16.msra.mxu0 0
        %5638 = vmatprep.subr.bf16.mxu0 0
        %5639 = vmatpush1.bf16.msra.mxu0 0
        %5640 = vmatprep.subr.bf16.mxu0 0
        %5641 = vmatpush1.bf16.msra.mxu0 0
        %5642 = vmatprep.subr.bf16.mxu0 0
        %5643 = vmatpush1.bf16.msra.mxu0 0
        %5644 = vmatprep.subr.bf16.mxu0 0
        %5645 = vmatpush1.bf16.msra.mxu0 0
        %5646 = vmatprep.subr.bf16.mxu0 0
        %5647 = vmatpush1.bf16.msra.mxu0 0
        %5648 = vmatprep.subr.bf16.mxu0 0
        %5649 = vmatpush1.bf16.msra.mxu0 0
        %5650 = vmatprep.mubr.bf16.mxu0 0
        %5651 = vmatmul.mubr.bf16.gmra.mrb[0].mxu0 %v5602
        %v5652 = vpop.f32.mrb[0].mxu0
        %v5653 = vadd.f32 %v5493, %v5652
        %v5654 = vpop.f32.mrb[0].mxu0
        %v5655 = vadd.f32 %v5493, %v5654
        %v5656 = vpop.f32.mrb[0].mxu0
        %v5657 = vadd.f32 %v5498, %v5656
        %v5658 = vpop.f32.mrb[0].mxu0
        %v5659 = vadd.f32 %v5498, %v5658
        %5660 = vmatprep.mubr.bf16.mxu0 0
        %5661 = vmatmul.mubr.bf16.gmra.mrb[0].mxu0 %v5603
        %v5662 = vpop.f32.mrb[0].mxu0
        %v5663 = vadd.f32 %v5503, %v5662
        %v5664 = vpop.f32.mrb[0].mxu0
        %v5665 = vadd.f32 %v5503, %v5664
        %v5666 = vpop.f32.mrb[0].mxu0
        %v5667 = vadd.f32 %v5508, %v5666
        %v5668 = vpop.f32.mrb[0].mxu0
        %v5669 = vadd.f32 %v5508, %v5668
        %5670 = vmatprep.mubr.bf16.mxu0 0
        %5671 = vmatmul.mubr.bf16.gmra.mrb[0].mxu0 %v5604
        %v5672 = vpop.f32.mrb[0].mxu0
        %v5673 = vadd.f32 %v5513, %v5672
        %v5674 = vpop.f32.mrb[0].mxu0
        %v5675 = vadd.f32 %v5513, %v5674
        %v5676 = vpop.f32.mrb[0].mxu0
        %v5677 = vadd.f32 %v5518, %v5676
        %v5678 = vpop.f32.mrb[0].mxu0
        %v5679 = vadd.f32 %v5518, %v5678
        %5680 = vmatprep.mubr.bf16.mxu0 0
        %5681 = vmatmul.mubr.bf16.gmra.mrb[0].mxu0 %v5605
        %v5682 = vpop.f32.mrb[0].mxu0
        %v5683 = vadd.f32 %v5523, %v5682
        %v5684 = vpop.f32.mrb[0].mxu0
        %v5685 = vadd.f32 %v5523, %v5684
        %v5686 = vpop.f32.mrb[0].mxu0
        %v5687 = vadd.f32 %v5528, %v5686
        %v5688 = vpop.f32.mrb[0].mxu0
        %v5689 = vadd.f32 %v5528, %v5688
        %5690 = vmatprep.mubr.bf16.mxu0 0
        %5691 = vmatmul.mubr.bf16.gmra.mrb[0].mxu0 %v5606
        %v5692 = vpop.f32.mrb[0].mxu0
        %v5693 = vadd.f32 %v5533, %v5692
        %v5694 = vpop.f32.mrb[0].mxu0
        %v5695 = vadd.f32 %v5533, %v5694
        %v5696 = vpop.f32.mrb[0].mxu0
        %v5697 = vadd.f32 %v5538, %v5696
        %v5698 = vpop.f32.mrb[0].mxu0
        %v5699 = vadd.f32 %v5538, %v5698
        %5700 = vmatprep.mubr.bf16.mxu0 0
        %5701 = vmatmul.mubr.bf16.gmra.mrb[0].mxu0 %v5607
        %v5702 = vpop.f32.mrb[0].mxu0
        %v5703 = vadd.f32 %v5543, %v5702
        %v5704 = vpop.f32.mrb[0].mxu0
        %v5705 = vadd.f32 %v5543, %v5704
        %v5706 = vpop.f32.mrb[0].mxu0
        %v5707 = vadd.f32 %v5548, %v5706
        %v5708 = vpop.f32.mrb[0].mxu0
        %v5709 = vadd.f32 %v5548, %v5708
        %5710 = vmatprep.mubr.bf16.mxu0 0
        %5711 = vmatmul.mubr.bf16.gmra.mrb[0].mxu0 %v5608
        %v5712 = vpop.f32.mrb[0].mxu0
        %v5713 = vadd.f32 %v5553, %v5712
        %v5714 = vpop.f32.mrb[0].mxu0
        %v5715 = vadd.f32 %v5553, %v5714
        %v5716 = vpop.f32.mrb[0].mxu0
        %v5717 = vadd.f32 %v5558, %v5716
        %v5718 = vpop.f32.mrb[0].mxu0
        %v5719 = vadd.f32 %v5558, %v5718
        %5720 = vmatprep.mubr.bf16.mxu0 0
        %5721 = vmatmul.mubr.bf16.gmra.mrb[0].mxu0 %v5609
        %v5722 = vpop.f32.mrb[0].mxu0
        %v5723 = vadd.f32 %v5563, %v5722
        %v5724 = vpop.f32.mrb[0].mxu0
        %v5725 = vadd.f32 %v5563, %v5724
        %v5726 = vpop.f32.mrb[0].mxu0
        %v5727 = vadd.f32 %v5568, %v5726
        %v5728 = vpop.f32.mrb[0].mxu0
        %v5729 = vadd.f32 %v5568, %v5728
        %5730 = vdwg.mxu0
        %v5731 = vadd.f32 %v5653, %v772
        %v5732 = vadd.f32 %v5655, %v773
        %v5733 = vadd.f32 %v5657, %v774
        %v5734 = vadd.f32 %v5659, %v775
        %v5735 = vadd.f32 %v5663, %v776
        %v5736 = vadd.f32 %v5665, %v777
        %v5737 = vadd.f32 %v5667, %v778
        %v5738 = vadd.f32 %v5669, %v779
        %v5739 = vadd.f32 %v5673, %v780
        %v5740 = vadd.f32 %v5675, %v781
        %v5741 = vadd.f32 %v5677, %v782
        %v5742 = vadd.f32 %v5679, %v783
        %v5743 = vadd.f32 %v5683, %v784
        %v5744 = vadd.f32 %v5685, %v785
        %v5745 = vadd.f32 %v5687, %v786
        %v5746 = vadd.f32 %v5689, %v787
        %v5747 = vadd.f32 %v5693, %v788
        %v5748 = vadd.f32 %v5695, %v789
        %v5749 = vadd.f32 %v5697, %v790
        %v5750 = vadd.f32 %v5699, %v791
        %v5751 = vadd.f32 %v5703, %v792
        %v5752 = vadd.f32 %v5705, %v793
        %v5753 = vadd.f32 %v5707, %v794
        %v5754 = vadd.f32 %v5709, %v795
        %v5755 = vadd.f32 %v5713, %v796
        %v5756 = vadd.f32 %v5715, %v797
        %v5757 = vadd.f32 %v5717, %v798
        %v5758 = vadd.f32 %v5719, %v799
        %v5759 = vadd.f32 %v5723, %v800
        %v5760 = vadd.f32 %v5725, %v801
        %v5761 = vadd.f32 %v5727, %v802
        %v5762 = vadd.f32 %v5729, %v803
        %5763 = vst [vmem:[%s744] sm:$0xff] %v5731
        %5764 = vst [vmem:[%s744 + $0x8] sm:$0xff] %v5732
        %5765 = vst [vmem:[%s744 + $0x10] sm:$0xff] %v5733
        %5766 = vst [vmem:[%s744 + $0x18] sm:$0xff] %v5734
        %5767 = vst [vmem:[%s744 + $0x20] sm:$0xff] %v5735
        %5768 = vst [vmem:[%s744 + $0x28] sm:$0xff] %v5736
        %5769 = vst [vmem:[%s744 + $0x30] sm:$0xff] %v5737
        %5770 = vst [vmem:[%s744 + $0x38] sm:$0xff] %v5738
        %5771 = vst [vmem:[%s744 + $0x40] sm:$0xff] %v5739
        %5772 = vst [vmem:[%s744 + $0x48] sm:$0xff] %v5740
        %5773 = vst [vmem:[%s744 + $0x50] sm:$0xff] %v5741
        %5774 = vst [vmem:[%s744 + $0x58] sm:$0xff] %v5742
        %5775 = vst [vmem:[%s744 + $0x60] sm:$0xff] %v5743
        %5776 = vst [vmem:[%s744 + $0x68] sm:$0xff] %v5744
        %5777 = vst [vmem:[%s744 + $0x70] sm:$0xff] %v5745
        %5778 = vst [vmem:[%s744 + $0x78] sm:$0xff] %v5746
        %5779 = vst [vmem:[%s744 + $0x80] sm:$0xff] %v5747
        %5780 = vst [vmem:[%s744 + $0x88] sm:$0xff] %v5748
        %5781 = vst [vmem:[%s744 + $0x90] sm:$0xff] %v5749
        %5782 = vst [vmem:[%s744 + $0x98] sm:$0xff] %v5750
        %5783 = vst [vmem:[%s744 + $0xa0] sm:$0xff] %v5751
        %5784 = vst [vmem:[%s744 + $0xa8] sm:$0xff] %v5752
        %5785 = vst [vmem:[%s744 + $0xb0] sm:$0xff] %v5753
        %5786 = vst [vmem:[%s744 + $0xb8] sm:$0xff] %v5754
        %5787 = vst [vmem:[%s744 + $0xc0] sm:$0xff] %v5755
        %5788 = vst [vmem:[%s744 + $0xc8] sm:$0xff] %v5756
        %5789 = vst [vmem:[%s744 + $0xd0] sm:$0xff] %v5757
        %5790 = vst [vmem:[%s744 + $0xd8] sm:$0xff] %v5758
        %5791 = vst [vmem:[%s744 + $0xe0] sm:$0xff] %v5759
        %5792 = vst [vmem:[%s744 + $0xe8] sm:$0xff] %v5760
        %5793 = vst [vmem:[%s744 + $0xf0] sm:$0xff] %v5761
        %5794 = vst [vmem:[%s744 + $0xf8] sm:$0xff] %v5762
        %s5795 = sand.u32 %s315, 1
        %s5796 = scalar_lea.sflag [#allocation6], %s5795
        %s5797 = sand.u32 %s315, 1
        %s5798 = smul.addr %s5797, 256
        %s5799 = scalar_lea.vmem [#allocation5], %s5798
        // Predicated region
        $region164: #{conv_module_forward.1} parent=150 // pred_check
          %p5800 = pneg %p325
        $region165: #{conv_module_forward.1} parent=150 // pred_check_branch
          %5802 = sbr.rel (%p5800) target = $region167
        $region166: #{conv_module_forward.1} parent=150 // pred_region
          %s5803 = smul.u32 2, %s30
          %s5805 = ssub.s32 4096, 4096
          %5806 = vsyncadd %s5796, %s5805
          %s5807 = smul.addr %s29, 128
          %s5808 = sadd.s32 %s5803, %s5807
          %s5809 = smul.addr %s5808, 128
          %s5810 = scalar_lea.hbm %s11, %s5809
          %s5811 = sshll.u32 %s5799, 4
          %s5812 = int_to_ptr.vmem [resolvable:$true] %s5811
          %5817 = dma.vmem_to_hbm [thread:$0]  %s5812, 4096, %s5810, %s5796, 256, 1024, 16
        $region167: #{conv_module_forward.1} parent=150 // pred_fallthru
          _
      $region151: #{conv_module_forward.1} parent=5 // pred_fallthru
        _
      %p5818 = scmp.le.s32.totalorder 2, %s20
      // Predicated region
      $region168: #{conv_module_forward.1} parent=5 // pred_check
        %p5819 = pneg %p5818
      $region169: #{conv_module_forward.1} parent=5 // pred_check_branch
        %5821 = sbr.rel (%p5819) target = $region171
      $region170: #{conv_module_forward.1} parent=5 // pred_region
        %s5822 = ssub.s32 %s20, 2
        // Predicated region
        $region172: #{conv_module_forward.1} parent=170 // pred_check
          %p5823 = pneg %p331
        $region173: #{conv_module_forward.1} parent=170 // pred_check_branch
          %5825 = sbr.rel (%p5823) target = $region175
        $region174: #{conv_module_forward.1} parent=170 // pred_region
          %s5826 = sand.u32 %s316, 1
          %s5827 = scalar_lea.sflag [#allocation6], %s5826
          %s5828 = sand.u32 %s316, 1
          %s5829 = smul.addr %s5828, 256
          %s5830 = scalar_lea.vmem [#allocation5], %s5829
          %5831 = dma.done %s5827, 4096
        $region175: #{conv_module_forward.1} parent=170 // pred_fallthru
          _
      $region171: #{conv_module_forward.1} parent=5 // pred_fallthru
        _
    $region6: #{conv_module_forward.1} parent=1 // loop_footer
      %s24 = sadd.s32 1, %s20
    $region7: #{conv_module_forward.1} parent=1 // loop_footer_branch
      %19 = sbr.rel target = $region3
    $region8: #{conv_module_forward.1} parent=1 // loop_exit
      _
    %5832 = vsyncpa [#allocation6], 1
    %s5833 = scalar_lea.sflag [#allocation6], 1
    %5834 = vsyncpa %s5833, 1

</llo_original>
